<compile_context>
chip_gen: v7x
topology: tpu7x:2x2x1
jax: 0.10.0
libtpu: 0.0.40
codegen_flags: <defaults>
</compile_context>

<pallas_src>
import functools
import math

import jax
import jax.numpy as jnp
from jax.experimental import pallas as pl
from jax.experimental.pallas import tpu as pltpu

_GELU_C = math.sqrt(2.0 / math.pi)
_VMEM_BUDGET = 36 * 1024 * 1024   # tile-selection budget (safe on v5e/v6e/v7x)
_VMEM_LIMIT = 48 * 1024 * 1024    # explicit scoped-VMEM limit handed to Mosaic


def _gelu_f32(y):
    # tanh-approx GELU.
    # TODO(synk): use exact erf GELU for bit-parity with PyTorch nn.GELU default.
    return 0.5 * y * (1.0 + jnp.tanh(_GELU_C * (y + 0.044715 * y * y * y)))


def _itemsize(x):
    return jnp.dtype(x.dtype).itemsize


def _pick_block(dim, target, align):
    """Largest block <= target that is a multiple of `align` and divides `dim`;
    falls back to the full dim (always a legal TPU block shape)."""
    if dim <= target:
        return dim
    t = (min(target, dim) // align) * align
    while t >= align:
        if dim % t == 0:
            return t
        t -= align
    return dim


def _choose_bm(M, tm, fits):
    """Largest 16-aligned divisor of M that is <= tm and passes the VMEM-budget
    check `fits`; falls back to the full M.  Returns None if nothing fits."""
    c = (min(tm, M) // 16) * 16
    while c >= 16:
        if M % c == 0 and fits(c):
            return c
        c -= 16
    if fits(M):
        return M
    return None


# ----------------------- weight-resident matmul kernel ----------------------
# Full K x N weight panel lives in VMEM; grid = (M//bm,).  Bias add, optional
# GELU and optional residual-add are fused into the single MXU pass.

def _mm_resident_kernel(*refs, gelu, has_residual):
    if has_residual:
        x_ref, w_ref, b_ref, r_ref, o_ref = refs
    else:
        x_ref, w_ref, b_ref, o_ref = refs
        r_ref = None
    y = jnp.dot(x_ref[...].astype(jnp.bfloat16),
                w_ref[...].astype(jnp.bfloat16),
                preferred_element_type=jnp.float32) + b_ref[...]
    if gelu:
        y = _gelu_f32(y)
    if has_residual:
        y = y + r_ref[...].astype(jnp.float32)
    o_ref[...] = y.astype(o_ref.dtype)


# --------------------- K/N-tiled fallback matmul kernel ---------------------
# Only used when the full weight panel does not fit the VMEM budget.

def _mm_tiled_kernel(*refs, gelu, has_residual):
    if has_residual:
        x_ref, w_ref, b_ref, r_ref, o_ref, acc_ref = refs
    else:
        x_ref, w_ref, b_ref, o_ref, acc_ref = refs
        r_ref = None
    k = pl.program_id(2)

    @pl.when(k == 0)
    def _init():
        acc_ref[...] = jnp.broadcast_to(b_ref[...], acc_ref.shape)

    acc_ref[...] += jnp.dot(x_ref[...].astype(jnp.bfloat16),
                            w_ref[...].astype(jnp.bfloat16),
                            preferred_element_type=jnp.float32)

    @pl.when(k == pl.num_programs(2) - 1)
    def _finalize():
        y = acc_ref[...]
        if gelu:
            y = _gelu_f32(y)
        if has_residual:
            y = y + r_ref[...].astype(jnp.float32)
        o_ref[...] = y.astype(o_ref.dtype)


def pallas_matmul(x, w, b, *, residual=None, gelu=False,
                  out_dtype=jnp.float32, tm=256):
    """y = x @ w + b [+ gelu] [+ residual].  x: [M,K], w: [K,N] (bf16), b: [.,N]."""
    M, K = x.shape
    N = w.shape[1]
    b2 = b.reshape(1, N)
    xb, wb, ob = _itemsize(x), _itemsize(w), jnp.dtype(out_dtype).itemsize
    rb = _itemsize(residual) if residual is not None else 0

    def fits(bm):
        est = (2 * bm * K * xb + 2 * K * N * wb + 2 * bm * N * ob + 2 * N * 4)
        if residual is not None:
            est += 2 * bm * N * rb
        return est <= _VMEM_BUDGET

    bm = _choose_bm(M, tm, fits)
    if bm is not None:
        # Weight-resident path (the common one for ViT-sized layers).
        in_specs = [
            pl.BlockSpec((bm, K), lambda i: (i, 0)),
            pl.BlockSpec((K, N), lambda i: (0, 0)),
            pl.BlockSpec((1, N), lambda i: (0, 0)),
        ]
        inputs = [x, w, b2]
        if residual is not None:
            in_specs.append(pl.BlockSpec((bm, N), lambda i: (i, 0)))
            inputs.append(residual)
        return pl.pallas_call(
            functools.partial(_mm_resident_kernel, gelu=gelu,
                              has_residual=residual is not None),
            grid=(M // bm,),
            out_shape=jax.ShapeDtypeStruct((M, N), out_dtype),
            in_specs=in_specs,
            out_specs=pl.BlockSpec((bm, N), lambda i: (i, 0)),
            compiler_params=pltpu.CompilerParams(
                dimension_semantics=("parallel",),
                vmem_limit_bytes=_VMEM_LIMIT),
        )(*inputs)

    # Fallback: K/N tiled with a VMEM f32 accumulator.
    bm = _pick_block(M, tm, 16)
    bn = _pick_block(N, 512, 128)
    bk = _pick_block(K, 512, 128)
    in_specs = [
        pl.BlockSpec((bm, bk), lambda i, j, k: (i, k)),
        pl.BlockSpec((bk, bn), lambda i, j, k: (k, j)),
        pl.BlockSpec((1, bn), lambda i, j, k: (0, j)),
    ]
    inputs = [x, w, b2]
    if residual is not None:
        in_specs.append(pl.BlockSpec((bm, bn), lambda i, j, k: (i, j)))
        inputs.append(residual)
    return pl.pallas_call(
        functools.partial(_mm_tiled_kernel, gelu=gelu,
                          has_residual=residual is not None),
        grid=(M // bm, N // bn, K // bk),
        out_shape=jax.ShapeDtypeStruct((M, N), out_dtype),
        in_specs=in_specs,
        out_specs=pl.BlockSpec((bm, bn), lambda i, j, k: (i, j)),
        scratch_shapes=[pltpu.VMEM((bm, bn), jnp.float32)],
        compiler_params=pltpu.CompilerParams(
            dimension_semantics=("parallel", "parallel", "arbitrary"),
            vmem_limit_bytes=_VMEM_LIMIT),
    )(*inputs)


# ----------------------- LayerNorm + matmul fused kernel --------------------
# LN needs the full row, and the weight panel is VMEM-resident, so the grid is
# 1-D over row blocks and the LN stats / normalize / bf16 cast happen exactly
# once per row block.  LN stats in f32, MXU inputs bf16, f32 accumulate.

def _ln_matmul_kernel(x_ref, g_ref, bt_ref, w_ref, b_ref, o_ref, *, eps, gelu):
    x = x_ref[...].astype(jnp.float32)
    mu = jnp.mean(x, axis=-1, keepdims=True)
    var = jnp.mean(jnp.square(x - mu), axis=-1, keepdims=True)
    xn = (x - mu) * jax.lax.rsqrt(var + eps) * g_ref[...] + bt_ref[...]
    y = jnp.dot(xn.astype(jnp.bfloat16), w_ref[...].astype(jnp.bfloat16),
                preferred_element_type=jnp.float32) + b_ref[...]
    if gelu:
        y = _gelu_f32(y)
    o_ref[...] = y.astype(o_ref.dtype)


def pallas_ln_matmul(x, gamma, beta, w, b, *, eps=1e-6, gelu=False,
                     out_dtype=jnp.float32, tm=256):
    """y = LayerNorm(x) @ w + b [+ gelu].  x: [M,K], w: [K,N] (bf16)."""
    M, K = x.shape
    N = w.shape[1]
    xb, wb, ob = _itemsize(x), _itemsize(w), jnp.dtype(out_dtype).itemsize

    def fits(bm):
        return (2 * bm * K * xb + 2 * K * N * wb + 2 * bm * N * ob
                + 4 * K * 4 + 2 * N * 4 + bm * K * 4) <= _VMEM_BUDGET

    bm = _choose_bm(M, tm, fits)
    if bm is None:
        # TODO(synk): add an N-tiled variant (normalized-x VMEM scratch, computed
        # once under pl.when(j == 0)) for weight panels larger than VMEM.
        bm = _pick_block(M, 64, 16)
    return pl.pallas_call(
        functools.partial(_ln_matmul_kernel, eps=eps, gelu=gelu),
        grid=(M // bm,),
        out_shape=jax.ShapeDtypeStruct((M, N), out_dtype),
        in_specs=[
            pl.BlockSpec((bm, K), lambda i: (i, 0)),
            pl.BlockSpec((1, K), lambda i: (0, 0)),
            pl.BlockSpec((1, K), lambda i: (0, 0)),
            pl.BlockSpec((K, N), lambda i: (0, 0)),
            pl.BlockSpec((1, N), lambda i: (0, 0)),
        ],
        out_specs=pl.BlockSpec((bm, N), lambda i: (i, 0)),
        compiler_params=pltpu.CompilerParams(
            dimension_semantics=("parallel",),
            vmem_limit_bytes=_VMEM_LIMIT),
    )(x, gamma.reshape(1, K), beta.reshape(1, K), w, b.reshape(1, N))


# ------------------------------- attention ----------------------------------
# One grid step per Bb batch elements; all heads handled inside the step.
# q/k/v are sliced directly out of the [Bb, T, 3D] qkv block (no XLA transpose);
# softmax scale is folded into q; per-head results are written straight into the
# output block so only one head's intermediates are live at a time, and the HBM
# writeback is a single lane-dense (Bb, T, D) slab.

def _attention_kernel(qkv_ref, o_ref, *, num_heads, scale):
    _, _, D3 = qkv_ref.shape
    D = D3 // 3
    dh = D // num_heads
    qkv = qkv_ref[...]                                   # (Bb, T, 3D) bf16
    # TODO(synk): reorder qkv_w columns at init so every head slice starts at a
    # 128-lane-aligned offset (dh=64 heads currently need lane extraction).
    for h in range(num_heads):                           # static unroll over heads
        q = (qkv[:, :, h * dh:(h + 1) * dh].astype(jnp.float32)
             * scale).astype(jnp.bfloat16)
        k = qkv[:, :, D + h * dh: D + (h + 1) * dh]
        v = qkv[:, :, 2 * D + h * dh: 2 * D + (h + 1) * dh]
        s = jnp.einsum('bqd,bkd->bqk', q, k,
                       preferred_element_type=jnp.float32)        # (Bb, T, T) f32
        m = jnp.max(s, axis=-1, keepdims=True)
        p = jnp.exp(s - m)                                         # f32 softmax
        denom = jnp.sum(p, axis=-1, keepdims=True)
        acc = jnp.einsum('bqk,bkd->bqd', p.astype(jnp.bfloat16), v,
                         preferred_element_type=jnp.float32)       # (Bb, T, dh)
        o_ref[:, :, h * dh:(h + 1) * dh] = (
            acc * pl.reciprocal(denom, approx=True)).astype(o_ref.dtype)
    # TODO(synk): flash-style tiling over T for long sequences (full T in VMEM here).


def pallas_attention(qkv, *, num_heads, scale):
    """qkv: [B, T, 3D] laid out (q | k | v) with heads contiguous per section."""
    B, T, D3 = qkv.shape
    D = D3 // 3
    Bb = next(d for d in (4, 3, 2, 1) if B % d == 0)     # a few batch elems per step
    return pl.pallas_call(
        functools.partial(_attention_kernel, num_heads=num_heads, scale=scale),
        grid=(B // Bb,),
        out_shape=jax.ShapeDtypeStruct((B, T, D), jnp.bfloat16),
        in_specs=[pl.BlockSpec((Bb, T, D3), lambda b: (b, 0, 0))],
        out_specs=pl.BlockSpec((Bb, T, D), lambda b: (b, 0, 0)),
        compiler_params=pltpu.CompilerParams(
            dimension_semantics=("parallel",),
            vmem_limit_bytes=_VMEM_LIMIT),
    )(qkv)


# ------------------------ parameter initialization -------------------------

def init_vitc_params(key, *, img_size, patch, in_ch, embed_dim, depth,
                     num_heads, mlp_ratio, num_classes):
    D = embed_dim
    hidden = int(D * mlp_ratio)
    n_patches = (img_size // patch) ** 2
    patch_dim = in_ch * patch * patch
    nc_pad = ((num_classes + 127) // 128) * 128

    def nrm(k, shape, scale=0.02):
        return scale * jax.random.normal(k, shape, dtype=jnp.float32)

    keys = jax.random.split(key, 4 + depth)
    head_w = nrm(keys[3], (D, num_classes))
    head_b = jnp.zeros((num_classes,), jnp.float32)
    # Weights are pre-cast to bf16 ONCE here (MXU inputs); biases / LN params /
    # cls / pos stay f32.  Head weight/bias padded to a lane-dense 128 multiple.
    params = {
        "patch_w": nrm(keys[0], (patch_dim, D)).astype(jnp.bfloat16),
        "patch_b": jnp.zeros((1, D), jnp.float32),
        "cls_token": nrm(keys[1], (1, 1, D)),
        "pos_embed": nrm(keys[2], (1, n_patches + 1, D)),
        "ln_g": jnp.ones((1, D), jnp.float32),
        "ln_b": jnp.zeros((1, D), jnp.float32),
        "head_w": jnp.pad(head_w, ((0, 0), (0, nc_pad - num_classes))
                          ).astype(jnp.bfloat16),
        "head_b": jnp.pad(head_b, ((0, nc_pad - num_classes),)).reshape(1, nc_pad),
        "blocks": [],
    }
    for li in range(depth):
        bk = jax.random.split(keys[4 + li], 4)
        params["blocks"].append({
            "ln1_g": jnp.ones((1, D), jnp.float32),
            "ln1_b": jnp.zeros((1, D), jnp.float32),
            "qkv_w": nrm(bk[0], (D, 3 * D)).astype(jnp.bfloat16),
            "qkv_b": jnp.zeros((1, 3 * D), jnp.float32),
            "proj_w": nrm(bk[1], (D, D)).astype(jnp.bfloat16),
            "proj_b": jnp.zeros((1, D), jnp.float32),
            "ln2_g": jnp.ones((1, D), jnp.float32),
            "ln2_b": jnp.zeros((1, D), jnp.float32),
            "fc1_w": nrm(bk[2], (D, hidden)).astype(jnp.bfloat16),
            "fc1_b": jnp.zeros((1, hidden), jnp.float32),
            "fc2_w": nrm(bk[3], (hidden, D)).astype(jnp.bfloat16),
            "fc2_b": jnp.zeros((1, D), jnp.float32),
        })
    return params


# -------------------------------- forward ----------------------------------

def vitc_forward(params, x, *, patch, embed_dim, num_heads, num_classes,
                 ln_eps=1e-6):
    """VITC.forward: tokens = vit_model(x); logits = head(tokens[:, 0])."""
    B, C, H, W = x.shape
    D = embed_dim
    nh = num_heads
    dh = D // nh
    p = patch

    # --- patch embedding (Conv2d(k=s=patch) as patch-extraction + matmul) ---
    xp = x.reshape(B, C, H // p, p, W // p, p)
    xp = xp.transpose(0, 2, 4, 1, 3, 5).reshape(B * (H // p) * (W // p), C * p * p)
    nP = (H // p) * (W // p)
    tok = pallas_matmul(xp, params["patch_w"], params["patch_b"]).reshape(B, nP, D)

    # --- cls token + positional embedding (f32 residual stream) ---
    cls = jnp.broadcast_to(params["cls_token"], (B, 1, D))
    tok = jnp.concatenate([cls, tok], axis=1) + params["pos_embed"]
    T = nP + 1
    M = B * T
    scale = 1.0 / math.sqrt(dh)

    # --- transformer blocks ---
    for blk in params["blocks"]:
        # attention sub-block: LN1 fused into QKV projection, residual fused into proj.
        resid = tok.reshape(M, D)
        qkv = pallas_ln_matmul(resid, blk["ln1_g"], blk["ln1_b"],
                               blk["qkv_w"], blk["qkv_b"],
                               eps=ln_eps, out_dtype=jnp.bfloat16)        # [M, 3D]
        attn = pallas_attention(qkv.reshape(B, T, 3 * D),
                                num_heads=nh, scale=scale)                # [B, T, D] bf16
        tok = pallas_matmul(attn.reshape(M, D), blk["proj_w"], blk["proj_b"],
                            residual=resid).reshape(B, T, D)              # f32

        # MLP sub-block: LN2 fused into FC1(+GELU), residual fused into FC2.
        resid = tok.reshape(M, D)
        h = pallas_ln_matmul(resid, blk["ln2_g"], blk["ln2_b"],
                             blk["fc1_w"], blk["fc1_b"],
                             eps=ln_eps, gelu=True, out_dtype=jnp.bfloat16)
        tok = pallas_matmul(h, blk["fc2_w"], blk["fc2_b"],
                            residual=resid).reshape(B, T, D)

    # --- final LN on CLS rows only + classification head (padded at init) ---
    cls_tok = tok[:, 0]                                                   # [B, D]
    logits = pallas_ln_matmul(cls_tok, params["ln_g"], params["ln_b"],
                              params["head_w"], params["head_b"], eps=ln_eps)
    return logits[:, :num_classes]


# --------------------------------- main -------------------------------------

if __name__ == "__main__":
    cfg = dict(img_size=16, patch=4, in_ch=3, embed_dim=32, depth=2,
               num_heads=4, mlp_ratio=4.0, num_classes=10)

    root = jax.random.PRNGKey(0)
    k_params, k_x = jax.random.split(root)
    params = init_vitc_params(k_params, **cfg)

    x = jax.random.normal(k_x, (2, cfg["in_ch"], cfg["img_size"], cfg["img_size"]),
                          dtype=jnp.float32)

    fwd = jax.jit(functools.partial(vitc_forward,
                                    patch=cfg["patch"],
                                    embed_dim=cfg["embed_dim"],
                                    num_heads=cfg["num_heads"],
                                    num_classes=cfg["num_classes"]))
    logits = fwd(params, x)
    jax.block_until_ready(logits)
    assert logits.shape == (2, cfg["num_classes"])
    print("KERNEL_OK")
</pallas_src>

<mosaic_0001>
module attributes {stable_mosaic.version = 11 : i64} {
  func.func @_ln_matmul_kernel(%arg0: i32, %arg1: memref<34x32xf32, #tpu.memory_space<vmem>>, %arg2: memref<1x32xf32, #tpu.memory_space<vmem>>, %arg3: memref<1x32xf32, #tpu.memory_space<vmem>>, %arg4: memref<32x96xbf16, #tpu.memory_space<vmem>>, %arg5: memref<1x96xf32, #tpu.memory_space<vmem>>, %arg6: memref<34x96xbf16, #tpu.memory_space<vmem>>) attributes {dimension_semantics = [#tpu.dimension_semantics<parallel>], iteration_bounds = array<i64: 1>, scalar_prefetch = 0 : i64, scratch_operands = 0 : i64, tpu.core_type = #tpu.core_type<tc>, window_params = [{transform_indices = @transform_0, window_bounds = array<i64: 34, 32>}, {pipeline_mode = #tpu.pipeline_mode<synchronous>, transform_indices = @transform_1, window_bounds = array<i64: 1, 32>}, {pipeline_mode = #tpu.pipeline_mode<synchronous>, transform_indices = @transform_2, window_bounds = array<i64: 1, 32>}, {pipeline_mode = #tpu.pipeline_mode<synchronous>, transform_indices = @transform_3, window_bounds = array<i64: 32, 96>}, {pipeline_mode = #tpu.pipeline_mode<synchronous>, transform_indices = @transform_4, window_bounds = array<i64: 1, 96>}, {transform_indices = @transform_5, window_bounds = array<i64: 34, 96>}]} {
    %c0 = arith.constant 0 : index
    %c0_0 = arith.constant 0 : index
    %0 = vector.load %arg1[%c0, %c0_0] : memref<34x32xf32, #tpu.memory_space<vmem>>, vector<34x32xf32>
    %cst = arith.constant dense<0.000000e+00> : vector<34xf32>
    %1 = vector.multi_reduction <add>, %0, %cst [1] : vector<34x32xf32> to vector<34xf32>
    %2 = vector.shape_cast %1 : vector<34xf32> to vector<34x1xf32>
    %cst_1 = arith.constant 3.200000e+01 : f32
    %3 = vector.broadcast %cst_1 : f32 to vector<34x1xf32>
    %4 = arith.divf %2, %3 : vector<34x1xf32>
    %5 = vector.broadcast %4 : vector<34x1xf32> to vector<34x32xf32>
    %6 = arith.subf %0, %5 : vector<34x32xf32>
    %7 = arith.mulf %6, %6 : vector<34x32xf32>
    %cst_2 = arith.constant dense<0.000000e+00> : vector<34xf32>
    %8 = vector.multi_reduction <add>, %7, %cst_2 [1] : vector<34x32xf32> to vector<34xf32>
    %9 = vector.shape_cast %8 : vector<34xf32> to vector<34x1xf32>
    %cst_3 = arith.constant 3.200000e+01 : f32
    %10 = vector.broadcast %cst_3 : f32 to vector<34x1xf32>
    %11 = arith.divf %9, %10 : vector<34x1xf32>
    %12 = vector.broadcast %4 : vector<34x1xf32> to vector<34x32xf32>
    %13 = arith.subf %0, %12 : vector<34x32xf32>
    %cst_4 = arith.constant 9.99999997E-7 : f32
    %14 = vector.broadcast %cst_4 : f32 to vector<34x1xf32>
    %15 = arith.addf %11, %14 : vector<34x1xf32>
    %16 = math.rsqrt %15 : vector<34x1xf32>
    %17 = vector.broadcast %16 : vector<34x1xf32> to vector<34x32xf32>
    %18 = arith.mulf %13, %17 : vector<34x32xf32>
    %c0_5 = arith.constant 0 : index
    %c0_6 = arith.constant 0 : index
    %19 = vector.load %arg2[%c0_5, %c0_6] : memref<1x32xf32, #tpu.memory_space<vmem>>, vector<1x32xf32>
    %20 = vector.broadcast %19 : vector<1x32xf32> to vector<34x32xf32>
    %21 = arith.mulf %18, %20 : vector<34x32xf32>
    %c0_7 = arith.constant 0 : index
    %c0_8 = arith.constant 0 : index
    %22 = vector.load %arg3[%c0_7, %c0_8] : memref<1x32xf32, #tpu.memory_space<vmem>>, vector<1x32xf32>
    %23 = vector.broadcast %22 : vector<1x32xf32> to vector<34x32xf32>
    %24 = arith.addf %21, %23 : vector<34x32xf32>
    %25 = arith.truncf %24 : vector<34x32xf32> to vector<34x32xbf16>
    %c0_9 = arith.constant 0 : index
    %c0_10 = arith.constant 0 : index
    %26 = vector.load %arg4[%c0_9, %c0_10] : memref<32x96xbf16, #tpu.memory_space<vmem>>, vector<32x96xbf16>
    %cst_11 = arith.constant dense<0.000000e+00> : vector<34x96xf32>
    %27 = tpu.matmul %25, %26, %cst_11 {dimension_numbers = #tpu.dot_dimension_numbers<[1], [0], [0], [1], [0, 0, 1, 1], [], []>} : vector<34x32xbf16>, vector<32x96xbf16>, vector<34x96xf32> -> vector<34x96xf32>
    %c0_12 = arith.constant 0 : index
    %c0_13 = arith.constant 0 : index
    %28 = vector.load %arg5[%c0_12, %c0_13] : memref<1x96xf32, #tpu.memory_space<vmem>>, vector<1x96xf32>
    %29 = vector.broadcast %28 : vector<1x96xf32> to vector<34x96xf32>
    %30 = arith.addf %27, %29 : vector<34x96xf32>
    %31 = arith.truncf %30 : vector<34x96xf32> to vector<34x96xbf16>
    %c0_14 = arith.constant 0 : index
    %c0_15 = arith.constant 0 : index
    %32 = vector.load %arg6[%c0_14, %c0_15] : memref<34x96xbf16, #tpu.memory_space<vmem>>, vector<34x96xbf16>
    tpu.vector_store %arg6[%c0_14, %c0_15], %31 {strides = array<i32>} : memref<34x96xbf16, #tpu.memory_space<vmem>>, vector<34x96xbf16>,
    return
  }
  func.func @transform_0(%arg0: i32) -> (i32, i32) {
    %c0_i32 = arith.constant 0 : i32
    %c0_i32_0 = arith.constant 0 : i32
    return %arg0, %c0_i32 : i32, i32
  }
  func.func @transform_1(%arg0: i32) -> (i32, i32) {
    %c0_i32 = arith.constant 0 : i32
    %c0_i32_0 = arith.constant 0 : i32
    %c0_i32_1 = arith.constant 0 : i32
    return %c0_i32, %c0_i32_0 : i32, i32
  }
  func.func @transform_2(%arg0: i32) -> (i32, i32) {
    %c0_i32 = arith.constant 0 : i32
    %c0_i32_0 = arith.constant 0 : i32
    %c0_i32_1 = arith.constant 0 : i32
    return %c0_i32, %c0_i32_0 : i32, i32
  }
  func.func @transform_3(%arg0: i32) -> (i32, i32) {
    %c0_i32 = arith.constant 0 : i32
    %c0_i32_0 = arith.constant 0 : i32
    %c0_i32_1 = arith.constant 0 : i32
    return %c0_i32, %c0_i32_0 : i32, i32
  }
  func.func @transform_4(%arg0: i32) -> (i32, i32) {
    %c0_i32 = arith.constant 0 : i32
    %c0_i32_0 = arith.constant 0 : i32
    %c0_i32_1 = arith.constant 0 : i32
    return %c0_i32, %c0_i32_0 : i32, i32
  }
  func.func @transform_5(%arg0: i32) -> (i32, i32) {
    %c0_i32 = arith.constant 0 : i32
    %c0_i32_0 = arith.constant 0 : i32
    return %arg0, %c0_i32 : i32, i32
  }
}

module attributes {stable_mosaic.version = 11 : i64} {
  func.func @_mm_resident_kernel(%arg0: i32, %arg1: memref<32x48xf32, #tpu.memory_space<vmem>>, %arg2: memref<48x32xbf16, #tpu.memory_space<vmem>>, %arg3: memref<1x32xf32, #tpu.memory_space<vmem>>, %arg4: memref<32x32xf32, #tpu.memory_space<vmem>>) attributes {dimension_semantics = [#tpu.dimension_semantics<parallel>], iteration_bounds = array<i64: 1>, scalar_prefetch = 0 : i64, scratch_operands = 0 : i64, tpu.core_type = #tpu.core_type<tc>, window_params = [{transform_indices = @transform_0, window_bounds = array<i64: 32, 48>}, {pipeline_mode = #tpu.pipeline_mode<synchronous>, transform_indices = @transform_1, window_bounds = array<i64: 48, 32>}, {pipeline_mode = #tpu.pipeline_mode<synchronous>, transform_indices = @transform_2, window_bounds = array<i64: 1, 32>}, {transform_indices = @transform_3, window_bounds = array<i64: 32, 32>}]} {
    %c0 = arith.constant 0 : index
    %c0_0 = arith.constant 0 : index
    %0 = vector.load %arg1[%c0, %c0_0] : memref<32x48xf32, #tpu.memory_space<vmem>>, vector<32x48xf32>
    %1 = arith.truncf %0 : vector<32x48xf32> to vector<32x48xbf16>
    %c0_1 = arith.constant 0 : index
    %c0_2 = arith.constant 0 : index
    %2 = vector.load %arg2[%c0_1, %c0_2] : memref<48x32xbf16, #tpu.memory_space<vmem>>, vector<48x32xbf16>
    %cst = arith.constant dense<0.000000e+00> : vector<32x32xf32>
    %3 = tpu.matmul %1, %2, %cst {dimension_numbers = #tpu.dot_dimension_numbers<[1], [0], [0], [1], [0, 0, 1, 1], [], []>} : vector<32x48xbf16>, vector<48x32xbf16>, vector<32x32xf32> -> vector<32x32xf32>
    %c0_3 = arith.constant 0 : index
    %c0_4 = arith.constant 0 : index
    %4 = vector.load %arg3[%c0_3, %c0_4] : memref<1x32xf32, #tpu.memory_space<vmem>>, vector<1x32xf32>
    %5 = vector.broadcast %4 : vector<1x32xf32> to vector<32x32xf32>
    %6 = arith.addf %3, %5 : vector<32x32xf32>
    %c0_5 = arith.constant 0 : index
    %c0_6 = arith.constant 0 : index
    %7 = vector.load %arg4[%c0_5, %c0_6] : memref<32x32xf32, #tpu.memory_space<vmem>>, vector<32x32xf32>
    tpu.vector_store %arg4[%c0_5, %c0_6], %6 {strides = array<i32>} : memref<32x32xf32, #tpu.memory_space<vmem>>, vector<32x32xf32>,
    return
  }
  func.func @transform_0(%arg0: i32) -> (i32, i32) {
    %c0_i32 = arith.constant 0 : i32
    %c0_i32_0 = arith.constant 0 : i32
    return %arg0, %c0_i32 : i32, i32
  }
  func.func @transform_1(%arg0: i32) -> (i32, i32) {
    %c0_i32 = arith.constant 0 : i32
    %c0_i32_0 = arith.constant 0 : i32
    %c0_i32_1 = arith.constant 0 : i32
    return %c0_i32, %c0_i32_0 : i32, i32
  }
  func.func @transform_2(%arg0: i32) -> (i32, i32) {
    %c0_i32 = arith.constant 0 : i32
    %c0_i32_0 = arith.constant 0 : i32
    %c0_i32_1 = arith.constant 0 : i32
    return %c0_i32, %c0_i32_0 : i32, i32
  }
  func.func @transform_3(%arg0: i32) -> (i32, i32) {
    %c0_i32 = arith.constant 0 : i32
    %c0_i32_0 = arith.constant 0 : i32
    return %arg0, %c0_i32 : i32, i32
  }
}

module attributes {stable_mosaic.version = 11 : i64} {
  func.func @_mm_resident_kernel(%arg0: i32, %arg1: memref<34x32xbf16, #tpu.memory_space<vmem>>, %arg2: memref<32x32xbf16, #tpu.memory_space<vmem>>, %arg3: memref<1x32xf32, #tpu.memory_space<vmem>>, %arg4: memref<34x32xf32, #tpu.memory_space<vmem>>, %arg5: memref<34x32xf32, #tpu.memory_space<vmem>>) attributes {dimension_semantics = [#tpu.dimension_semantics<parallel>], iteration_bounds = array<i64: 1>, scalar_prefetch = 0 : i64, scratch_operands = 0 : i64, tpu.core_type = #tpu.core_type<tc>, window_params = [{transform_indices = @transform_0, window_bounds = array<i64: 34, 32>}, {pipeline_mode = #tpu.pipeline_mode<synchronous>, transform_indices = @transform_1, window_bounds = array<i64: 32, 32>}, {pipeline_mode = #tpu.pipeline_mode<synchronous>, transform_indices = @transform_2, window_bounds = array<i64: 1, 32>}, {transform_indices = @transform_3, window_bounds = array<i64: 34, 32>}, {transform_indices = @transform_4, window_bounds = array<i64: 34, 32>}]} {
    %c0 = arith.constant 0 : index
    %c0_0 = arith.constant 0 : index
    %0 = vector.load %arg1[%c0, %c0_0] : memref<34x32xbf16, #tpu.memory_space<vmem>>, vector<34x32xbf16>
    %c0_1 = arith.constant 0 : index
    %c0_2 = arith.constant 0 : index
    %1 = vector.load %arg2[%c0_1, %c0_2] : memref<32x32xbf16, #tpu.memory_space<vmem>>, vector<32x32xbf16>
    %cst = arith.constant dense<0.000000e+00> : vector<34x32xf32>
    %2 = tpu.matmul %0, %1, %cst {dimension_numbers = #tpu.dot_dimension_numbers<[1], [0], [0], [1], [0, 0, 1, 1], [], []>} : vector<34x32xbf16>, vector<32x32xbf16>, vector<34x32xf32> -> vector<34x32xf32>
    %c0_3 = arith.constant 0 : index
    %c0_4 = arith.constant 0 : index
    %3 = vector.load %arg3[%c0_3, %c0_4] : memref<1x32xf32, #tpu.memory_space<vmem>>, vector<1x32xf32>
    %4 = vector.broadcast %3 : vector<1x32xf32> to vector<34x32xf32>
    %5 = arith.addf %2, %4 : vector<34x32xf32>
    %c0_5 = arith.constant 0 : index
    %c0_6 = arith.constant 0 : index
    %6 = vector.load %arg4[%c0_5, %c0_6] : memref<34x32xf32, #tpu.memory_space<vmem>>, vector<34x32xf32>
    %7 = arith.addf %5, %6 : vector<34x32xf32>
    %c0_7 = arith.constant 0 : index
    %c0_8 = arith.constant 0 : index
    %8 = vector.load %arg5[%c0_7, %c0_8] : memref<34x32xf32, #tpu.memory_space<vmem>>, vector<34x32xf32>
    tpu.vector_store %arg5[%c0_7, %c0_8], %7 {strides = array<i32>} : memref<34x32xf32, #tpu.memory_space<vmem>>, vector<34x32xf32>,
    return
  }
  func.func @transform_0(%arg0: i32) -> (i32, i32) {
    %c0_i32 = arith.constant 0 : i32
    %c0_i32_0 = arith.constant 0 : i32
    return %arg0, %c0_i32 : i32, i32
  }
  func.func @transform_1(%arg0: i32) -> (i32, i32) {
    %c0_i32 = arith.constant 0 : i32
    %c0_i32_0 = arith.constant 0 : i32
    %c0_i32_1 = arith.constant 0 : i32
    return %c0_i32, %c0_i32_0 : i32, i32
  }
  func.func @transform_2(%arg0: i32) -> (i32, i32) {
    %c0_i32 = arith.constant 0 : i32
    %c0_i32_0 = arith.constant 0 : i32
    %c0_i32_1 = arith.constant 0 : i32
    return %c0_i32, %c0_i32_0 : i32, i32
  }
  func.func @transform_3(%arg0: i32) -> (i32, i32) {
    %c0_i32 = arith.constant 0 : i32
    %c0_i32_0 = arith.constant 0 : i32
    return %arg0, %c0_i32 : i32, i32
  }
  func.func @transform_4(%arg0: i32) -> (i32, i32) {
    %c0_i32 = arith.constant 0 : i32
    %c0_i32_0 = arith.constant 0 : i32
    return %arg0, %c0_i32 : i32, i32
  }
}

module attributes {stable_mosaic.version = 11 : i64} {
  func.func @_attention_kernel(%arg0: i32, %arg1: memref<2x17x96xbf16, #tpu.memory_space<vmem>>, %arg2: memref<2x17x32xbf16, #tpu.memory_space<vmem>>) attributes {dimension_semantics = [#tpu.dimension_semantics<parallel>], iteration_bounds = array<i64: 1>, scalar_prefetch = 0 : i64, scratch_operands = 0 : i64, tpu.core_type = #tpu.core_type<tc>, window_params = [{transform_indices = @transform_0, window_bounds = array<i64: 2, 17, 96>}, {transform_indices = @transform_1, window_bounds = array<i64: 2, 17, 32>}]} {
    %c0 = arith.constant 0 : index
    %c0_0 = arith.constant 0 : index
    %c0_1 = arith.constant 0 : index
    %0 = vector.load %arg1[%c0, %c0_0, %c0_1] : memref<2x17x96xbf16, #tpu.memory_space<vmem>>, vector<2x17x96xbf16>
    %1 = vector.extract_strided_slice %0 {offsets = [0, 0, 0], sizes = [2, 17, 8], strides = [1, 1, 1]} : vector<2x17x96xbf16> to vector<2x17x8xbf16>
    %2 = arith.extf %1 : vector<2x17x8xbf16> to vector<2x17x8xf32>
    %cst = arith.constant 0.353553385 : f32
    %3 = vector.broadcast %cst : f32 to vector<2x17x8xf32>
    %4 = arith.mulf %2, %3 : vector<2x17x8xf32>
    %5 = arith.truncf %4 : vector<2x17x8xf32> to vector<2x17x8xbf16>
    %6 = vector.extract_strided_slice %0 {offsets = [0, 0, 32], sizes = [2, 17, 8], strides = [1, 1, 1]} : vector<2x17x96xbf16> to vector<2x17x8xbf16>
    %7 = vector.extract_strided_slice %0 {offsets = [0, 0, 64], sizes = [2, 17, 8], strides = [1, 1, 1]} : vector<2x17x96xbf16> to vector<2x17x8xbf16>
    "tpu.trace_start"() <{level = 10 : i32, message = "bqd,bkd->bqk"}> : () -> ()
    %cst_2 = arith.constant dense<0.000000e+00> : vector<2x17x17xf32>
    %8 = tpu.matmul %5, %6, %cst_2 {dimension_numbers = #tpu.dot_dimension_numbers<[2], [2], [1], [1], [0, 0, 0, 1, 1, 1], [0], [0]>} : vector<2x17x8xbf16>, vector<2x17x8xbf16>, vector<2x17x17xf32> -> vector<2x17x17xf32>
    "tpu.trace_stop"() : () -> ()
    %cst_3 = arith.constant dense<0xFF800000> : vector<2x17xf32>
    %9 = vector.multi_reduction <maximumf>, %8, %cst_3 [2] : vector<2x17x17xf32> to vector<2x17xf32>
    %10 = vector.shape_cast %9 : vector<2x17xf32> to vector<2x17x1xf32>
    %11 = vector.broadcast %10 : vector<2x17x1xf32> to vector<2x17x17xf32>
    %12 = arith.subf %8, %11 : vector<2x17x17xf32>
    %13 = math.exp %12 : vector<2x17x17xf32>
    %cst_4 = arith.constant dense<0.000000e+00> : vector<2x17xf32>
    %14 = vector.multi_reduction <add>, %13, %cst_4 [2] : vector<2x17x17xf32> to vector<2x17xf32>
    %15 = vector.shape_cast %14 : vector<2x17xf32> to vector<2x17x1xf32>
    %16 = arith.truncf %13 : vector<2x17x17xf32> to vector<2x17x17xbf16>
    "tpu.trace_start"() <{level = 10 : i32, message = "bqk,bkd->bqd"}> : () -> ()
    %cst_5 = arith.constant dense<0.000000e+00> : vector<2x17x8xf32>
    %17 = tpu.matmul %16, %7, %cst_5 {dimension_numbers = #tpu.dot_dimension_numbers<[2], [1], [1], [2], [0, 0, 0, 1, 1, 2], [0], [0]>} : vector<2x17x17xbf16>, vector<2x17x8xbf16>, vector<2x17x8xf32> -> vector<2x17x8xf32>
    "tpu.trace_stop"() : () -> ()
    %18 = tpu.reciprocal %15 {approx = true} : vector<2x17x1xf32> -> vector<2x17x1xf32>
    %19 = vector.broadcast %18 : vector<2x17x1xf32> to vector<2x17x8xf32>
    %20 = arith.mulf %17, %19 : vector<2x17x8xf32>
    %21 = arith.truncf %20 : vector<2x17x8xf32> to vector<2x17x8xbf16>
    %c0_6 = arith.constant 0 : index
    %c0_7 = arith.constant 0 : index
    %c0_8 = arith.constant 0 : index
    %22 = vector.load %arg2[%c0_6, %c0_7, %c0_8] : memref<2x17x32xbf16, #tpu.memory_space<vmem>>, vector<2x17x8xbf16>
    tpu.vector_store %arg2[%c0_6, %c0_7, %c0_8], %21 {strides = array<i32>} : memref<2x17x32xbf16, #tpu.memory_space<vmem>>, vector<2x17x8xbf16>,
    %23 = vector.extract_strided_slice %0 {offsets = [0, 0, 8], sizes = [2, 17, 8], strides = [1, 1, 1]} : vector<2x17x96xbf16> to vector<2x17x8xbf16>
    %24 = arith.extf %23 : vector<2x17x8xbf16> to vector<2x17x8xf32>
    %cst_9 = arith.constant 0.353553385 : f32
    %25 = vector.broadcast %cst_9 : f32 to vector<2x17x8xf32>
    %26 = arith.mulf %24, %25 : vector<2x17x8xf32>
    %27 = arith.truncf %26 : vector<2x17x8xf32> to vector<2x17x8xbf16>
    %28 = vector.extract_strided_slice %0 {offsets = [0, 0, 40], sizes = [2, 17, 8], strides = [1, 1, 1]} : vector<2x17x96xbf16> to vector<2x17x8xbf16>
    %29 = vector.extract_strided_slice %0 {offsets = [0, 0, 72], sizes = [2, 17, 8], strides = [1, 1, 1]} : vector<2x17x96xbf16> to vector<2x17x8xbf16>
    "tpu.trace_start"() <{level = 10 : i32, message = "bqd,bkd->bqk"}> : () -> ()
    %cst_10 = arith.constant dense<0.000000e+00> : vector<2x17x17xf32>
    %30 = tpu.matmul %27, %28, %cst_10 {dimension_numbers = #tpu.dot_dimension_numbers<[2], [2], [1], [1], [0, 0, 0, 1, 1, 1], [0], [0]>} : vector<2x17x8xbf16>, vector<2x17x8xbf16>, vector<2x17x17xf32> -> vector<2x17x17xf32>
    "tpu.trace_stop"() : () -> ()
    %cst_11 = arith.constant dense<0xFF800000> : vector<2x17xf32>
    %31 = vector.multi_reduction <maximumf>, %30, %cst_11 [2] : vector<2x17x17xf32> to vector<2x17xf32>
    %32 = vector.shape_cast %31 : vector<2x17xf32> to vector<2x17x1xf32>
    %33 = vector.broadcast %32 : vector<2x17x1xf32> to vector<2x17x17xf32>
    %34 = arith.subf %30, %33 : vector<2x17x17xf32>
    %35 = math.exp %34 : vector<2x17x17xf32>
    %cst_12 = arith.constant dense<0.000000e+00> : vector<2x17xf32>
    %36 = vector.multi_reduction <add>, %35, %cst_12 [2] : vector<2x17x17xf32> to vector<2x17xf32>
    %37 = vector.shape_cast %36 : vector<2x17xf32> to vector<2x17x1xf32>
    %38 = arith.truncf %35 : vector<2x17x17xf32> to vector<2x17x17xbf16>
    "tpu.trace_start"() <{level = 10 : i32, message = "bqk,bkd->bqd"}> : () -> ()
    %cst_13 = arith.constant dense<0.000000e+00> : vector<2x17x8xf32>
    %39 = tpu.matmul %38, %29, %cst_13 {dimension_numbers = #tpu.dot_dimension_numbers<[2], [1], [1], [2], [0, 0, 0, 1, 1, 2], [0], [0]>} : vector<2x17x17xbf16>, vector<2x17x8xbf16>, vector<2x17x8xf32> -> vector<2x17x8xf32>
    "tpu.trace_stop"() : () -> ()
    %40 = tpu.reciprocal %37 {approx = true} : vector<2x17x1xf32> -> vector<2x17x1xf32>
    %41 = vector.broadcast %40 : vector<2x17x1xf32> to vector<2x17x8xf32>
    %42 = arith.mulf %39, %41 : vector<2x17x8xf32>
    %43 = arith.truncf %42 : vector<2x17x8xf32> to vector<2x17x8xbf16>
    %c0_14 = arith.constant 0 : index
    %c0_15 = arith.constant 0 : index
    %c8 = arith.constant 8 : index
    %44 = vector.load %arg2[%c0_14, %c0_15, %c8] : memref<2x17x32xbf16, #tpu.memory_space<vmem>>, vector<2x17x8xbf16>
    tpu.vector_store %arg2[%c0_14, %c0_15, %c8], %43 {strides = array<i32>} : memref<2x17x32xbf16, #tpu.memory_space<vmem>>, vector<2x17x8xbf16>,
    %45 = vector.extract_strided_slice %0 {offsets = [0, 0, 16], sizes = [2, 17, 8], strides = [1, 1, 1]} : vector<2x17x96xbf16> to vector<2x17x8xbf16>
    %46 = arith.extf %45 : vector<2x17x8xbf16> to vector<2x17x8xf32>
    %cst_16 = arith.constant 0.353553385 : f32
    %47 = vector.broadcast %cst_16 : f32 to vector<2x17x8xf32>
    %48 = arith.mulf %46, %47 : vector<2x17x8xf32>
    %49 = arith.truncf %48 : vector<2x17x8xf32> to vector<2x17x8xbf16>
    %50 = vector.extract_strided_slice %0 {offsets = [0, 0, 48], sizes = [2, 17, 8], strides = [1, 1, 1]} : vector<2x17x96xbf16> to vector<2x17x8xbf16>
    %51 = vector.extract_strided_slice %0 {offsets = [0, 0, 80], sizes = [2, 17, 8], strides = [1, 1, 1]} : vector<2x17x96xbf16> to vector<2x17x8xbf16>
    "tpu.trace_start"() <{level = 10 : i32, message = "bqd,bkd->bqk"}> : () -> ()
    %cst_17 = arith.constant dense<0.000000e+00> : vector<2x17x17xf32>
    %52 = tpu.matmul %49, %50, %cst_17 {dimension_numbers = #tpu.dot_dimension_numbers<[2], [2], [1], [1], [0, 0, 0, 1, 1, 1], [0], [0]>} : vector<2x17x8xbf16>, vector<2x17x8xbf16>, vector<2x17x17xf32> -> vector<2x17x17xf32>
    "tpu.trace_stop"() : () -> ()
    %cst_18 = arith.constant dense<0xFF800000> : vector<2x17xf32>
    %53 = vector.multi_reduction <maximumf>, %52, %cst_18 [2] : vector<2x17x17xf32> to vector<2x17xf32>
    %54 = vector.shape_cast %53 : vector<2x17xf32> to vector<2x17x1xf32>
    %55 = vector.broadcast %54 : vector<2x17x1xf32> to vector<2x17x17xf32>
    %56 = arith.subf %52, %55 : vector<2x17x17xf32>
    %57 = math.exp %56 : vector<2x17x17xf32>
    %cst_19 = arith.constant dense<0.000000e+00> : vector<2x17xf32>
    %58 = vector.multi_reduction <add>, %57, %cst_19 [2] : vector<2x17x17xf32> to vector<2x17xf32>
    %59 = vector.shape_cast %58 : vector<2x17xf32> to vector<2x17x1xf32>
    %60 = arith.truncf %57 : vector<2x17x17xf32> to vector<2x17x17xbf16>
    "tpu.trace_start"() <{level = 10 : i32, message = "bqk,bkd->bqd"}> : () -> ()
    %cst_20 = arith.constant dense<0.000000e+00> : vector<2x17x8xf32>
    %61 = tpu.matmul %60, %51, %cst_20 {dimension_numbers = #tpu.dot_dimension_numbers<[2], [1], [1], [2], [0, 0, 0, 1, 1, 2], [0], [0]>} : vector<2x17x17xbf16>, vector<2x17x8xbf16>, vector<2x17x8xf32> -> vector<2x17x8xf32>
    "tpu.trace_stop"() : () -> ()
    %62 = tpu.reciprocal %59 {approx = true} : vector<2x17x1xf32> -> vector<2x17x1xf32>
    %63 = vector.broadcast %62 : vector<2x17x1xf32> to vector<2x17x8xf32>
    %64 = arith.mulf %61, %63 : vector<2x17x8xf32>
    %65 = arith.truncf %64 : vector<2x17x8xf32> to vector<2x17x8xbf16>
    %c0_21 = arith.constant 0 : index
    %c0_22 = arith.constant 0 : index
    %c16 = arith.constant 16 : index
    %66 = vector.load %arg2[%c0_21, %c0_22, %c16] : memref<2x17x32xbf16, #tpu.memory_space<vmem>>, vector<2x17x8xbf16>
    tpu.vector_store %arg2[%c0_21, %c0_22, %c16], %65 {strides = array<i32>} : memref<2x17x32xbf16, #tpu.memory_space<vmem>>, vector<2x17x8xbf16>,
    %67 = vector.extract_strided_slice %0 {offsets = [0, 0, 24], sizes = [2, 17, 8], strides = [1, 1, 1]} : vector<2x17x96xbf16> to vector<2x17x8xbf16>
    %68 = arith.extf %67 : vector<2x17x8xbf16> to vector<2x17x8xf32>
    %cst_23 = arith.constant 0.353553385 : f32
    %69 = vector.broadcast %cst_23 : f32 to vector<2x17x8xf32>
    %70 = arith.mulf %68, %69 : vector<2x17x8xf32>
    %71 = arith.truncf %70 : vector<2x17x8xf32> to vector<2x17x8xbf16>
    %72 = vector.extract_strided_slice %0 {offsets = [0, 0, 56], sizes = [2, 17, 8], strides = [1, 1, 1]} : vector<2x17x96xbf16> to vector<2x17x8xbf16>
    %73 = vector.extract_strided_slice %0 {offsets = [0, 0, 88], sizes = [2, 17, 8], strides = [1, 1, 1]} : vector<2x17x96xbf16> to vector<2x17x8xbf16>
    "tpu.trace_start"() <{level = 10 : i32, message = "bqd,bkd->bqk"}> : () -> ()
    %cst_24 = arith.constant dense<0.000000e+00> : vector<2x17x17xf32>
    %74 = tpu.matmul %71, %72, %cst_24 {dimension_numbers = #tpu.dot_dimension_numbers<[2], [2], [1], [1], [0, 0, 0, 1, 1, 1], [0], [0]>} : vector<2x17x8xbf16>, vector<2x17x8xbf16>, vector<2x17x17xf32> -> vector<2x17x17xf32>
    "tpu.trace_stop"() : () -> ()
    %cst_25 = arith.constant dense<0xFF800000> : vector<2x17xf32>
    %75 = vector.multi_reduction <maximumf>, %74, %cst_25 [2] : vector<2x17x17xf32> to vector<2x17xf32>
    %76 = vector.shape_cast %75 : vector<2x17xf32> to vector<2x17x1xf32>
    %77 = vector.broadcast %76 : vector<2x17x1xf32> to vector<2x17x17xf32>
    %78 = arith.subf %74, %77 : vector<2x17x17xf32>
    %79 = math.exp %78 : vector<2x17x17xf32>
    %cst_26 = arith.constant dense<0.000000e+00> : vector<2x17xf32>
    %80 = vector.multi_reduction <add>, %79, %cst_26 [2] : vector<2x17x17xf32> to vector<2x17xf32>
    %81 = vector.shape_cast %80 : vector<2x17xf32> to vector<2x17x1xf32>
    %82 = arith.truncf %79 : vector<2x17x17xf32> to vector<2x17x17xbf16>
    "tpu.trace_start"() <{level = 10 : i32, message = "bqk,bkd->bqd"}> : () -> ()
    %cst_27 = arith.constant dense<0.000000e+00> : vector<2x17x8xf32>
    %83 = tpu.matmul %82, %73, %cst_27 {dimension_numbers = #tpu.dot_dimension_numbers<[2], [1], [1], [2], [0, 0, 0, 1, 1, 2], [0], [0]>} : vector<2x17x17xbf16>, vector<2x17x8xbf16>, vector<2x17x8xf32> -> vector<2x17x8xf32>
    "tpu.trace_stop"() : () -> ()
    %84 = tpu.reciprocal %81 {approx = true} : vector<2x17x1xf32> -> vector<2x17x1xf32>
    %85 = vector.broadcast %84 : vector<2x17x1xf32> to vector<2x17x8xf32>
    %86 = arith.mulf %83, %85 : vector<2x17x8xf32>
    %87 = arith.truncf %86 : vector<2x17x8xf32> to vector<2x17x8xbf16>
    %c0_28 = arith.constant 0 : index
    %c0_29 = arith.constant 0 : index
    %c24 = arith.constant 24 : index
    %88 = vector.load %arg2[%c0_28, %c0_29, %c24] : memref<2x17x32xbf16, #tpu.memory_space<vmem>>, vector<2x17x8xbf16>
    tpu.vector_store %arg2[%c0_28, %c0_29, %c24], %87 {strides = array<i32>} : memref<2x17x32xbf16, #tpu.memory_space<vmem>>, vector<2x17x8xbf16>,
    return
  }
  func.func @transform_0(%arg0: i32) -> (i32, i32, i32) {
    %c0_i32 = arith.constant 0 : i32
    %c0_i32_0 = arith.constant 0 : i32
    %c0_i32_1 = arith.constant 0 : i32
    return %arg0, %c0_i32, %c0_i32_0 : i32, i32, i32
  }
  func.func @transform_1(%arg0: i32) -> (i32, i32, i32) {
    %c0_i32 = arith.constant 0 : i32
    %c0_i32_0 = arith.constant 0 : i32
    %c0_i32_1 = arith.constant 0 : i32
    return %arg0, %c0_i32, %c0_i32_0 : i32, i32, i32
  }
}

module attributes {stable_mosaic.version = 11 : i64} {
  func.func @_ln_matmul_kernel(%arg0: i32, %arg1: memref<34x32xf32, #tpu.memory_space<vmem>>, %arg2: memref<1x32xf32, #tpu.memory_space<vmem>>, %arg3: memref<1x32xf32, #tpu.memory_space<vmem>>, %arg4: memref<32x128xbf16, #tpu.memory_space<vmem>>, %arg5: memref<1x128xf32, #tpu.memory_space<vmem>>, %arg6: memref<34x128xbf16, #tpu.memory_space<vmem>>) attributes {dimension_semantics = [#tpu.dimension_semantics<parallel>], iteration_bounds = array<i64: 1>, scalar_prefetch = 0 : i64, scratch_operands = 0 : i64, tpu.core_type = #tpu.core_type<tc>, window_params = [{transform_indices = @transform_0, window_bounds = array<i64: 34, 32>}, {pipeline_mode = #tpu.pipeline_mode<synchronous>, transform_indices = @transform_1, window_bounds = array<i64: 1, 32>}, {pipeline_mode = #tpu.pipeline_mode<synchronous>, transform_indices = @transform_2, window_bounds = array<i64: 1, 32>}, {pipeline_mode = #tpu.pipeline_mode<synchronous>, transform_indices = @transform_3, window_bounds = array<i64: 32, 128>}, {pipeline_mode = #tpu.pipeline_mode<synchronous>, transform_indices = @transform_4, window_bounds = array<i64: 1, 128>}, {transform_indices = @transform_5, window_bounds = array<i64: 34, 128>}]} {
    %c0 = arith.constant 0 : index
    %c0_0 = arith.constant 0 : index
    %0 = vector.load %arg1[%c0, %c0_0] : memref<34x32xf32, #tpu.memory_space<vmem>>, vector<34x32xf32>
    %cst = arith.constant dense<0.000000e+00> : vector<34xf32>
    %1 = vector.multi_reduction <add>, %0, %cst [1] : vector<34x32xf32> to vector<34xf32>
    %2 = vector.shape_cast %1 : vector<34xf32> to vector<34x1xf32>
    %cst_1 = arith.constant 3.200000e+01 : f32
    %3 = vector.broadcast %cst_1 : f32 to vector<34x1xf32>
    %4 = arith.divf %2, %3 : vector<34x1xf32>
    %5 = vector.broadcast %4 : vector<34x1xf32> to vector<34x32xf32>
    %6 = arith.subf %0, %5 : vector<34x32xf32>
    %7 = arith.mulf %6, %6 : vector<34x32xf32>
    %cst_2 = arith.constant dense<0.000000e+00> : vector<34xf32>
    %8 = vector.multi_reduction <add>, %7, %cst_2 [1] : vector<34x32xf32> to vector<34xf32>
    %9 = vector.shape_cast %8 : vector<34xf32> to vector<34x1xf32>
    %cst_3 = arith.constant 3.200000e+01 : f32
    %10 = vector.broadcast %cst_3 : f32 to vector<34x1xf32>
    %11 = arith.divf %9, %10 : vector<34x1xf32>
    %12 = vector.broadcast %4 : vector<34x1xf32> to vector<34x32xf32>
    %13 = arith.subf %0, %12 : vector<34x32xf32>
    %cst_4 = arith.constant 9.99999997E-7 : f32
    %14 = vector.broadcast %cst_4 : f32 to vector<34x1xf32>
    %15 = arith.addf %11, %14 : vector<34x1xf32>
    %16 = math.rsqrt %15 : vector<34x1xf32>
    %17 = vector.broadcast %16 : vector<34x1xf32> to vector<34x32xf32>
    %18 = arith.mulf %13, %17 : vector<34x32xf32>
    %c0_5 = arith.constant 0 : index
    %c0_6 = arith.constant 0 : index
    %19 = vector.load %arg2[%c0_5, %c0_6] : memref<1x32xf32, #tpu.memory_space<vmem>>, vector<1x32xf32>
    %20 = vector.broadcast %19 : vector<1x32xf32> to vector<34x32xf32>
    %21 = arith.mulf %18, %20 : vector<34x32xf32>
    %c0_7 = arith.constant 0 : index
    %c0_8 = arith.constant 0 : index
    %22 = vector.load %arg3[%c0_7, %c0_8] : memref<1x32xf32, #tpu.memory_space<vmem>>, vector<1x32xf32>
    %23 = vector.broadcast %22 : vector<1x32xf32> to vector<34x32xf32>
    %24 = arith.addf %21, %23 : vector<34x32xf32>
    %25 = arith.truncf %24 : vector<34x32xf32> to vector<34x32xbf16>
    %c0_9 = arith.constant 0 : index
    %c0_10 = arith.constant 0 : index
    %26 = vector.load %arg4[%c0_9, %c0_10] : memref<32x128xbf16, #tpu.memory_space<vmem>>, vector<32x128xbf16>
    %cst_11 = arith.constant dense<0.000000e+00> : vector<34x128xf32>
    %27 = tpu.matmul %25, %26, %cst_11 {dimension_numbers = #tpu.dot_dimension_numbers<[1], [0], [0], [1], [0, 0, 1, 1], [], []>} : vector<34x32xbf16>, vector<32x128xbf16>, vector<34x128xf32> -> vector<34x128xf32>
    %c0_12 = arith.constant 0 : index
    %c0_13 = arith.constant 0 : index
    %28 = vector.load %arg5[%c0_12, %c0_13] : memref<1x128xf32, #tpu.memory_space<vmem>>, vector<1x128xf32>
    %29 = vector.broadcast %28 : vector<1x128xf32> to vector<34x128xf32>
    %30 = arith.addf %27, %29 : vector<34x128xf32>
    %cst_14 = arith.constant 5.000000e-01 : f32
    %31 = vector.broadcast %cst_14 : f32 to vector<34x128xf32>
    %32 = arith.mulf %31, %30 : vector<34x128xf32>
    %cst_15 = arith.constant 4.471500e-02 : f32
    %33 = vector.broadcast %cst_15 : f32 to vector<34x128xf32>
    %34 = arith.mulf %33, %30 : vector<34x128xf32>
    %35 = arith.mulf %34, %30 : vector<34x128xf32>
    %36 = arith.mulf %35, %30 : vector<34x128xf32>
    %37 = arith.addf %30, %36 : vector<34x128xf32>
    %cst_16 = arith.constant 0.797884583 : f32
    %38 = vector.broadcast %cst_16 : f32 to vector<34x128xf32>
    %39 = arith.mulf %38, %37 : vector<34x128xf32>
    %40 = math.tanh %39 : vector<34x128xf32>
    %cst_17 = arith.constant 1.000000e+00 : f32
    %41 = vector.broadcast %cst_17 : f32 to vector<34x128xf32>
    %42 = arith.addf %41, %40 : vector<34x128xf32>
    %43 = arith.mulf %32, %42 : vector<34x128xf32>
    %44 = arith.truncf %43 : vector<34x128xf32> to vector<34x128xbf16>
    %c0_18 = arith.constant 0 : index
    %c0_19 = arith.constant 0 : index
    %45 = vector.load %arg6[%c0_18, %c0_19] : memref<34x128xbf16, #tpu.memory_space<vmem>>, vector<34x128xbf16>
    tpu.vector_store %arg6[%c0_18, %c0_19], %44 {strides = array<i32>} : memref<34x128xbf16, #tpu.memory_space<vmem>>, vector<34x128xbf16>,
    return
  }
  func.func @transform_0(%arg0: i32) -> (i32, i32) {
    %c0_i32 = arith.constant 0 : i32
    %c0_i32_0 = arith.constant 0 : i32
    return %arg0, %c0_i32 : i32, i32
  }
  func.func @transform_1(%arg0: i32) -> (i32, i32) {
    %c0_i32 = arith.constant 0 : i32
    %c0_i32_0 = arith.constant 0 : i32
    %c0_i32_1 = arith.constant 0 : i32
    return %c0_i32, %c0_i32_0 : i32, i32
  }
  func.func @transform_2(%arg0: i32) -> (i32, i32) {
    %c0_i32 = arith.constant 0 : i32
    %c0_i32_0 = arith.constant 0 : i32
    %c0_i32_1 = arith.constant 0 : i32
    return %c0_i32, %c0_i32_0 : i32, i32
  }
  func.func @transform_3(%arg0: i32) -> (i32, i32) {
    %c0_i32 = arith.constant 0 : i32
    %c0_i32_0 = arith.constant 0 : i32
    %c0_i32_1 = arith.constant 0 : i32
    return %c0_i32, %c0_i32_0 : i32, i32
  }
  func.func @transform_4(%arg0: i32) -> (i32, i32) {
    %c0_i32 = arith.constant 0 : i32
    %c0_i32_0 = arith.constant 0 : i32
    %c0_i32_1 = arith.constant 0 : i32
    return %c0_i32, %c0_i32_0 : i32, i32
  }
  func.func @transform_5(%arg0: i32) -> (i32, i32) {
    %c0_i32 = arith.constant 0 : i32
    %c0_i32_0 = arith.constant 0 : i32
    return %arg0, %c0_i32 : i32, i32
  }
}

module attributes {stable_mosaic.version = 11 : i64} {
  func.func @_mm_resident_kernel(%arg0: i32, %arg1: memref<34x128xbf16, #tpu.memory_space<vmem>>, %arg2: memref<128x32xbf16, #tpu.memory_space<vmem>>, %arg3: memref<1x32xf32, #tpu.memory_space<vmem>>, %arg4: memref<34x32xf32, #tpu.memory_space<vmem>>, %arg5: memref<34x32xf32, #tpu.memory_space<vmem>>) attributes {dimension_semantics = [#tpu.dimension_semantics<parallel>], iteration_bounds = array<i64: 1>, scalar_prefetch = 0 : i64, scratch_operands = 0 : i64, tpu.core_type = #tpu.core_type<tc>, window_params = [{transform_indices = @transform_0, window_bounds = array<i64: 34, 128>}, {pipeline_mode = #tpu.pipeline_mode<synchronous>, transform_indices = @transform_1, window_bounds = array<i64: 128, 32>}, {pipeline_mode = #tpu.pipeline_mode<synchronous>, transform_indices = @transform_2, window_bounds = array<i64: 1, 32>}, {transform_indices = @transform_3, window_bounds = array<i64: 34, 32>}, {transform_indices = @transform_4, window_bounds = array<i64: 34, 32>}]} {
    %c0 = arith.constant 0 : index
    %c0_0 = arith.constant 0 : index
    %0 = vector.load %arg1[%c0, %c0_0] : memref<34x128xbf16, #tpu.memory_space<vmem>>, vector<34x128xbf16>
    %c0_1 = arith.constant 0 : index
    %c0_2 = arith.constant 0 : index
    %1 = vector.load %arg2[%c0_1, %c0_2] : memref<128x32xbf16, #tpu.memory_space<vmem>>, vector<128x32xbf16>
    %cst = arith.constant dense<0.000000e+00> : vector<34x32xf32>
    %2 = tpu.matmul %0, %1, %cst {dimension_numbers = #tpu.dot_dimension_numbers<[1], [0], [0], [1], [0, 0, 1, 1], [], []>} : vector<34x128xbf16>, vector<128x32xbf16>, vector<34x32xf32> -> vector<34x32xf32>
    %c0_3 = arith.constant 0 : index
    %c0_4 = arith.constant 0 : index
    %3 = vector.load %arg3[%c0_3, %c0_4] : memref<1x32xf32, #tpu.memory_space<vmem>>, vector<1x32xf32>
    %4 = vector.broadcast %3 : vector<1x32xf32> to vector<34x32xf32>
    %5 = arith.addf %2, %4 : vector<34x32xf32>
    %c0_5 = arith.constant 0 : index
    %c0_6 = arith.constant 0 : index
    %6 = vector.load %arg4[%c0_5, %c0_6] : memref<34x32xf32, #tpu.memory_space<vmem>>, vector<34x32xf32>
    %7 = arith.addf %5, %6 : vector<34x32xf32>
    %c0_7 = arith.constant 0 : index
    %c0_8 = arith.constant 0 : index
    %8 = vector.load %arg5[%c0_7, %c0_8] : memref<34x32xf32, #tpu.memory_space<vmem>>, vector<34x32xf32>
    tpu.vector_store %arg5[%c0_7, %c0_8], %7 {strides = array<i32>} : memref<34x32xf32, #tpu.memory_space<vmem>>, vector<34x32xf32>,
    return
  }
  func.func @transform_0(%arg0: i32) -> (i32, i32) {
    %c0_i32 = arith.constant 0 : i32
    %c0_i32_0 = arith.constant 0 : i32
    return %arg0, %c0_i32 : i32, i32
  }
  func.func @transform_1(%arg0: i32) -> (i32, i32) {
    %c0_i32 = arith.constant 0 : i32
    %c0_i32_0 = arith.constant 0 : i32
    %c0_i32_1 = arith.constant 0 : i32
    return %c0_i32, %c0_i32_0 : i32, i32
  }
  func.func @transform_2(%arg0: i32) -> (i32, i32) {
    %c0_i32 = arith.constant 0 : i32
    %c0_i32_0 = arith.constant 0 : i32
    %c0_i32_1 = arith.constant 0 : i32
    return %c0_i32, %c0_i32_0 : i32, i32
  }
  func.func @transform_3(%arg0: i32) -> (i32, i32) {
    %c0_i32 = arith.constant 0 : i32
    %c0_i32_0 = arith.constant 0 : i32
    return %arg0, %c0_i32 : i32, i32
  }
  func.func @transform_4(%arg0: i32) -> (i32, i32) {
    %c0_i32 = arith.constant 0 : i32
    %c0_i32_0 = arith.constant 0 : i32
    return %arg0, %c0_i32 : i32, i32
  }
}

module attributes {stable_mosaic.version = 11 : i64} {
  func.func @_ln_matmul_kernel(%arg0: i32, %arg1: memref<2x32xf32, #tpu.memory_space<vmem>>, %arg2: memref<1x32xf32, #tpu.memory_space<vmem>>, %arg3: memref<1x32xf32, #tpu.memory_space<vmem>>, %arg4: memref<32x128xbf16, #tpu.memory_space<vmem>>, %arg5: memref<1x128xf32, #tpu.memory_space<vmem>>, %arg6: memref<2x128xf32, #tpu.memory_space<vmem>>) attributes {dimension_semantics = [#tpu.dimension_semantics<parallel>], iteration_bounds = array<i64: 1>, scalar_prefetch = 0 : i64, scratch_operands = 0 : i64, tpu.core_type = #tpu.core_type<tc>, window_params = [{transform_indices = @transform_0, window_bounds = array<i64: 2, 32>}, {pipeline_mode = #tpu.pipeline_mode<synchronous>, transform_indices = @transform_1, window_bounds = array<i64: 1, 32>}, {pipeline_mode = #tpu.pipeline_mode<synchronous>, transform_indices = @transform_2, window_bounds = array<i64: 1, 32>}, {pipeline_mode = #tpu.pipeline_mode<synchronous>, transform_indices = @transform_3, window_bounds = array<i64: 32, 128>}, {pipeline_mode = #tpu.pipeline_mode<synchronous>, transform_indices = @transform_4, window_bounds = array<i64: 1, 128>}, {transform_indices = @transform_5, window_bounds = array<i64: 2, 128>}]} {
    %c0 = arith.constant 0 : index
    %c0_0 = arith.constant 0 : index
    %0 = vector.load %arg1[%c0, %c0_0] : memref<2x32xf32, #tpu.memory_space<vmem>>, vector<2x32xf32>
    %cst = arith.constant dense<0.000000e+00> : vector<2xf32>
    %1 = vector.multi_reduction <add>, %0, %cst [1] : vector<2x32xf32> to vector<2xf32>
    %2 = vector.shape_cast %1 : vector<2xf32> to vector<2x1xf32>
    %cst_1 = arith.constant 3.200000e+01 : f32
    %3 = vector.broadcast %cst_1 : f32 to vector<2x1xf32>
    %4 = arith.divf %2, %3 : vector<2x1xf32>
    %5 = vector.broadcast %4 : vector<2x1xf32> to vector<2x32xf32>
    %6 = arith.subf %0, %5 : vector<2x32xf32>
    %7 = arith.mulf %6, %6 : vector<2x32xf32>
    %cst_2 = arith.constant dense<0.000000e+00> : vector<2xf32>
    %8 = vector.multi_reduction <add>, %7, %cst_2 [1] : vector<2x32xf32> to vector<2xf32>
    %9 = vector.shape_cast %8 : vector<2xf32> to vector<2x1xf32>
    %cst_3 = arith.constant 3.200000e+01 : f32
    %10 = vector.broadcast %cst_3 : f32 to vector<2x1xf32>
    %11 = arith.divf %9, %10 : vector<2x1xf32>
    %12 = vector.broadcast %4 : vector<2x1xf32> to vector<2x32xf32>
    %13 = arith.subf %0, %12 : vector<2x32xf32>
    %cst_4 = arith.constant 9.99999997E-7 : f32
    %14 = vector.broadcast %cst_4 : f32 to vector<2x1xf32>
    %15 = arith.addf %11, %14 : vector<2x1xf32>
    %16 = math.rsqrt %15 : vector<2x1xf32>
    %17 = vector.broadcast %16 : vector<2x1xf32> to vector<2x32xf32>
    %18 = arith.mulf %13, %17 : vector<2x32xf32>
    %c0_5 = arith.constant 0 : index
    %c0_6 = arith.constant 0 : index
    %19 = vector.load %arg2[%c0_5, %c0_6] : memref<1x32xf32, #tpu.memory_space<vmem>>, vector<1x32xf32>
    %20 = vector.broadcast %19 : vector<1x32xf32> to vector<2x32xf32>
    %21 = arith.mulf %18, %20 : vector<2x32xf32>
    %c0_7 = arith.constant 0 : index
    %c0_8 = arith.constant 0 : index
    %22 = vector.load %arg3[%c0_7, %c0_8] : memref<1x32xf32, #tpu.memory_space<vmem>>, vector<1x32xf32>
    %23 = vector.broadcast %22 : vector<1x32xf32> to vector<2x32xf32>
    %24 = arith.addf %21, %23 : vector<2x32xf32>
    %25 = arith.truncf %24 : vector<2x32xf32> to vector<2x32xbf16>
    %c0_9 = arith.constant 0 : index
    %c0_10 = arith.constant 0 : index
    %26 = vector.load %arg4[%c0_9, %c0_10] : memref<32x128xbf16, #tpu.memory_space<vmem>>, vector<32x128xbf16>
    %cst_11 = arith.constant dense<0.000000e+00> : vector<2x128xf32>
    %27 = tpu.matmul %25, %26, %cst_11 {dimension_numbers = #tpu.dot_dimension_numbers<[1], [0], [0], [1], [0, 0, 1, 1], [], []>} : vector<2x32xbf16>, vector<32x128xbf16>, vector<2x128xf32> -> vector<2x128xf32>
    %c0_12 = arith.constant 0 : index
    %c0_13 = arith.constant 0 : index
    %28 = vector.load %arg5[%c0_12, %c0_13] : memref<1x128xf32, #tpu.memory_space<vmem>>, vector<1x128xf32>
    %29 = vector.broadcast %28 : vector<1x128xf32> to vector<2x128xf32>
    %30 = arith.addf %27, %29 : vector<2x128xf32>
    %c0_14 = arith.constant 0 : index
    %c0_15 = arith.constant 0 : index
    %31 = vector.load %arg6[%c0_14, %c0_15] : memref<2x128xf32, #tpu.memory_space<vmem>>, vector<2x128xf32>
    tpu.vector_store %arg6[%c0_14, %c0_15], %30 {strides = array<i32>} : memref<2x128xf32, #tpu.memory_space<vmem>>, vector<2x128xf32>,
    return
  }
  func.func @transform_0(%arg0: i32) -> (i32, i32) {
    %c0_i32 = arith.constant 0 : i32
    %c0_i32_0 = arith.constant 0 : i32
    return %arg0, %c0_i32 : i32, i32
  }
  func.func @transform_1(%arg0: i32) -> (i32, i32) {
    %c0_i32 = arith.constant 0 : i32
    %c0_i32_0 = arith.constant 0 : i32
    %c0_i32_1 = arith.constant 0 : i32
    return %c0_i32, %c0_i32_0 : i32, i32
  }
  func.func @transform_2(%arg0: i32) -> (i32, i32) {
    %c0_i32 = arith.constant 0 : i32
    %c0_i32_0 = arith.constant 0 : i32
    %c0_i32_1 = arith.constant 0 : i32
    return %c0_i32, %c0_i32_0 : i32, i32
  }
  func.func @transform_3(%arg0: i32) -> (i32, i32) {
    %c0_i32 = arith.constant 0 : i32
    %c0_i32_0 = arith.constant 0 : i32
    %c0_i32_1 = arith.constant 0 : i32
    return %c0_i32, %c0_i32_0 : i32, i32
  }
  func.func @transform_4(%arg0: i32) -> (i32, i32) {
    %c0_i32 = arith.constant 0 : i32
    %c0_i32_0 = arith.constant 0 : i32
    %c0_i32_1 = arith.constant 0 : i32
    return %c0_i32, %c0_i32_0 : i32, i32
  }
  func.func @transform_5(%arg0: i32) -> (i32, i32) {
    %c0_i32 = arith.constant 0 : i32
    %c0_i32_0 = arith.constant 0 : i32
    return %arg0, %c0_i32 : i32, i32
  }
}

</mosaic_0001>

<llo_original>
// kernel: vitc_forward.15
$region0: #{vitc_forward.15}
  #allocation0 [shape = 'u32[]', space=smem, size = 0x4, offset = 0x4, fixed_abs, tag = 'smem constant byte address 0x4 - core index']
  #allocation1 [shape = 'u32[144,128]{1,0:T(1,128)}', space=vmem, size = 0x12000, scoped, tag = 'internal scratch']
  %s0 = inlined_call_operand.vmem [shape: bf16[34,32], index: 0, kind: input, shape index: {}]
  %s1 = inlined_call_operand.vmem [shape: bf16[32,32], index: 1, kind: input, shape index: {}]
  %s2 = inlined_call_operand.vmem [shape: f32[1,32], index: 2, kind: input, shape index: {}]
  %s3 = inlined_call_operand.vmem [shape: f32[34,32], index: 3, kind: input, shape index: {}]
  %s4 = inlined_call_operand.vmem [shape: f32[34,32], index: 4, kind: output, shape index: {}]
  %s5 = sld [smem:[#allocation0]]
  $region26: #{vitc_forward.15} parent=0
    _
  %s7 = ssub.s32 1, %s5
  %s8 = scalar_select 0, %s7, %s5
  // Predicated region
  $region2: #{vitc_forward.15} parent=0 // pred_check
    _
  $region3: #{vitc_forward.15} parent=0 // pred_check_branch
    %10 = sbr.rel (0) target = $region5
  $region4: #{vitc_forward.15} parent=0 // pred_region
    _
  $region5: #{vitc_forward.15} parent=0 // pred_fallthru
    _
  // Predicated region
  $region6: #{vitc_forward.15} parent=0 // pred_check
    _
  $region7: #{vitc_forward.15} parent=0 // pred_check_branch
    %12 = sbr.rel (0) target = $region9
  $region8: #{vitc_forward.15} parent=0 // pred_region
    _
  $region9: #{vitc_forward.15} parent=0 // pred_fallthru
    _
  // Predicated region
  $region10: #{vitc_forward.15} parent=0 // pred_check
    _
  $region11: #{vitc_forward.15} parent=0 // pred_check_branch
    %14 = sbr.rel (0) target = $region13
  $region12: #{vitc_forward.15} parent=0 // pred_region
    _
  $region13: #{vitc_forward.15} parent=0 // pred_fallthru
    _
  // Predicated region
  $region14: #{vitc_forward.15} parent=0 // pred_check
    _
  $region15: #{vitc_forward.15} parent=0 // pred_check_branch
    %16 = sbr.rel (0) target = $region17
  $region16: #{vitc_forward.15} parent=0 // pred_region
    _
  $region17: #{vitc_forward.15} parent=0 // pred_fallthru
    _
  %v18 = vld [vmem:[%s0] sm:$0xf]
  %v19 = vld [vmem:[%s0 + $0x4] sm:$0xf]
  %v20 = vld [vmem:[%s0 + $0x8] sm:$0xf]
  %v21 = vld [vmem:[%s0 + $0xc] sm:$0xf]
  %v22 = vld [vmem:[%s0 + $0x10] sm:$0x1]
  %v23 = vld [vmem:[%s1] sm:$0xf]
  %v24 = vld [vmem:[%s1 + $0x4] sm:$0xf]
  %v25 = vld [vmem:[%s1 + $0x8] sm:$0xf]
  %v26 = vld [vmem:[%s1 + $0xc] sm:$0xf]
  %v27 = vld [vmem:[%s2] sm:$0x1]
  %v29 = vlaneseq
  %v30 = vshrl.u32 %v29, 7
  %v31 = vsub.s32 0, %v30
  %v32 = vrot.slane %v27, %v31
  %v39 = vunpack.c.l.b16 %v18
  %v40 = vunpack.c.l.b16 %v19
  %v41 = vunpack.c.l.b16 %v20
  %v42 = vunpack.c.l.b16 %v21
  %v43 = vunpack.c.l.b16 %v22
  %v44 = vpack.c.b16 %v40, %v39
  %v45 = vpack.c.b16 %v42, %v41
  %v46 = vpack.c.b16 %v43, %v43
  %v51 = vunpack.c.l.b16 %v23
  %v52 = vunpack.c.l.b16 %v24
  %v53 = vunpack.c.l.b16 %v25
  %v54 = vunpack.c.l.b16 %v26
  %v55 = vpack.c.b16 %v52, %v51
  %v56 = vpack.c.b16 %v54, %v53
  %vm59 = vcmask 261120
  %v61 = vsel %vm59, %v44, 0
  %v64 = vsel %vm59, %v45, 0
  %v67 = vsel %vm59, %v46, 0
  %69 = vmatprep.subr.bf16.mxu0 0
  %70 = vmatpush1.bf16.msra.mxu0 %v55
  %71 = vmatprep.subr.bf16.mxu0 0
  %72 = vmatpush1.bf16.msra.mxu0 %v56
  %73 = vmatprep.subr.bf16.mxu0 0
  %74 = vmatpush1.bf16.msra.mxu0 0
  %75 = vmatprep.subr.bf16.mxu0 0
  %76 = vmatpush1.bf16.msra.mxu0 0
  %77 = vmatprep.subr.bf16.mxu0 0
  %78 = vmatpush1.bf16.msra.mxu0 0
  %79 = vmatprep.subr.bf16.mxu0 0
  %80 = vmatpush1.bf16.msra.mxu0 0
  %81 = vmatprep.subr.bf16.mxu0 0
  %82 = vmatpush1.bf16.msra.mxu0 0
  %83 = vmatprep.subr.bf16.mxu0 0
  %84 = vmatpush1.bf16.msra.mxu0 0
  %85 = vmatprep.subr.bf16.mxu0 0
  %86 = vmatpush1.bf16.msra.mxu0 0
  %87 = vmatprep.subr.bf16.mxu0 0
  %88 = vmatpush1.bf16.msra.mxu0 0
  %89 = vmatprep.subr.bf16.mxu0 0
  %90 = vmatpush1.bf16.msra.mxu0 0
  %91 = vmatprep.subr.bf16.mxu0 0
  %92 = vmatpush1.bf16.msra.mxu0 0
  %93 = vmatprep.subr.bf16.mxu0 0
  %94 = vmatpush1.bf16.msra.mxu0 0
  %95 = vmatprep.subr.bf16.mxu0 0
  %96 = vmatpush1.bf16.msra.mxu0 0
  %97 = vmatprep.subr.bf16.mxu0 0
  %98 = vmatpush1.bf16.msra.mxu0 0
  %99 = vmatprep.subr.bf16.mxu0 0
  %100 = vmatpush1.bf16.msra.mxu0 0
  %101 = vmatprep.mubr.bf16.mxu0 0
  %102 = vmatmul.mubr.bf16.gmra.mrb[0].mxu0 %v61
  %v103 = vpop.f32.mrb[0].mxu0
  %v104 = vadd.f32 %v32, %v103
  %v105 = vpop.f32.mrb[0].mxu0
  %v106 = vpop.f32.mrb[0].mxu0
  %v107 = vadd.f32 %v32, %v106
  %v108 = vpop.f32.mrb[0].mxu0
  %109 = vmatprep.mubr.bf16.mxu0 0
  %110 = vmatmul.mubr.bf16.gmra.mrb[0].mxu0 %v64
  %v111 = vpop.f32.mrb[0].mxu0
  %v112 = vadd.f32 %v32, %v111
  %v113 = vpop.f32.mrb[0].mxu0
  %v114 = vpop.f32.mrb[0].mxu0
  %v115 = vadd.f32 %v32, %v114
  %v116 = vpop.f32.mrb[0].mxu0
  %117 = vmatprep.mubr.bf16.mxu0 0
  %118 = vmatmul.mubr.bf16.gmra.mrb[0].mxu0 %v67
  %v119 = vpop.f32.mrb[0].mxu0
  %v120 = vadd.f32 %v32, %v119
  %v121 = vpop.f32.mrb[0].mxu0
  %v122 = vpop.f32.mrb[0].mxu0
  %v123 = vpop.f32.mrb[0].mxu0
  %124 = vdwg.mxu0
  %v125 = vld [vmem:[%s3] sm:$0xff]
  %v126 = vld [vmem:[%s3 + $0x8] sm:$0xff]
  %v127 = vld [vmem:[%s3 + $0x10] sm:$0xff]
  %v128 = vld [vmem:[%s3 + $0x18] sm:$0xff]
  %v129 = vld [vmem:[%s3 + $0x20] sm:$0x3]
  %v130 = vadd.f32 %v104, %v125
  %v131 = vadd.f32 %v107, %v126
  %v132 = vadd.f32 %v112, %v127
  %v133 = vadd.f32 %v115, %v128
  %v134 = vadd.f32 %v120, %v129
  %135 = vst.msk [vmem:[%s4] sm:$0xff] %vm59, %v130
  %136 = vst.msk [vmem:[%s4 + $0x8] sm:$0xff] %vm59, %v131
  %137 = vst.msk [vmem:[%s4 + $0x10] sm:$0xff] %vm59, %v132
  %138 = vst.msk [vmem:[%s4 + $0x18] sm:$0xff] %vm59, %v133
  %vm139 = vcmask 254976
  %140 = vst.msk [vmem:[%s4 + $0x20] sm:$0x3] %vm139, %v134
  // Predicated region
  $region18: #{vitc_forward.15} parent=0 // pred_check
    _
  $region19: #{vitc_forward.15} parent=0 // pred_check_branch
    %142 = sbr.rel (0) target = $region21
  $region20: #{vitc_forward.15} parent=0 // pred_region
    _
  $region21: #{vitc_forward.15} parent=0 // pred_fallthru
    _
  // Predicated region
  $region22: #{vitc_forward.15} parent=0 // pred_check
    _
  $region23: #{vitc_forward.15} parent=0 // pred_check_branch
    %144 = sbr.rel (0) target = $region25
  $region24: #{vitc_forward.15} parent=0 // pred_region
    _
  $region25: #{vitc_forward.15} parent=0 // pred_fallthru
    _

// kernel: vitc_forward.13
$region0: #{vitc_forward.13}
  #allocation0 [shape = 'u32[]', space=smem, size = 0x4, offset = 0x4, fixed_abs, tag = 'smem constant byte address 0x4 - core index']
  #allocation1 [shape = 'u32[144,128]{1,0:T(1,128)}', space=vmem, size = 0x12000, scoped, tag = 'internal scratch']
  %s0 = inlined_call_operand.vmem [shape: f32[34,32], index: 0, kind: input, shape index: {}]
  %s1 = inlined_call_operand.vmem [shape: f32[1,32], index: 1, kind: input, shape index: {}]
  %s2 = inlined_call_operand.vmem [shape: f32[1,32], index: 2, kind: input, shape index: {}]
  %s3 = inlined_call_operand.vmem [shape: bf16[32,96], index: 3, kind: input, shape index: {}]
  %s4 = inlined_call_operand.vmem [shape: f32[1,96], index: 4, kind: input, shape index: {}]
  %s5 = inlined_call_operand.vmem [shape: bf16[34,96], index: 5, kind: output, shape index: {}]
  %s6 = sld [smem:[#allocation0]]
  $region30: #{vitc_forward.13} parent=0
    _
  %s8 = ssub.s32 1, %s6
  %s9 = scalar_select 0, %s8, %s6
  // Predicated region
  $region2: #{vitc_forward.13} parent=0 // pred_check
    _
  $region3: #{vitc_forward.13} parent=0 // pred_check_branch
    %11 = sbr.rel (0) target = $region5
  $region4: #{vitc_forward.13} parent=0 // pred_region
    _
  $region5: #{vitc_forward.13} parent=0 // pred_fallthru
    _
  // Predicated region
  $region6: #{vitc_forward.13} parent=0 // pred_check
    _
  $region7: #{vitc_forward.13} parent=0 // pred_check_branch
    %13 = sbr.rel (0) target = $region9
  $region8: #{vitc_forward.13} parent=0 // pred_region
    _
  $region9: #{vitc_forward.13} parent=0 // pred_fallthru
    _
  // Predicated region
  $region10: #{vitc_forward.13} parent=0 // pred_check
    _
  $region11: #{vitc_forward.13} parent=0 // pred_check_branch
    %15 = sbr.rel (0) target = $region13
  $region12: #{vitc_forward.13} parent=0 // pred_region
    _
  $region13: #{vitc_forward.13} parent=0 // pred_fallthru
    _
  // Predicated region
  $region14: #{vitc_forward.13} parent=0 // pred_check
    _
  $region15: #{vitc_forward.13} parent=0 // pred_check_branch
    %17 = sbr.rel (0) target = $region17
  $region16: #{vitc_forward.13} parent=0 // pred_region
    _
  $region17: #{vitc_forward.13} parent=0 // pred_fallthru
    _
  // Predicated region
  $region18: #{vitc_forward.13} parent=0 // pred_check
    _
  $region19: #{vitc_forward.13} parent=0 // pred_check_branch
    %19 = sbr.rel (0) target = $region21
  $region20: #{vitc_forward.13} parent=0 // pred_region
    _
  $region21: #{vitc_forward.13} parent=0 // pred_fallthru
    _
  %v21 = vld [vmem:[%s0] sm:$0xff]
  %v22 = vld [vmem:[%s0 + $0x8] sm:$0xff]
  %v23 = vld [vmem:[%s0 + $0x10] sm:$0xff]
  %v24 = vld [vmem:[%s0 + $0x18] sm:$0xff]
  %v25 = vld [vmem:[%s0 + $0x20] sm:$0x3]
  %vm26 = vcmask 261120
  %v27 = vsel %vm26, %v21, 0.0
  %28 = vadd.xlane.f32.xlu0 %v27
  %v29 = vpop.xlane.xlu0 %28
  %v30 = vsel %vm26, %v22, 0.0
  %31 = vadd.xlane.f32.xlu0 %v30
  %v32 = vpop.xlane.xlu0 %31
  %v33 = vsel %vm26, %v23, 0.0
  %34 = vadd.xlane.f32.xlu0 %v33
  %v35 = vpop.xlane.xlu0 %34
  %v36 = vsel %vm26, %v24, 0.0
  %37 = vadd.xlane.f32.xlu0 %v36
  %v38 = vpop.xlane.xlu0 %37
  %vm39 = vcmask 254976
  %v40 = vsel %vm39, %v25, 0.0
  %41 = vadd.xlane.f32.xlu0 %v40
  %v42 = vpop.xlane.xlu0 %41
  %v43 = vrcp.pop 32.0
  %v44 = vmul.f32 %v29, %v43
  %v45 = vmul.f32 %v32, %v43
  %v46 = vmul.f32 %v35, %v43
  %v47 = vmul.f32 %v38, %v43
  %v48 = vmul.f32 %v42, %v43
  %v49 = vsub.f32 %v21, %v44
  %v50 = vsub.f32 %v22, %v45
  %v51 = vsub.f32 %v23, %v46
  %v52 = vsub.f32 %v24, %v47
  %v53 = vsub.f32 %v25, %v48
  %v54 = vmul.f32 %v49, %v49
  %v55 = vmul.f32 %v50, %v50
  %v56 = vmul.f32 %v51, %v51
  %v57 = vmul.f32 %v52, %v52
  %v58 = vmul.f32 %v53, %v53
  %v59 = vsel %vm26, %v54, 0.0
  %60 = vadd.xlane.f32.xlu0 %v59
  %v61 = vpop.xlane.xlu0 %60
  %v62 = vsel %vm26, %v55, 0.0
  %63 = vadd.xlane.f32.xlu0 %v62
  %v64 = vpop.xlane.xlu0 %63
  %v65 = vsel %vm26, %v56, 0.0
  %66 = vadd.xlane.f32.xlu0 %v65
  %v67 = vpop.xlane.xlu0 %66
  %v68 = vsel %vm26, %v57, 0.0
  %69 = vadd.xlane.f32.xlu0 %v68
  %v70 = vpop.xlane.xlu0 %69
  %v71 = vsel %vm39, %v58, 0.0
  %72 = vadd.xlane.f32.xlu0 %v71
  %v73 = vpop.xlane.xlu0 %72
  %v74 = vmul.f32 %v61, %v43
  %v75 = vmul.f32 %v64, %v43
  %v76 = vmul.f32 %v67, %v43
  %v77 = vmul.f32 %v70, %v43
  %v78 = vmul.f32 %v73, %v43
  %v79 = vadd.f32 %v74, 1e-06
  %v80 = vadd.f32 %v75, 1e-06
  %v81 = vadd.f32 %v76, 1e-06
  %v82 = vadd.f32 %v77, 1e-06
  %v83 = vadd.f32 %v78, 1e-06
  %v84 = vrsqrt.pop %v79
  %v85 = vrsqrt.pop %v80
  %v86 = vrsqrt.pop %v81
  %v87 = vrsqrt.pop %v82
  %v88 = vrsqrt.pop %v83
  %v89 = vmul.f32 %v49, %v84
  %v90 = vmul.f32 %v50, %v85
  %v91 = vmul.f32 %v51, %v86
  %v92 = vmul.f32 %v52, %v87
  %v93 = vmul.f32 %v53, %v88
  %v94 = vld [vmem:[%s1] sm:$0x1]
  %v96 = vlaneseq
  %v97 = vshrl.u32 %v96, 7
  %v98 = vsub.s32 0, %v97
  %v99 = vrot.slane %v94, %v98
  %v101 = vmul.f32 %v89, %v99
  %v102 = vmul.f32 %v90, %v99
  %v103 = vmul.f32 %v91, %v99
  %v104 = vmul.f32 %v92, %v99
  %v105 = vmul.f32 %v93, %v99
  %v106 = vld [vmem:[%s2] sm:$0x1]
  %v108 = vlaneseq
  %v109 = vshrl.u32 %v108, 7
  %v110 = vsub.s32 0, %v109
  %v111 = vrot.slane %v106, %v110
  %v113 = vadd.f32 %v101, %v111
  %v114 = vadd.f32 %v102, %v111
  %v115 = vadd.f32 %v103, %v111
  %v116 = vadd.f32 %v104, %v111
  %v117 = vadd.f32 %v105, %v111
  %v118 = vpack.c.bf16 %v114, %v113
  %v119 = vpack.c.bf16 %v116, %v115
  %v120 = vpack.c.bf16 %v117, %v117
  %v121 = vld [vmem:[%s3] sm:$0xf]
  %v122 = vld [vmem:[%s3 + $0x4] sm:$0xf]
  %v123 = vld [vmem:[%s3 + $0x8] sm:$0xf]
  %v124 = vld [vmem:[%s3 + $0xc] sm:$0xf]
  %v125 = vld [vmem:[%s4] sm:$0x1]
  %v127 = vlaneseq
  %v128 = vshrl.u32 %v127, 7
  %v129 = vsub.s32 0, %v128
  %v130 = vrot.slane %v125, %v129
  %v136 = vunpack.c.l.b16 %v121
  %v137 = vunpack.c.l.b16 %v122
  %v138 = vunpack.c.l.b16 %v123
  %v139 = vunpack.c.l.b16 %v124
  %v140 = vpack.c.b16 %v137, %v136
  %v141 = vpack.c.b16 %v139, %v138
  %v145 = vsel %vm26, %v118, 0
  %v148 = vsel %vm26, %v119, 0
  %v151 = vsel %vm26, %v120, 0
  %153 = vmatprep.subr.bf16.mxu0 0
  %154 = vmatpush1.bf16.msra.mxu0 %v140
  %155 = vmatprep.subr.bf16.mxu0 0
  %156 = vmatpush1.bf16.msra.mxu0 %v141
  %157 = vmatprep.subr.bf16.mxu0 0
  %158 = vmatpush1.bf16.msra.mxu0 0
  %159 = vmatprep.subr.bf16.mxu0 0
  %160 = vmatpush1.bf16.msra.mxu0 0
  %161 = vmatprep.subr.bf16.mxu0 0
  %162 = vmatpush1.bf16.msra.mxu0 0
  %163 = vmatprep.subr.bf16.mxu0 0
  %164 = vmatpush1.bf16.msra.mxu0 0
  %165 = vmatprep.subr.bf16.mxu0 0
  %166 = vmatpush1.bf16.msra.mxu0 0
  %167 = vmatprep.subr.bf16.mxu0 0
  %168 = vmatpush1.bf16.msra.mxu0 0
  %169 = vmatprep.subr.bf16.mxu0 0
  %170 = vmatpush1.bf16.msra.mxu0 0
  %171 = vmatprep.subr.bf16.mxu0 0
  %172 = vmatpush1.bf16.msra.mxu0 0
  %173 = vmatprep.subr.bf16.mxu0 0
  %174 = vmatpush1.bf16.msra.mxu0 0
  %175 = vmatprep.subr.bf16.mxu0 0
  %176 = vmatpush1.bf16.msra.mxu0 0
  %177 = vmatprep.subr.bf16.mxu0 0
  %178 = vmatpush1.bf16.msra.mxu0 0
  %179 = vmatprep.subr.bf16.mxu0 0
  %180 = vmatpush1.bf16.msra.mxu0 0
  %181 = vmatprep.subr.bf16.mxu0 0
  %182 = vmatpush1.bf16.msra.mxu0 0
  %183 = vmatprep.subr.bf16.mxu0 0
  %184 = vmatpush1.bf16.msra.mxu0 0
  %185 = vmatprep.mubr.bf16.mxu0 0
  %186 = vmatmul.mubr.bf16.gmra.mrb[0].mxu0 %v145
  %v187 = vpop.f32.mrb[0].mxu0
  %v188 = vadd.f32 %v130, %v187
  %v189 = vpop.f32.mrb[0].mxu0
  %v190 = vpop.f32.mrb[0].mxu0
  %v191 = vadd.f32 %v130, %v190
  %v192 = vpop.f32.mrb[0].mxu0
  %193 = vmatprep.mubr.bf16.mxu0 0
  %194 = vmatmul.mubr.bf16.gmra.mrb[0].mxu0 %v148
  %v195 = vpop.f32.mrb[0].mxu0
  %v196 = vadd.f32 %v130, %v195
  %v197 = vpop.f32.mrb[0].mxu0
  %v198 = vpop.f32.mrb[0].mxu0
  %v199 = vadd.f32 %v130, %v198
  %v200 = vpop.f32.mrb[0].mxu0
  %201 = vmatprep.mubr.bf16.mxu0 0
  %202 = vmatmul.mubr.bf16.gmra.mrb[0].mxu0 %v151
  %v203 = vpop.f32.mrb[0].mxu0
  %v204 = vadd.f32 %v130, %v203
  %v205 = vpop.f32.mrb[0].mxu0
  %v206 = vpop.f32.mrb[0].mxu0
  %v207 = vpop.f32.mrb[0].mxu0
  %208 = vdwg.mxu0
  %v209 = vpack.c.bf16 %v191, %v188
  %v210 = vpack.c.bf16 %v199, %v196
  %v211 = vpack.c.bf16 %v204, %v204
  %v215 = vunpack.c.l.b16 %v209
  %v216 = vunpack.c.h.b16 %v209
  %v217 = vunpack.c.l.b16 %v210
  %v218 = vunpack.c.h.b16 %v210
  %v219 = vunpack.c.l.b16 %v211
  %v220 = vpack.c.b16 %v215, %v215
  %v221 = vpack.c.b16 %v216, %v216
  %v222 = vpack.c.b16 %v217, %v217
  %v223 = vpack.c.b16 %v218, %v218
  %v224 = vpack.c.b16 %v219, %v219
  %vm230 = vcmask 781312
  %231 = vst.msk [vmem:[%s5] sm:$0xf] %vm230, %v220
  %232 = vst.msk [vmem:[%s5 + $0x4] sm:$0xf] %vm230, %v221
  %233 = vst.msk [vmem:[%s5 + $0x8] sm:$0xf] %vm230, %v222
  %234 = vst.msk [vmem:[%s5 + $0xc] sm:$0xf] %vm230, %v223
  %vm235 = vcmask 778240
  %236 = vst.msk [vmem:[%s5 + $0x10] sm:$0x1] %vm235, %v224
  // Predicated region
  $region22: #{vitc_forward.13} parent=0 // pred_check
    _
  $region23: #{vitc_forward.13} parent=0 // pred_check_branch
    %238 = sbr.rel (0) target = $region25
  $region24: #{vitc_forward.13} parent=0 // pred_region
    _
  $region25: #{vitc_forward.13} parent=0 // pred_fallthru
    _
  // Predicated region
  $region26: #{vitc_forward.13} parent=0 // pred_check
    _
  $region27: #{vitc_forward.13} parent=0 // pred_check_branch
    %240 = sbr.rel (0) target = $region29
  $region28: #{vitc_forward.13} parent=0 // pred_region
    _
  $region29: #{vitc_forward.13} parent=0 // pred_fallthru
    _

// kernel: vitc_forward.12
$region0: #{vitc_forward.12}
  #allocation0 [shape = 'u32[]', space=smem, size = 0x4, offset = 0x4, fixed_abs, tag = 'smem constant byte address 0x4 - core index']
  #allocation1 [shape = 'u32[144,128]{1,0:T(1,128)}', space=vmem, size = 0x12000, scoped, tag = 'internal scratch']
  %s0 = inlined_call_operand.vmem [shape: f32[32,48], index: 0, kind: input, shape index: {}]
  %s1 = inlined_call_operand.vmem [shape: bf16[48,32], index: 1, kind: input, shape index: {}]
  %s2 = inlined_call_operand.vmem [shape: f32[1,32], index: 2, kind: input, shape index: {}]
  %s3 = inlined_call_operand.vmem [shape: f32[32,32], index: 3, kind: output, shape index: {}]
  %s4 = sld [smem:[#allocation0]]
  $region22: #{vitc_forward.12} parent=0
    _
  %s6 = ssub.s32 1, %s4
  %s7 = scalar_select 0, %s6, %s4
  // Predicated region
  $region2: #{vitc_forward.12} parent=0 // pred_check
    _
  $region3: #{vitc_forward.12} parent=0 // pred_check_branch
    %9 = sbr.rel (0) target = $region5
  $region4: #{vitc_forward.12} parent=0 // pred_region
    _
  $region5: #{vitc_forward.12} parent=0 // pred_fallthru
    _
  // Predicated region
  $region6: #{vitc_forward.12} parent=0 // pred_check
    _
  $region7: #{vitc_forward.12} parent=0 // pred_check_branch
    %11 = sbr.rel (0) target = $region9
  $region8: #{vitc_forward.12} parent=0 // pred_region
    _
  $region9: #{vitc_forward.12} parent=0 // pred_fallthru
    _
  // Predicated region
  $region10: #{vitc_forward.12} parent=0 // pred_check
    _
  $region11: #{vitc_forward.12} parent=0 // pred_check_branch
    %13 = sbr.rel (0) target = $region13
  $region12: #{vitc_forward.12} parent=0 // pred_region
    _
  $region13: #{vitc_forward.12} parent=0 // pred_fallthru
    _
  %v15 = vld [vmem:[%s0] sm:$0xff]
  %v16 = vld [vmem:[%s0 + $0x8] sm:$0xff]
  %v17 = vld [vmem:[%s0 + $0x10] sm:$0xff]
  %v18 = vld [vmem:[%s0 + $0x18] sm:$0xff]
  %v19 = vpack.c.bf16 %v16, %v15
  %v20 = vpack.c.bf16 %v18, %v17
  %v21 = vld [vmem:[%s1] sm:$0xf]
  %v22 = vld [vmem:[%s1 + $0x4] sm:$0xf]
  %v23 = vld [vmem:[%s1 + $0x8] sm:$0xf]
  %v24 = vld [vmem:[%s1 + $0xc] sm:$0xf]
  %v25 = vld [vmem:[%s1 + $0x10] sm:$0xf]
  %v26 = vld [vmem:[%s1 + $0x14] sm:$0xf]
  %v27 = vld [vmem:[%s2] sm:$0x1]
  %v29 = vlaneseq
  %v30 = vshrl.u32 %v29, 7
  %v31 = vsub.s32 0, %v30
  %v32 = vrot.slane %v27, %v31
  %v40 = vunpack.c.l.b16 %v21
  %v41 = vunpack.c.l.b16 %v22
  %v42 = vunpack.c.l.b16 %v23
  %v43 = vunpack.c.l.b16 %v24
  %v44 = vunpack.c.l.b16 %v25
  %v45 = vunpack.c.l.b16 %v26
  %v46 = vpack.c.b16 %v41, %v40
  %v47 = vpack.c.b16 %v43, %v42
  %v48 = vpack.c.b16 %v45, %v44
  %vm52 = vcmask 392192
  %v54 = vsel %vm52, %v19, 0
  %v57 = vsel %vm52, %v20, 0
  %59 = vmatprep.subr.bf16.mxu0 0
  %60 = vmatpush1.bf16.msra.mxu0 %v46
  %61 = vmatprep.subr.bf16.mxu0 0
  %62 = vmatpush1.bf16.msra.mxu0 %v47
  %63 = vmatprep.subr.bf16.mxu0 0
  %64 = vmatpush1.bf16.msra.mxu0 %v48
  %65 = vmatprep.subr.bf16.mxu0 0
  %66 = vmatpush1.bf16.msra.mxu0 0
  %67 = vmatprep.subr.bf16.mxu0 0
  %68 = vmatpush1.bf16.msra.mxu0 0
  %69 = vmatprep.subr.bf16.mxu0 0
  %70 = vmatpush1.bf16.msra.mxu0 0
  %71 = vmatprep.subr.bf16.mxu0 0
  %72 = vmatpush1.bf16.msra.mxu0 0
  %73 = vmatprep.subr.bf16.mxu0 0
  %74 = vmatpush1.bf16.msra.mxu0 0
  %75 = vmatprep.subr.bf16.mxu0 0
  %76 = vmatpush1.bf16.msra.mxu0 0
  %77 = vmatprep.subr.bf16.mxu0 0
  %78 = vmatpush1.bf16.msra.mxu0 0
  %79 = vmatprep.subr.bf16.mxu0 0
  %80 = vmatpush1.bf16.msra.mxu0 0
  %81 = vmatprep.subr.bf16.mxu0 0
  %82 = vmatpush1.bf16.msra.mxu0 0
  %83 = vmatprep.subr.bf16.mxu0 0
  %84 = vmatpush1.bf16.msra.mxu0 0
  %85 = vmatprep.subr.bf16.mxu0 0
  %86 = vmatpush1.bf16.msra.mxu0 0
  %87 = vmatprep.subr.bf16.mxu0 0
  %88 = vmatpush1.bf16.msra.mxu0 0
  %89 = vmatprep.subr.bf16.mxu0 0
  %90 = vmatpush1.bf16.msra.mxu0 0
  %91 = vmatprep.mubr.bf16.mxu0 0
  %92 = vmatmul.mubr.bf16.gmra.mrb[0].mxu0 %v54
  %v93 = vpop.f32.mrb[0].mxu0
  %v94 = vadd.f32 %v32, %v93
  %v95 = vpop.f32.mrb[0].mxu0
  %v96 = vpop.f32.mrb[0].mxu0
  %v97 = vadd.f32 %v32, %v96
  %v98 = vpop.f32.mrb[0].mxu0
  %99 = vmatprep.mubr.bf16.mxu0 0
  %100 = vmatmul.mubr.bf16.gmra.mrb[0].mxu0 %v57
  %v101 = vpop.f32.mrb[0].mxu0
  %v102 = vadd.f32 %v32, %v101
  %v103 = vpop.f32.mrb[0].mxu0
  %v104 = vpop.f32.mrb[0].mxu0
  %v105 = vadd.f32 %v32, %v104
  %v106 = vpop.f32.mrb[0].mxu0
  %107 = vdwg.mxu0
  %vm108 = vcmask 261120
  %109 = vst.msk [vmem:[%s3] sm:$0xff] %vm108, %v94
  %110 = vst.msk [vmem:[%s3 + $0x8] sm:$0xff] %vm108, %v97
  %111 = vst.msk [vmem:[%s3 + $0x10] sm:$0xff] %vm108, %v102
  %112 = vst.msk [vmem:[%s3 + $0x18] sm:$0xff] %vm108, %v105
  // Predicated region
  $region14: #{vitc_forward.12} parent=0 // pred_check
    _
  $region15: #{vitc_forward.12} parent=0 // pred_check_branch
    %114 = sbr.rel (0) target = $region17
  $region16: #{vitc_forward.12} parent=0 // pred_region
    _
  $region17: #{vitc_forward.12} parent=0 // pred_fallthru
    _
  // Predicated region
  $region18: #{vitc_forward.12} parent=0 // pred_check
    _
  $region19: #{vitc_forward.12} parent=0 // pred_check_branch
    %116 = sbr.rel (0) target = $region21
  $region20: #{vitc_forward.12} parent=0 // pred_region
    _
  $region21: #{vitc_forward.12} parent=0 // pred_fallthru
    _

// kernel: vitc_forward.14
$region0: #{vitc_forward.14}
  #allocation0 [shape = 'u32[]', space=smem, size = 0x4, offset = 0x4, fixed_abs, tag = 'smem constant byte address 0x4 - core index']
  #allocation1 [shape = 'u32[144,128]{1,0:T(1,128)}', space=vmem, size = 0x12000, scoped, tag = 'internal scratch']
  %s0 = inlined_call_operand.vmem [shape: bf16[2,17,96], index: 0, kind: input, shape index: {}]
  %s1 = inlined_call_operand.vmem [shape: bf16[2,17,32], index: 1, kind: output, shape index: {}]
  %s2 = sld [smem:[#allocation0]]
  $region14: #{vitc_forward.14} parent=0
    _
  %s4 = ssub.s32 1, %s2
  %s5 = scalar_select 0, %s4, %s2
  // Predicated region
  $region2: #{vitc_forward.14} parent=0 // pred_check
    _
  $region3: #{vitc_forward.14} parent=0 // pred_check_branch
    %7 = sbr.rel (0) target = $region5
  $region4: #{vitc_forward.14} parent=0 // pred_region
    _
  $region5: #{vitc_forward.14} parent=0 // pred_fallthru
    _
  %v9 = vld [vmem:[%s0] sm:$0xf]
  %v10 = vld [vmem:[%s0 + $0x4] sm:$0xf]
  %v11 = vld [vmem:[%s0 + $0x8] sm:$0x1]
  %v12 = vld [vmem:[%s0 + $0xc] sm:$0xf]
  %v13 = vld [vmem:[%s0 + $0x10] sm:$0xf]
  %v14 = vld [vmem:[%s0 + $0x14] sm:$0x1]
  %v15 = vunpack.c.l.bf16 %v9
  %v16 = vunpack.c.l.bf16 %v10
  %v17 = vunpack.c.l.bf16 %v11
  %v18 = vunpack.c.l.bf16 %v12
  %v19 = vunpack.c.l.bf16 %v13
  %v20 = vunpack.c.l.bf16 %v14
  %v21 = vmul.f32 %v15, 0.35355338
  %v22 = vmul.f32 %v16, 0.35355338
  %v23 = vmul.f32 %v17, 0.35355338
  %v24 = vmul.f32 %v18, 0.35355338
  %v25 = vmul.f32 %v19, 0.35355338
  %v26 = vmul.f32 %v20, 0.35355338
  %v27 = vpack.c.bf16 %v22, %v21
  %v28 = vpack.c.bf16 %v23, %v23
  %v29 = vpack.c.bf16 %v25, %v24
  %v30 = vpack.c.bf16 %v26, %v26
  %v34 = vunpack.c.l.b16 %v9
  %v35 = vunpack.c.l.b16 %v10
  %v36 = vunpack.c.l.b16 %v11
  %v37 = vpack.c.b16 %v35, %v34
  %v38 = vpack.c.b16 %v36, %v36
  %39 = vrot.lane.b32.xlu0 %v37, 96
  %v40 = vpop.permute.xlu0 %39
  %41 = vrot.lane.b32.xlu0 %v38, 96
  %v42 = vpop.permute.xlu0 %41
  %vm43 = vcmask 64512
  %v45 = vsel %vm43, %v27, 0
  %v48 = vsel %vm43, %v28, 0
  %v51 = vsel %vm43, %v40, 0
  %v54 = vsel %vm43, %v42, 0
  %56 = vmatprep.subr.bf16.mxu0 0
  %57 = vmatpush1.bf16.xpose.msra.mxu0 %v51
  %58 = vmatprep.subr.bf16.mxu0 0
  %59 = vmatpush1.bf16.xpose.msra.mxu0 %v54
  %60 = vmatprep.subr.bf16.mxu0 0
  %61 = vmatpush1.bf16.xpose.msra.mxu0 0
  %62 = vmatprep.subr.bf16.mxu0 0
  %63 = vmatpush1.bf16.xpose.msra.mxu0 0
  %64 = vmatprep.subr.bf16.mxu0 0
  %65 = vmatpush1.bf16.xpose.msra.mxu0 0
  %66 = vmatprep.subr.bf16.mxu0 0
  %67 = vmatpush1.bf16.xpose.msra.mxu0 0
  %68 = vmatprep.subr.bf16.mxu0 0
  %69 = vmatpush1.bf16.xpose.msra.mxu0 0
  %70 = vmatprep.subr.bf16.mxu0 0
  %71 = vmatpush1.bf16.xpose.msra.mxu0 0
  %72 = vmatprep.subr.bf16.mxu0 0
  %73 = vmatpush1.bf16.xpose.msra.mxu0 0
  %74 = vmatprep.subr.bf16.mxu0 0
  %75 = vmatpush1.bf16.xpose.msra.mxu0 0
  %76 = vmatprep.subr.bf16.mxu0 0
  %77 = vmatpush1.bf16.xpose.msra.mxu0 0
  %78 = vmatprep.subr.bf16.mxu0 0
  %79 = vmatpush1.bf16.xpose.msra.mxu0 0
  %80 = vmatprep.subr.bf16.mxu0 0
  %81 = vmatpush1.bf16.xpose.msra.mxu0 0
  %82 = vmatprep.subr.bf16.mxu0 0
  %83 = vmatpush1.bf16.xpose.msra.mxu0 0
  %84 = vmatprep.subr.bf16.mxu0 0
  %85 = vmatpush1.bf16.xpose.msra.mxu0 0
  %86 = vmatprep.subr.bf16.mxu0 0
  %87 = vmatpush1.bf16.xpose.msra.mxu0 0
  %88 = vmatprep.mubr.bf16.mxu0 0
  %89 = vmatmul.mubr.bf16.gmra.mrb[0].mxu0 %v45
  %v90 = vpop.f32.mrb[0].mxu0
  %v91 = vadd.f32 0.0, %v90
  %v92 = vpop.f32.mrb[0].mxu0
  %v93 = vpop.f32.mrb[0].mxu0
  %v94 = vadd.f32 0.0, %v93
  %v95 = vpop.f32.mrb[0].mxu0
  %96 = vmatprep.mubr.bf16.mxu0 0
  %97 = vmatmul.mubr.bf16.gmra.mrb[0].mxu0 %v48
  %v98 = vpop.f32.mrb[0].mxu0
  %v99 = vadd.f32 0.0, %v98
  %v100 = vpop.f32.mrb[0].mxu0
  %v101 = vpop.f32.mrb[0].mxu0
  %v102 = vpop.f32.mrb[0].mxu0
  %103 = vdwg.mxu0
  %v107 = vunpack.c.l.b16 %v12
  %v108 = vunpack.c.l.b16 %v13
  %v109 = vunpack.c.l.b16 %v14
  %v110 = vpack.c.b16 %v108, %v107
  %v111 = vpack.c.b16 %v109, %v109
  %112 = vrot.lane.b32.xlu0 %v110, 96
  %v113 = vpop.permute.xlu0 %112
  %114 = vrot.lane.b32.xlu0 %v111, 96
  %v115 = vpop.permute.xlu0 %114
  %v117 = vsel %vm43, %v29, 0
  %v120 = vsel %vm43, %v30, 0
  %v123 = vsel %vm43, %v113, 0
  %v126 = vsel %vm43, %v115, 0
  %128 = vmatprep.subr.bf16.mxu0 0
  %129 = vmatpush1.bf16.xpose.msra.mxu0 %v123
  %130 = vmatprep.subr.bf16.mxu0 0
  %131 = vmatpush1.bf16.xpose.msra.mxu0 %v126
  %132 = vmatprep.subr.bf16.mxu0 0
  %133 = vmatpush1.bf16.xpose.msra.mxu0 0
  %134 = vmatprep.subr.bf16.mxu0 0
  %135 = vmatpush1.bf16.xpose.msra.mxu0 0
  %136 = vmatprep.subr.bf16.mxu0 0
  %137 = vmatpush1.bf16.xpose.msra.mxu0 0
  %138 = vmatprep.subr.bf16.mxu0 0
  %139 = vmatpush1.bf16.xpose.msra.mxu0 0
  %140 = vmatprep.subr.bf16.mxu0 0
  %141 = vmatpush1.bf16.xpose.msra.mxu0 0
  %142 = vmatprep.subr.bf16.mxu0 0
  %143 = vmatpush1.bf16.xpose.msra.mxu0 0
  %144 = vmatprep.subr.bf16.mxu0 0
  %145 = vmatpush1.bf16.xpose.msra.mxu0 0
  %146 = vmatprep.subr.bf16.mxu0 0
  %147 = vmatpush1.bf16.xpose.msra.mxu0 0
  %148 = vmatprep.subr.bf16.mxu0 0
  %149 = vmatpush1.bf16.xpose.msra.mxu0 0
  %150 = vmatprep.subr.bf16.mxu0 0
  %151 = vmatpush1.bf16.xpose.msra.mxu0 0
  %152 = vmatprep.subr.bf16.mxu0 0
  %153 = vmatpush1.bf16.xpose.msra.mxu0 0
  %154 = vmatprep.subr.bf16.mxu0 0
  %155 = vmatpush1.bf16.xpose.msra.mxu0 0
  %156 = vmatprep.subr.bf16.mxu0 0
  %157 = vmatpush1.bf16.xpose.msra.mxu0 0
  %158 = vmatprep.subr.bf16.mxu0 0
  %159 = vmatpush1.bf16.xpose.msra.mxu0 0
  %160 = vmatprep.mubr.bf16.mxu0 0
  %161 = vmatmul.mubr.bf16.gmra.mrb[0].mxu0 %v117
  %v162 = vpop.f32.mrb[0].mxu0
  %v163 = vadd.f32 0.0, %v162
  %v164 = vpop.f32.mrb[0].mxu0
  %v165 = vpop.f32.mrb[0].mxu0
  %v166 = vadd.f32 0.0, %v165
  %v167 = vpop.f32.mrb[0].mxu0
  %168 = vmatprep.mubr.bf16.mxu0 0
  %169 = vmatmul.mubr.bf16.gmra.mrb[0].mxu0 %v120
  %v170 = vpop.f32.mrb[0].mxu0
  %v171 = vadd.f32 0.0, %v170
  %v172 = vpop.f32.mrb[0].mxu0
  %v173 = vpop.f32.mrb[0].mxu0
  %v174 = vpop.f32.mrb[0].mxu0
  %175 = vdwg.mxu0
  %vm176 = vcmask 138240
  %v177 = vsel %vm176, %v91, -inf
  %178 = vmax.xlane.f32.xlu0 %v177
  %v179 = vpop.xlane.xlu0 %178
  %v180 = vsel %vm176, %v94, -inf
  %181 = vmax.xlane.f32.xlu0 %v180
  %v182 = vpop.xlane.xlu0 %181
  %vm183 = vcmask 131072
  %v184 = vsel %vm183, %v99, -inf
  %185 = vmax.xlane.f32.xlu0 %v184
  %v186 = vpop.xlane.xlu0 %185
  %v187 = vsel %vm176, %v163, -inf
  %188 = vmax.xlane.f32.xlu0 %v187
  %v189 = vpop.xlane.xlu0 %188
  %v190 = vsel %vm176, %v166, -inf
  %191 = vmax.xlane.f32.xlu0 %v190
  %v192 = vpop.xlane.xlu0 %191
  %v193 = vsel %vm183, %v171, -inf
  %194 = vmax.xlane.f32.xlu0 %v193
  %v195 = vpop.xlane.xlu0 %194
  %v196 = vsub.f32 %v91, %v179
  %v197 = vsub.f32 %v94, %v182
  %v198 = vsub.f32 %v99, %v186
  %v199 = vsub.f32 %v163, %v189
  %v200 = vsub.f32 %v166, %v192
  %v201 = vsub.f32 %v171, %v195
  %v202 = vmul.f32 %v196, 1.442695
  %v203 = vpow.pop %v202
  %v204 = vmul.f32 %v197, 1.442695
  %v205 = vpow.pop %v204
  %v206 = vmul.f32 %v198, 1.442695
  %v207 = vpow.pop %v206
  %v208 = vmul.f32 %v199, 1.442695
  %v209 = vpow.pop %v208
  %v210 = vmul.f32 %v200, 1.442695
  %v211 = vpow.pop %v210
  %v212 = vmul.f32 %v201, 1.442695
  %v213 = vpow.pop %v212
  %v214 = vsel %vm176, %v203, 0.0
  %215 = vadd.xlane.f32.xlu0 %v214
  %v216 = vpop.xlane.xlu0 %215
  %v217 = vsel %vm176, %v205, 0.0
  %218 = vadd.xlane.f32.xlu0 %v217
  %v219 = vpop.xlane.xlu0 %218
  %v220 = vsel %vm183, %v207, 0.0
  %221 = vadd.xlane.f32.xlu0 %v220
  %v222 = vpop.xlane.xlu0 %221
  %v223 = vsel %vm176, %v209, 0.0
  %224 = vadd.xlane.f32.xlu0 %v223
  %v225 = vpop.xlane.xlu0 %224
  %v226 = vsel %vm176, %v211, 0.0
  %227 = vadd.xlane.f32.xlu0 %v226
  %v228 = vpop.xlane.xlu0 %227
  %v229 = vsel %vm183, %v213, 0.0
  %230 = vadd.xlane.f32.xlu0 %v229
  %v231 = vpop.xlane.xlu0 %230
  %v232 = vpack.c.bf16 %v205, %v203
  %v233 = vpack.c.bf16 %v207, %v207
  %v234 = vpack.c.bf16 %v211, %v209
  %v235 = vpack.c.bf16 %v213, %v213
  %236 = vrot.lane.b32.xlu0 %v37, 64
  %v237 = vpop.permute.xlu0 %236
  %238 = vrot.lane.b32.xlu0 %v38, 64
  %v239 = vpop.permute.xlu0 %238
  %v242 = vsel %vm176, %v232, 0
  %v245 = vsel %vm176, %v233, 0
  %vm247 = vcmask 1040384
  %v248 = vsel 0, 4294967295, 65535
  %v249 = vsel %vm247, %v248, 0
  %v251 = vand.u32 %v239, %v249
  %253 = vmatprep.subr.bf16.mxu0 0
  %254 = vmatpush1.bf16.msra.mxu0 %v237
  %255 = vmatprep.subr.bf16.mxu0 0
  %256 = vmatpush1.bf16.msra.mxu0 %v251
  %257 = vmatprep.subr.bf16.mxu0 0
  %258 = vmatpush1.bf16.msra.mxu0 0
  %259 = vmatprep.subr.bf16.mxu0 0
  %260 = vmatpush1.bf16.msra.mxu0 0
  %261 = vmatprep.subr.bf16.mxu0 0
  %262 = vmatpush1.bf16.msra.mxu0 0
  %263 = vmatprep.subr.bf16.mxu0 0
  %264 = vmatpush1.bf16.msra.mxu0 0
  %265 = vmatprep.subr.bf16.mxu0 0
  %266 = vmatpush1.bf16.msra.mxu0 0
  %267 = vmatprep.subr.bf16.mxu0 0
  %268 = vmatpush1.bf16.msra.mxu0 0
  %269 = vmatprep.subr.bf16.mxu0 0
  %270 = vmatpush1.bf16.msra.mxu0 0
  %271 = vmatprep.subr.bf16.mxu0 0
  %272 = vmatpush1.bf16.msra.mxu0 0
  %273 = vmatprep.subr.bf16.mxu0 0
  %274 = vmatpush1.bf16.msra.mxu0 0
  %275 = vmatprep.subr.bf16.mxu0 0
  %276 = vmatpush1.bf16.msra.mxu0 0
  %277 = vmatprep.subr.bf16.mxu0 0
  %278 = vmatpush1.bf16.msra.mxu0 0
  %279 = vmatprep.subr.bf16.mxu0 0
  %280 = vmatpush1.bf16.msra.mxu0 0
  %281 = vmatprep.subr.bf16.mxu0 0
  %282 = vmatpush1.bf16.msra.mxu0 0
  %283 = vmatprep.subr.bf16.mxu0 0
  %284 = vmatpush1.bf16.msra.mxu0 0
  %285 = vmatprep.mubr.bf16.mxu0 0
  %286 = vmatmul.mubr.bf16.gmra.mrb[0].mxu0 %v242
  %v287 = vpop.f32.mrb[0].mxu0
  %v288 = vadd.f32 0.0, %v287
  %v289 = vpop.f32.mrb[0].mxu0
  %v290 = vpop.f32.mrb[0].mxu0
  %v291 = vadd.f32 0.0, %v290
  %v292 = vpop.f32.mrb[0].mxu0
  %293 = vmatprep.mubr.bf16.mxu0 0
  %294 = vmatmul.mubr.bf16.gmra.mrb[0].mxu0 %v245
  %v295 = vpop.f32.mrb[0].mxu0
  %v296 = vadd.f32 0.0, %v295
  %v297 = vpop.f32.mrb[0].mxu0
  %v298 = vpop.f32.mrb[0].mxu0
  %v299 = vpop.f32.mrb[0].mxu0
  %300 = vdwg.mxu0
  %301 = vrot.lane.b32.xlu0 %v110, 64
  %v302 = vpop.permute.xlu0 %301
  %303 = vrot.lane.b32.xlu0 %v111, 64
  %v304 = vpop.permute.xlu0 %303
  %v307 = vsel %vm176, %v234, 0
  %v310 = vsel %vm176, %v235, 0
  %v313 = vand.u32 %v304, %v249
  %315 = vmatprep.subr.bf16.mxu0 0
  %316 = vmatpush1.bf16.msra.mxu0 %v302
  %317 = vmatprep.subr.bf16.mxu0 0
  %318 = vmatpush1.bf16.msra.mxu0 %v313
  %319 = vmatprep.subr.bf16.mxu0 0
  %320 = vmatpush1.bf16.msra.mxu0 0
  %321 = vmatprep.subr.bf16.mxu0 0
  %322 = vmatpush1.bf16.msra.mxu0 0
  %323 = vmatprep.subr.bf16.mxu0 0
  %324 = vmatpush1.bf16.msra.mxu0 0
  %325 = vmatprep.subr.bf16.mxu0 0
  %326 = vmatpush1.bf16.msra.mxu0 0
  %327 = vmatprep.subr.bf16.mxu0 0
  %328 = vmatpush1.bf16.msra.mxu0 0
  %329 = vmatprep.subr.bf16.mxu0 0
  %330 = vmatpush1.bf16.msra.mxu0 0
  %331 = vmatprep.subr.bf16.mxu0 0
  %332 = vmatpush1.bf16.msra.mxu0 0
  %333 = vmatprep.subr.bf16.mxu0 0
  %334 = vmatpush1.bf16.msra.mxu0 0
  %335 = vmatprep.subr.bf16.mxu0 0
  %336 = vmatpush1.bf16.msra.mxu0 0
  %337 = vmatprep.subr.bf16.mxu0 0
  %338 = vmatpush1.bf16.msra.mxu0 0
  %339 = vmatprep.subr.bf16.mxu0 0
  %340 = vmatpush1.bf16.msra.mxu0 0
  %341 = vmatprep.subr.bf16.mxu0 0
  %342 = vmatpush1.bf16.msra.mxu0 0
  %343 = vmatprep.subr.bf16.mxu0 0
  %344 = vmatpush1.bf16.msra.mxu0 0
  %345 = vmatprep.subr.bf16.mxu0 0
  %346 = vmatpush1.bf16.msra.mxu0 0
  %347 = vmatprep.mubr.bf16.mxu0 0
  %348 = vmatmul.mubr.bf16.gmra.mrb[0].mxu0 %v307
  %v349 = vpop.f32.mrb[0].mxu0
  %v350 = vadd.f32 0.0, %v349
  %v351 = vpop.f32.mrb[0].mxu0
  %v352 = vpop.f32.mrb[0].mxu0
  %v353 = vadd.f32 0.0, %v352
  %v354 = vpop.f32.mrb[0].mxu0
  %355 = vmatprep.mubr.bf16.mxu0 0
  %356 = vmatmul.mubr.bf16.gmra.mrb[0].mxu0 %v310
  %v357 = vpop.f32.mrb[0].mxu0
  %v358 = vadd.f32 0.0, %v357
  %v359 = vpop.f32.mrb[0].mxu0
  %v360 = vpop.f32.mrb[0].mxu0
  %v361 = vpop.f32.mrb[0].mxu0
  %362 = vdwg.mxu0
  %v363 = vrcp.pop %v216
  %v364 = vrcp.pop %v219
  %v365 = vrcp.pop %v222
  %v366 = vrcp.pop %v225
  %v367 = vrcp.pop %v228
  %v368 = vrcp.pop %v231
  %v369 = vmul.f32 %v288, %v363
  %v370 = vmul.f32 %v291, %v364
  %v371 = vmul.f32 %v296, %v365
  %v372 = vmul.f32 %v350, %v366
  %v373 = vmul.f32 %v353, %v367
  %v374 = vmul.f32 %v358, %v368
  %v375 = vpack.c.bf16 %v370, %v369
  %v376 = vpack.c.bf16 %v371, %v371
  %v377 = vpack.c.bf16 %v373, %v372
  %v378 = vpack.c.bf16 %v374, %v374
  %v383 = vunpack.c.l.b16 %v375
  %v384 = vunpack.c.h.b16 %v375
  %v385 = vunpack.c.l.b16 %v376
  %v386 = vunpack.c.l.b16 %v377
  %v387 = vunpack.c.h.b16 %v377
  %v388 = vunpack.c.l.b16 %v378
  %v389 = vpack.c.b16 %v383, %v383
  %v390 = vpack.c.b16 %v384, %v384
  %v391 = vpack.c.b16 %v385, %v385
  %v392 = vpack.c.b16 %v386, %v386
  %v393 = vpack.c.b16 %v387, %v387
  %v394 = vpack.c.b16 %v388, %v388
  %vm401 = vcmask 60416
  %402 = vst.msk [vmem:[%s1] sm:$0xf] %vm401, %v389
  %403 = vst.msk [vmem:[%s1 + $0x4] sm:$0xf] %vm401, %v390
  %vm404 = vcmask 57344
  %vm405 = vsmask.f32 256
  %vm406 = vmand %vm404, %vm405
  %v407 = vld [vmem:[%s1 + $0x8] sm:$0x1]
  %v408 = vsel %vm406, %v391, %v407
  %409 = vst [vmem:[%s1 + $0x8] sm:$0x1] %v408
  %410 = vst.msk [vmem:[%s1 + $0xc] sm:$0xf] %vm401, %v392
  %411 = vst.msk [vmem:[%s1 + $0x10] sm:$0xf] %vm401, %v393
  %v412 = vld [vmem:[%s1 + $0x14] sm:$0x1]
  %v413 = vsel %vm406, %v394, %v412
  %414 = vst [vmem:[%s1 + $0x14] sm:$0x1] %v413
  %417 = vrot.lane.b32.xlu0 %v27, 120
  %v418 = vpop.permute.xlu0 %417
  %419 = vrot.lane.b32.xlu0 %v28, 120
  %v420 = vpop.permute.xlu0 %419
  %421 = vrot.lane.b32.xlu0 %v37, 88
  %v422 = vpop.permute.xlu0 %421
  %423 = vrot.lane.b32.xlu0 %v38, 88
  %v424 = vpop.permute.xlu0 %423
  %v426 = vsel %vm43, %v418, 0
  %v429 = vsel %vm43, %v420, 0
  %v432 = vsel %vm43, %v422, 0
  %v435 = vsel %vm43, %v424, 0
  %437 = vmatprep.subr.bf16.mxu0 0
  %438 = vmatpush1.bf16.xpose.msra.mxu0 %v432
  %439 = vmatprep.subr.bf16.mxu0 0
  %440 = vmatpush1.bf16.xpose.msra.mxu0 %v435
  %441 = vmatprep.subr.bf16.mxu0 0
  %442 = vmatpush1.bf16.xpose.msra.mxu0 0
  %443 = vmatprep.subr.bf16.mxu0 0
  %444 = vmatpush1.bf16.xpose.msra.mxu0 0
  %445 = vmatprep.subr.bf16.mxu0 0
  %446 = vmatpush1.bf16.xpose.msra.mxu0 0
  %447 = vmatprep.subr.bf16.mxu0 0
  %448 = vmatpush1.bf16.xpose.msra.mxu0 0
  %449 = vmatprep.subr.bf16.mxu0 0
  %450 = vmatpush1.bf16.xpose.msra.mxu0 0
  %451 = vmatprep.subr.bf16.mxu0 0
  %452 = vmatpush1.bf16.xpose.msra.mxu0 0
  %453 = vmatprep.subr.bf16.mxu0 0
  %454 = vmatpush1.bf16.xpose.msra.mxu0 0
  %455 = vmatprep.subr.bf16.mxu0 0
  %456 = vmatpush1.bf16.xpose.msra.mxu0 0
  %457 = vmatprep.subr.bf16.mxu0 0
  %458 = vmatpush1.bf16.xpose.msra.mxu0 0
  %459 = vmatprep.subr.bf16.mxu0 0
  %460 = vmatpush1.bf16.xpose.msra.mxu0 0
  %461 = vmatprep.subr.bf16.mxu0 0
  %462 = vmatpush1.bf16.xpose.msra.mxu0 0
  %463 = vmatprep.subr.bf16.mxu0 0
  %464 = vmatpush1.bf16.xpose.msra.mxu0 0
  %465 = vmatprep.subr.bf16.mxu0 0
  %466 = vmatpush1.bf16.xpose.msra.mxu0 0
  %467 = vmatprep.subr.bf16.mxu0 0
  %468 = vmatpush1.bf16.xpose.msra.mxu0 0
  %469 = vmatprep.mubr.bf16.mxu0 0
  %470 = vmatmul.mubr.bf16.gmra.mrb[0].mxu0 %v426
  %v471 = vpop.f32.mrb[0].mxu0
  %v472 = vadd.f32 0.0, %v471
  %v473 = vpop.f32.mrb[0].mxu0
  %v474 = vpop.f32.mrb[0].mxu0
  %v475 = vadd.f32 0.0, %v474
  %v476 = vpop.f32.mrb[0].mxu0
  %477 = vmatprep.mubr.bf16.mxu0 0
  %478 = vmatmul.mubr.bf16.gmra.mrb[0].mxu0 %v429
  %v479 = vpop.f32.mrb[0].mxu0
  %v480 = vadd.f32 0.0, %v479
  %v481 = vpop.f32.mrb[0].mxu0
  %v482 = vpop.f32.mrb[0].mxu0
  %v483 = vpop.f32.mrb[0].mxu0
  %484 = vdwg.mxu0
  %487 = vrot.lane.b32.xlu0 %v29, 120
  %v488 = vpop.permute.xlu0 %487
  %489 = vrot.lane.b32.xlu0 %v30, 120
  %v490 = vpop.permute.xlu0 %489
  %491 = vrot.lane.b32.xlu0 %v110, 88
  %v492 = vpop.permute.xlu0 %491
  %493 = vrot.lane.b32.xlu0 %v111, 88
  %v494 = vpop.permute.xlu0 %493
  %v496 = vsel %vm43, %v488, 0
  %v499 = vsel %vm43, %v490, 0
  %v502 = vsel %vm43, %v492, 0
  %v505 = vsel %vm43, %v494, 0
  %507 = vmatprep.subr.bf16.mxu0 0
  %508 = vmatpush1.bf16.xpose.msra.mxu0 %v502
  %509 = vmatprep.subr.bf16.mxu0 0
  %510 = vmatpush1.bf16.xpose.msra.mxu0 %v505
  %511 = vmatprep.subr.bf16.mxu0 0
  %512 = vmatpush1.bf16.xpose.msra.mxu0 0
  %513 = vmatprep.subr.bf16.mxu0 0
  %514 = vmatpush1.bf16.xpose.msra.mxu0 0
  %515 = vmatprep.subr.bf16.mxu0 0
  %516 = vmatpush1.bf16.xpose.msra.mxu0 0
  %517 = vmatprep.subr.bf16.mxu0 0
  %518 = vmatpush1.bf16.xpose.msra.mxu0 0
  %519 = vmatprep.subr.bf16.mxu0 0
  %520 = vmatpush1.bf16.xpose.msra.mxu0 0
  %521 = vmatprep.subr.bf16.mxu0 0
  %522 = vmatpush1.bf16.xpose.msra.mxu0 0
  %523 = vmatprep.subr.bf16.mxu0 0
  %524 = vmatpush1.bf16.xpose.msra.mxu0 0
  %525 = vmatprep.subr.bf16.mxu0 0
  %526 = vmatpush1.bf16.xpose.msra.mxu0 0
  %527 = vmatprep.subr.bf16.mxu0 0
  %528 = vmatpush1.bf16.xpose.msra.mxu0 0
  %529 = vmatprep.subr.bf16.mxu0 0
  %530 = vmatpush1.bf16.xpose.msra.mxu0 0
  %531 = vmatprep.subr.bf16.mxu0 0
  %532 = vmatpush1.bf16.xpose.msra.mxu0 0
  %533 = vmatprep.subr.bf16.mxu0 0
  %534 = vmatpush1.bf16.xpose.msra.mxu0 0
  %535 = vmatprep.subr.bf16.mxu0 0
  %536 = vmatpush1.bf16.xpose.msra.mxu0 0
  %537 = vmatprep.subr.bf16.mxu0 0
  %538 = vmatpush1.bf16.xpose.msra.mxu0 0
  %539 = vmatprep.mubr.bf16.mxu0 0
  %540 = vmatmul.mubr.bf16.gmra.mrb[0].mxu0 %v496
  %v541 = vpop.f32.mrb[0].mxu0
  %v542 = vadd.f32 0.0, %v541
  %v543 = vpop.f32.mrb[0].mxu0
  %v544 = vpop.f32.mrb[0].mxu0
  %v545 = vadd.f32 0.0, %v544
  %v546 = vpop.f32.mrb[0].mxu0
  %547 = vmatprep.mubr.bf16.mxu0 0
  %548 = vmatmul.mubr.bf16.gmra.mrb[0].mxu0 %v499
  %v549 = vpop.f32.mrb[0].mxu0
  %v550 = vadd.f32 0.0, %v549
  %v551 = vpop.f32.mrb[0].mxu0
  %v552 = vpop.f32.mrb[0].mxu0
  %v553 = vpop.f32.mrb[0].mxu0
  %554 = vdwg.mxu0
  %v555 = vsel %vm176, %v472, -inf
  %556 = vmax.xlane.f32.xlu0 %v555
  %v557 = vpop.xlane.xlu0 %556
  %v558 = vsel %vm176, %v475, -inf
  %559 = vmax.xlane.f32.xlu0 %v558
  %v560 = vpop.xlane.xlu0 %559
  %v561 = vsel %vm183, %v480, -inf
  %562 = vmax.xlane.f32.xlu0 %v561
  %v563 = vpop.xlane.xlu0 %562
  %v564 = vsel %vm176, %v542, -inf
  %565 = vmax.xlane.f32.xlu0 %v564
  %v566 = vpop.xlane.xlu0 %565
  %v567 = vsel %vm176, %v545, -inf
  %568 = vmax.xlane.f32.xlu0 %v567
  %v569 = vpop.xlane.xlu0 %568
  %v570 = vsel %vm183, %v550, -inf
  %571 = vmax.xlane.f32.xlu0 %v570
  %v572 = vpop.xlane.xlu0 %571
  %v573 = vsub.f32 %v472, %v557
  %v574 = vsub.f32 %v475, %v560
  %v575 = vsub.f32 %v480, %v563
  %v576 = vsub.f32 %v542, %v566
  %v577 = vsub.f32 %v545, %v569
  %v578 = vsub.f32 %v550, %v572
  %v579 = vmul.f32 %v573, 1.442695
  %v580 = vpow.pop %v579
  %v581 = vmul.f32 %v574, 1.442695
  %v582 = vpow.pop %v581
  %v583 = vmul.f32 %v575, 1.442695
  %v584 = vpow.pop %v583
  %v585 = vmul.f32 %v576, 1.442695
  %v586 = vpow.pop %v585
  %v587 = vmul.f32 %v577, 1.442695
  %v588 = vpow.pop %v587
  %v589 = vmul.f32 %v578, 1.442695
  %v590 = vpow.pop %v589
  %v591 = vsel %vm176, %v580, 0.0
  %592 = vadd.xlane.f32.xlu0 %v591
  %v593 = vpop.xlane.xlu0 %592
  %v594 = vsel %vm176, %v582, 0.0
  %595 = vadd.xlane.f32.xlu0 %v594
  %v596 = vpop.xlane.xlu0 %595
  %v597 = vsel %vm183, %v584, 0.0
  %598 = vadd.xlane.f32.xlu0 %v597
  %v599 = vpop.xlane.xlu0 %598
  %v600 = vsel %vm176, %v586, 0.0
  %601 = vadd.xlane.f32.xlu0 %v600
  %v602 = vpop.xlane.xlu0 %601
  %v603 = vsel %vm176, %v588, 0.0
  %604 = vadd.xlane.f32.xlu0 %v603
  %v605 = vpop.xlane.xlu0 %604
  %v606 = vsel %vm183, %v590, 0.0
  %607 = vadd.xlane.f32.xlu0 %v606
  %v608 = vpop.xlane.xlu0 %607
  %v609 = vpack.c.bf16 %v582, %v580
  %v610 = vpack.c.bf16 %v584, %v584
  %v611 = vpack.c.bf16 %v588, %v586
  %v612 = vpack.c.bf16 %v590, %v590
  %613 = vrot.lane.b32.xlu0 %v37, 56
  %v614 = vpop.permute.xlu0 %613
  %615 = vrot.lane.b32.xlu0 %v38, 56
  %v616 = vpop.permute.xlu0 %615
  %v619 = vsel %vm176, %v609, 0
  %v622 = vsel %vm176, %v610, 0
  %v625 = vand.u32 %v616, %v249
  %627 = vmatprep.subr.bf16.mxu0 0
  %628 = vmatpush1.bf16.msra.mxu0 %v614
  %629 = vmatprep.subr.bf16.mxu0 0
  %630 = vmatpush1.bf16.msra.mxu0 %v625
  %631 = vmatprep.subr.bf16.mxu0 0
  %632 = vmatpush1.bf16.msra.mxu0 0
  %633 = vmatprep.subr.bf16.mxu0 0
  %634 = vmatpush1.bf16.msra.mxu0 0
  %635 = vmatprep.subr.bf16.mxu0 0
  %636 = vmatpush1.bf16.msra.mxu0 0
  %637 = vmatprep.subr.bf16.mxu0 0
  %638 = vmatpush1.bf16.msra.mxu0 0
  %639 = vmatprep.subr.bf16.mxu0 0
  %640 = vmatpush1.bf16.msra.mxu0 0
  %641 = vmatprep.subr.bf16.mxu0 0
  %642 = vmatpush1.bf16.msra.mxu0 0
  %643 = vmatprep.subr.bf16.mxu0 0
  %644 = vmatpush1.bf16.msra.mxu0 0
  %645 = vmatprep.subr.bf16.mxu0 0
  %646 = vmatpush1.bf16.msra.mxu0 0
  %647 = vmatprep.subr.bf16.mxu0 0
  %648 = vmatpush1.bf16.msra.mxu0 0
  %649 = vmatprep.subr.bf16.mxu0 0
  %650 = vmatpush1.bf16.msra.mxu0 0
  %651 = vmatprep.subr.bf16.mxu0 0
  %652 = vmatpush1.bf16.msra.mxu0 0
  %653 = vmatprep.subr.bf16.mxu0 0
  %654 = vmatpush1.bf16.msra.mxu0 0
  %655 = vmatprep.subr.bf16.mxu0 0
  %656 = vmatpush1.bf16.msra.mxu0 0
  %657 = vmatprep.subr.bf16.mxu0 0
  %658 = vmatpush1.bf16.msra.mxu0 0
  %659 = vmatprep.mubr.bf16.mxu0 0
  %660 = vmatmul.mubr.bf16.gmra.mrb[0].mxu0 %v619
  %v661 = vpop.f32.mrb[0].mxu0
  %v662 = vadd.f32 0.0, %v661
  %v663 = vpop.f32.mrb[0].mxu0
  %v664 = vpop.f32.mrb[0].mxu0
  %v665 = vadd.f32 0.0, %v664
  %v666 = vpop.f32.mrb[0].mxu0
  %667 = vmatprep.mubr.bf16.mxu0 0
  %668 = vmatmul.mubr.bf16.gmra.mrb[0].mxu0 %v622
  %v669 = vpop.f32.mrb[0].mxu0
  %v670 = vadd.f32 0.0, %v669
  %v671 = vpop.f32.mrb[0].mxu0
  %v672 = vpop.f32.mrb[0].mxu0
  %v673 = vpop.f32.mrb[0].mxu0
  %674 = vdwg.mxu0
  %675 = vrot.lane.b32.xlu0 %v110, 56
  %v676 = vpop.permute.xlu0 %675
  %677 = vrot.lane.b32.xlu0 %v111, 56
  %v678 = vpop.permute.xlu0 %677
  %v681 = vsel %vm176, %v611, 0
  %v684 = vsel %vm176, %v612, 0
  %v687 = vand.u32 %v678, %v249
  %689 = vmatprep.subr.bf16.mxu0 0
  %690 = vmatpush1.bf16.msra.mxu0 %v676
  %691 = vmatprep.subr.bf16.mxu0 0
  %692 = vmatpush1.bf16.msra.mxu0 %v687
  %693 = vmatprep.subr.bf16.mxu0 0
  %694 = vmatpush1.bf16.msra.mxu0 0
  %695 = vmatprep.subr.bf16.mxu0 0
  %696 = vmatpush1.bf16.msra.mxu0 0
  %697 = vmatprep.subr.bf16.mxu0 0
  %698 = vmatpush1.bf16.msra.mxu0 0
  %699 = vmatprep.subr.bf16.mxu0 0
  %700 = vmatpush1.bf16.msra.mxu0 0
  %701 = vmatprep.subr.bf16.mxu0 0
  %702 = vmatpush1.bf16.msra.mxu0 0
  %703 = vmatprep.subr.bf16.mxu0 0
  %704 = vmatpush1.bf16.msra.mxu0 0
  %705 = vmatprep.subr.bf16.mxu0 0
  %706 = vmatpush1.bf16.msra.mxu0 0
  %707 = vmatprep.subr.bf16.mxu0 0
  %708 = vmatpush1.bf16.msra.mxu0 0
  %709 = vmatprep.subr.bf16.mxu0 0
  %710 = vmatpush1.bf16.msra.mxu0 0
  %711 = vmatprep.subr.bf16.mxu0 0
  %712 = vmatpush1.bf16.msra.mxu0 0
  %713 = vmatprep.subr.bf16.mxu0 0
  %714 = vmatpush1.bf16.msra.mxu0 0
  %715 = vmatprep.subr.bf16.mxu0 0
  %716 = vmatpush1.bf16.msra.mxu0 0
  %717 = vmatprep.subr.bf16.mxu0 0
  %718 = vmatpush1.bf16.msra.mxu0 0
  %719 = vmatprep.subr.bf16.mxu0 0
  %720 = vmatpush1.bf16.msra.mxu0 0
  %721 = vmatprep.mubr.bf16.mxu0 0
  %722 = vmatmul.mubr.bf16.gmra.mrb[0].mxu0 %v681
  %v723 = vpop.f32.mrb[0].mxu0
  %v724 = vadd.f32 0.0, %v723
  %v725 = vpop.f32.mrb[0].mxu0
  %v726 = vpop.f32.mrb[0].mxu0
  %v727 = vadd.f32 0.0, %v726
  %v728 = vpop.f32.mrb[0].mxu0
  %729 = vmatprep.mubr.bf16.mxu0 0
  %730 = vmatmul.mubr.bf16.gmra.mrb[0].mxu0 %v684
  %v731 = vpop.f32.mrb[0].mxu0
  %v732 = vadd.f32 0.0, %v731
  %v733 = vpop.f32.mrb[0].mxu0
  %v734 = vpop.f32.mrb[0].mxu0
  %v735 = vpop.f32.mrb[0].mxu0
  %736 = vdwg.mxu0
  %v737 = vrcp.pop %v593
  %v738 = vrcp.pop %v596
  %v739 = vrcp.pop %v599
  %v740 = vrcp.pop %v602
  %v741 = vrcp.pop %v605
  %v742 = vrcp.pop %v608
  %v743 = vmul.f32 %v662, %v737
  %v744 = vmul.f32 %v665, %v738
  %v745 = vmul.f32 %v670, %v739
  %v746 = vmul.f32 %v724, %v740
  %v747 = vmul.f32 %v727, %v741
  %v748 = vmul.f32 %v732, %v742
  %v749 = vpack.c.bf16 %v744, %v743
  %v750 = vpack.c.bf16 %v745, %v745
  %v751 = vpack.c.bf16 %v747, %v746
  %v752 = vpack.c.bf16 %v748, %v748
  %v757 = vunpack.c.l.b16 %v749
  %v758 = vunpack.c.h.b16 %v749
  %v759 = vunpack.c.l.b16 %v750
  %v760 = vunpack.c.l.b16 %v751
  %v761 = vunpack.c.h.b16 %v751
  %v762 = vunpack.c.l.b16 %v752
  %v763 = vpack.c.b16 %v757, %v757
  %v764 = vpack.c.b16 %v758, %v758
  %v765 = vpack.c.b16 %v759, %v759
  %v766 = vpack.c.b16 %v760, %v760
  %v767 = vpack.c.b16 %v761, %v761
  %v768 = vpack.c.b16 %v762, %v762
  %769 = vrot.lane.b32.xlu0 %v763, 8
  %v770 = vpop.permute.xlu0 %769
  %771 = vrot.lane.b32.xlu0 %v764, 8
  %v772 = vpop.permute.xlu0 %771
  %773 = vrot.lane.b32.xlu0 %v765, 8
  %v774 = vpop.permute.xlu0 %773
  %775 = vrot.lane.b32.xlu0 %v766, 8
  %v776 = vpop.permute.xlu0 %775
  %777 = vrot.lane.b32.xlu0 %v767, 8
  %v778 = vpop.permute.xlu0 %777
  %779 = vrot.lane.b32.xlu0 %v768, 8
  %v780 = vpop.permute.xlu0 %779
  %vm787 = vcmask 126016
  %788 = vst.msk [vmem:[%s1] sm:$0xf] %vm787, %v770
  %789 = vst.msk [vmem:[%s1 + $0x4] sm:$0xf] %vm787, %v772
  %vm790 = vcmask 122944
  %vm791 = vmand %vm790, %vm405
  %v792 = vld [vmem:[%s1 + $0x8] sm:$0x1]
  %v793 = vsel %vm791, %v774, %v792
  %794 = vst [vmem:[%s1 + $0x8] sm:$0x1] %v793
  %795 = vst.msk [vmem:[%s1 + $0xc] sm:$0xf] %vm787, %v776
  %796 = vst.msk [vmem:[%s1 + $0x10] sm:$0xf] %vm787, %v778
  %v797 = vld [vmem:[%s1 + $0x14] sm:$0x1]
  %v798 = vsel %vm791, %v780, %v797
  %799 = vst [vmem:[%s1 + $0x14] sm:$0x1] %v798
  %800 = vrot.lane.b32.xlu0 %v27, 112
  %v801 = vpop.permute.xlu0 %800
  %802 = vrot.lane.b32.xlu0 %v28, 112
  %v803 = vpop.permute.xlu0 %802
  %804 = vrot.lane.b32.xlu0 %v37, 80
  %v805 = vpop.permute.xlu0 %804
  %806 = vrot.lane.b32.xlu0 %v38, 80
  %v807 = vpop.permute.xlu0 %806
  %v809 = vsel %vm43, %v801, 0
  %v812 = vsel %vm43, %v803, 0
  %v815 = vsel %vm43, %v805, 0
  %v818 = vsel %vm43, %v807, 0
  %820 = vmatprep.subr.bf16.mxu0 0
  %821 = vmatpush1.bf16.xpose.msra.mxu0 %v815
  %822 = vmatprep.subr.bf16.mxu0 0
  %823 = vmatpush1.bf16.xpose.msra.mxu0 %v818
  %824 = vmatprep.subr.bf16.mxu0 0
  %825 = vmatpush1.bf16.xpose.msra.mxu0 0
  %826 = vmatprep.subr.bf16.mxu0 0
  %827 = vmatpush1.bf16.xpose.msra.mxu0 0
  %828 = vmatprep.subr.bf16.mxu0 0
  %829 = vmatpush1.bf16.xpose.msra.mxu0 0
  %830 = vmatprep.subr.bf16.mxu0 0
  %831 = vmatpush1.bf16.xpose.msra.mxu0 0
  %832 = vmatprep.subr.bf16.mxu0 0
  %833 = vmatpush1.bf16.xpose.msra.mxu0 0
  %834 = vmatprep.subr.bf16.mxu0 0
  %835 = vmatpush1.bf16.xpose.msra.mxu0 0
  %836 = vmatprep.subr.bf16.mxu0 0
  %837 = vmatpush1.bf16.xpose.msra.mxu0 0
  %838 = vmatprep.subr.bf16.mxu0 0
  %839 = vmatpush1.bf16.xpose.msra.mxu0 0
  %840 = vmatprep.subr.bf16.mxu0 0
  %841 = vmatpush1.bf16.xpose.msra.mxu0 0
  %842 = vmatprep.subr.bf16.mxu0 0
  %843 = vmatpush1.bf16.xpose.msra.mxu0 0
  %844 = vmatprep.subr.bf16.mxu0 0
  %845 = vmatpush1.bf16.xpose.msra.mxu0 0
  %846 = vmatprep.subr.bf16.mxu0 0
  %847 = vmatpush1.bf16.xpose.msra.mxu0 0
  %848 = vmatprep.subr.bf16.mxu0 0
  %849 = vmatpush1.bf16.xpose.msra.mxu0 0
  %850 = vmatprep.subr.bf16.mxu0 0
  %851 = vmatpush1.bf16.xpose.msra.mxu0 0
  %852 = vmatprep.mubr.bf16.mxu0 0
  %853 = vmatmul.mubr.bf16.gmra.mrb[0].mxu0 %v809
  %v854 = vpop.f32.mrb[0].mxu0
  %v855 = vadd.f32 0.0, %v854
  %v856 = vpop.f32.mrb[0].mxu0
  %v857 = vpop.f32.mrb[0].mxu0
  %v858 = vadd.f32 0.0, %v857
  %v859 = vpop.f32.mrb[0].mxu0
  %860 = vmatprep.mubr.bf16.mxu0 0
  %861 = vmatmul.mubr.bf16.gmra.mrb[0].mxu0 %v812
  %v862 = vpop.f32.mrb[0].mxu0
  %v863 = vadd.f32 0.0, %v862
  %v864 = vpop.f32.mrb[0].mxu0
  %v865 = vpop.f32.mrb[0].mxu0
  %v866 = vpop.f32.mrb[0].mxu0
  %867 = vdwg.mxu0
  %868 = vrot.lane.b32.xlu0 %v29, 112
  %v869 = vpop.permute.xlu0 %868
  %870 = vrot.lane.b32.xlu0 %v30, 112
  %v871 = vpop.permute.xlu0 %870
  %872 = vrot.lane.b32.xlu0 %v110, 80
  %v873 = vpop.permute.xlu0 %872
  %874 = vrot.lane.b32.xlu0 %v111, 80
  %v875 = vpop.permute.xlu0 %874
  %v877 = vsel %vm43, %v869, 0
  %v880 = vsel %vm43, %v871, 0
  %v883 = vsel %vm43, %v873, 0
  %v886 = vsel %vm43, %v875, 0
  %888 = vmatprep.subr.bf16.mxu0 0
  %889 = vmatpush1.bf16.xpose.msra.mxu0 %v883
  %890 = vmatprep.subr.bf16.mxu0 0
  %891 = vmatpush1.bf16.xpose.msra.mxu0 %v886
  %892 = vmatprep.subr.bf16.mxu0 0
  %893 = vmatpush1.bf16.xpose.msra.mxu0 0
  %894 = vmatprep.subr.bf16.mxu0 0
  %895 = vmatpush1.bf16.xpose.msra.mxu0 0
  %896 = vmatprep.subr.bf16.mxu0 0
  %897 = vmatpush1.bf16.xpose.msra.mxu0 0
  %898 = vmatprep.subr.bf16.mxu0 0
  %899 = vmatpush1.bf16.xpose.msra.mxu0 0
  %900 = vmatprep.subr.bf16.mxu0 0
  %901 = vmatpush1.bf16.xpose.msra.mxu0 0
  %902 = vmatprep.subr.bf16.mxu0 0
  %903 = vmatpush1.bf16.xpose.msra.mxu0 0
  %904 = vmatprep.subr.bf16.mxu0 0
  %905 = vmatpush1.bf16.xpose.msra.mxu0 0
  %906 = vmatprep.subr.bf16.mxu0 0
  %907 = vmatpush1.bf16.xpose.msra.mxu0 0
  %908 = vmatprep.subr.bf16.mxu0 0
  %909 = vmatpush1.bf16.xpose.msra.mxu0 0
  %910 = vmatprep.subr.bf16.mxu0 0
  %911 = vmatpush1.bf16.xpose.msra.mxu0 0
  %912 = vmatprep.subr.bf16.mxu0 0
  %913 = vmatpush1.bf16.xpose.msra.mxu0 0
  %914 = vmatprep.subr.bf16.mxu0 0
  %915 = vmatpush1.bf16.xpose.msra.mxu0 0
  %916 = vmatprep.subr.bf16.mxu0 0
  %917 = vmatpush1.bf16.xpose.msra.mxu0 0
  %918 = vmatprep.subr.bf16.mxu0 0
  %919 = vmatpush1.bf16.xpose.msra.mxu0 0
  %920 = vmatprep.mubr.bf16.mxu0 0
  %921 = vmatmul.mubr.bf16.gmra.mrb[0].mxu0 %v877
  %v922 = vpop.f32.mrb[0].mxu0
  %v923 = vadd.f32 0.0, %v922
  %v924 = vpop.f32.mrb[0].mxu0
  %v925 = vpop.f32.mrb[0].mxu0
  %v926 = vadd.f32 0.0, %v925
  %v927 = vpop.f32.mrb[0].mxu0
  %928 = vmatprep.mubr.bf16.mxu0 0
  %929 = vmatmul.mubr.bf16.gmra.mrb[0].mxu0 %v880
  %v930 = vpop.f32.mrb[0].mxu0
  %v931 = vadd.f32 0.0, %v930
  %v932 = vpop.f32.mrb[0].mxu0
  %v933 = vpop.f32.mrb[0].mxu0
  %v934 = vpop.f32.mrb[0].mxu0
  %935 = vdwg.mxu0
  %v936 = vsel %vm176, %v855, -inf
  %937 = vmax.xlane.f32.xlu0 %v936
  %v938 = vpop.xlane.xlu0 %937
  %v939 = vsel %vm176, %v858, -inf
  %940 = vmax.xlane.f32.xlu0 %v939
  %v941 = vpop.xlane.xlu0 %940
  %v942 = vsel %vm183, %v863, -inf
  %943 = vmax.xlane.f32.xlu0 %v942
  %v944 = vpop.xlane.xlu0 %943
  %v945 = vsel %vm176, %v923, -inf
  %946 = vmax.xlane.f32.xlu0 %v945
  %v947 = vpop.xlane.xlu0 %946
  %v948 = vsel %vm176, %v926, -inf
  %949 = vmax.xlane.f32.xlu0 %v948
  %v950 = vpop.xlane.xlu0 %949
  %v951 = vsel %vm183, %v931, -inf
  %952 = vmax.xlane.f32.xlu0 %v951
  %v953 = vpop.xlane.xlu0 %952
  %v954 = vsub.f32 %v855, %v938
  %v955 = vsub.f32 %v858, %v941
  %v956 = vsub.f32 %v863, %v944
  %v957 = vsub.f32 %v923, %v947
  %v958 = vsub.f32 %v926, %v950
  %v959 = vsub.f32 %v931, %v953
  %v960 = vmul.f32 %v954, 1.442695
  %v961 = vpow.pop %v960
  %v962 = vmul.f32 %v955, 1.442695
  %v963 = vpow.pop %v962
  %v964 = vmul.f32 %v956, 1.442695
  %v965 = vpow.pop %v964
  %v966 = vmul.f32 %v957, 1.442695
  %v967 = vpow.pop %v966
  %v968 = vmul.f32 %v958, 1.442695
  %v969 = vpow.pop %v968
  %v970 = vmul.f32 %v959, 1.442695
  %v971 = vpow.pop %v970
  %v972 = vsel %vm176, %v961, 0.0
  %973 = vadd.xlane.f32.xlu0 %v972
  %v974 = vpop.xlane.xlu0 %973
  %v975 = vsel %vm176, %v963, 0.0
  %976 = vadd.xlane.f32.xlu0 %v975
  %v977 = vpop.xlane.xlu0 %976
  %v978 = vsel %vm183, %v965, 0.0
  %979 = vadd.xlane.f32.xlu0 %v978
  %v980 = vpop.xlane.xlu0 %979
  %v981 = vsel %vm176, %v967, 0.0
  %982 = vadd.xlane.f32.xlu0 %v981
  %v983 = vpop.xlane.xlu0 %982
  %v984 = vsel %vm176, %v969, 0.0
  %985 = vadd.xlane.f32.xlu0 %v984
  %v986 = vpop.xlane.xlu0 %985
  %v987 = vsel %vm183, %v971, 0.0
  %988 = vadd.xlane.f32.xlu0 %v987
  %v989 = vpop.xlane.xlu0 %988
  %v990 = vpack.c.bf16 %v963, %v961
  %v991 = vpack.c.bf16 %v965, %v965
  %v992 = vpack.c.bf16 %v969, %v967
  %v993 = vpack.c.bf16 %v971, %v971
  %994 = vrot.lane.b32.xlu0 %v37, 48
  %v995 = vpop.permute.xlu0 %994
  %996 = vrot.lane.b32.xlu0 %v38, 48
  %v997 = vpop.permute.xlu0 %996
  %v1000 = vsel %vm176, %v990, 0
  %v1003 = vsel %vm176, %v991, 0
  %v1006 = vand.u32 %v997, %v249
  %1008 = vmatprep.subr.bf16.mxu0 0
  %1009 = vmatpush1.bf16.msra.mxu0 %v995
  %1010 = vmatprep.subr.bf16.mxu0 0
  %1011 = vmatpush1.bf16.msra.mxu0 %v1006
  %1012 = vmatprep.subr.bf16.mxu0 0
  %1013 = vmatpush1.bf16.msra.mxu0 0
  %1014 = vmatprep.subr.bf16.mxu0 0
  %1015 = vmatpush1.bf16.msra.mxu0 0
  %1016 = vmatprep.subr.bf16.mxu0 0
  %1017 = vmatpush1.bf16.msra.mxu0 0
  %1018 = vmatprep.subr.bf16.mxu0 0
  %1019 = vmatpush1.bf16.msra.mxu0 0
  %1020 = vmatprep.subr.bf16.mxu0 0
  %1021 = vmatpush1.bf16.msra.mxu0 0
  %1022 = vmatprep.subr.bf16.mxu0 0
  %1023 = vmatpush1.bf16.msra.mxu0 0
  %1024 = vmatprep.subr.bf16.mxu0 0
  %1025 = vmatpush1.bf16.msra.mxu0 0
  %1026 = vmatprep.subr.bf16.mxu0 0
  %1027 = vmatpush1.bf16.msra.mxu0 0
  %1028 = vmatprep.subr.bf16.mxu0 0
  %1029 = vmatpush1.bf16.msra.mxu0 0
  %1030 = vmatprep.subr.bf16.mxu0 0
  %1031 = vmatpush1.bf16.msra.mxu0 0
  %1032 = vmatprep.subr.bf16.mxu0 0
  %1033 = vmatpush1.bf16.msra.mxu0 0
  %1034 = vmatprep.subr.bf16.mxu0 0
  %1035 = vmatpush1.bf16.msra.mxu0 0
  %1036 = vmatprep.subr.bf16.mxu0 0
  %1037 = vmatpush1.bf16.msra.mxu0 0
  %1038 = vmatprep.subr.bf16.mxu0 0
  %1039 = vmatpush1.bf16.msra.mxu0 0
  %1040 = vmatprep.mubr.bf16.mxu0 0
  %1041 = vmatmul.mubr.bf16.gmra.mrb[0].mxu0 %v1000
  %v1042 = vpop.f32.mrb[0].mxu0
  %v1043 = vadd.f32 0.0, %v1042
  %v1044 = vpop.f32.mrb[0].mxu0
  %v1045 = vpop.f32.mrb[0].mxu0
  %v1046 = vadd.f32 0.0, %v1045
  %v1047 = vpop.f32.mrb[0].mxu0
  %1048 = vmatprep.mubr.bf16.mxu0 0
  %1049 = vmatmul.mubr.bf16.gmra.mrb[0].mxu0 %v1003
  %v1050 = vpop.f32.mrb[0].mxu0
  %v1051 = vadd.f32 0.0, %v1050
  %v1052 = vpop.f32.mrb[0].mxu0
  %v1053 = vpop.f32.mrb[0].mxu0
  %v1054 = vpop.f32.mrb[0].mxu0
  %1055 = vdwg.mxu0
  %1056 = vrot.lane.b32.xlu0 %v110, 48
  %v1057 = vpop.permute.xlu0 %1056
  %1058 = vrot.lane.b32.xlu0 %v111, 48
  %v1059 = vpop.permute.xlu0 %1058
  %v1062 = vsel %vm176, %v992, 0
  %v1065 = vsel %vm176, %v993, 0
  %v1068 = vand.u32 %v1059, %v249
  %1070 = vmatprep.subr.bf16.mxu0 0
  %1071 = vmatpush1.bf16.msra.mxu0 %v1057
  %1072 = vmatprep.subr.bf16.mxu0 0
  %1073 = vmatpush1.bf16.msra.mxu0 %v1068
  %1074 = vmatprep.subr.bf16.mxu0 0
  %1075 = vmatpush1.bf16.msra.mxu0 0
  %1076 = vmatprep.subr.bf16.mxu0 0
  %1077 = vmatpush1.bf16.msra.mxu0 0
  %1078 = vmatprep.subr.bf16.mxu0 0
  %1079 = vmatpush1.bf16.msra.mxu0 0
  %1080 = vmatprep.subr.bf16.mxu0 0
  %1081 = vmatpush1.bf16.msra.mxu0 0
  %1082 = vmatprep.subr.bf16.mxu0 0
  %1083 = vmatpush1.bf16.msra.mxu0 0
  %1084 = vmatprep.subr.bf16.mxu0 0
  %1085 = vmatpush1.bf16.msra.mxu0 0
  %1086 = vmatprep.subr.bf16.mxu0 0
  %1087 = vmatpush1.bf16.msra.mxu0 0
  %1088 = vmatprep.subr.bf16.mxu0 0
  %1089 = vmatpush1.bf16.msra.mxu0 0
  %1090 = vmatprep.subr.bf16.mxu0 0
  %1091 = vmatpush1.bf16.msra.mxu0 0
  %1092 = vmatprep.subr.bf16.mxu0 0
  %1093 = vmatpush1.bf16.msra.mxu0 0
  %1094 = vmatprep.subr.bf16.mxu0 0
  %1095 = vmatpush1.bf16.msra.mxu0 0
  %1096 = vmatprep.subr.bf16.mxu0 0
  %1097 = vmatpush1.bf16.msra.mxu0 0
  %1098 = vmatprep.subr.bf16.mxu0 0
  %1099 = vmatpush1.bf16.msra.mxu0 0
  %1100 = vmatprep.subr.bf16.mxu0 0
  %1101 = vmatpush1.bf16.msra.mxu0 0
  %1102 = vmatprep.mubr.bf16.mxu0 0
  %1103 = vmatmul.mubr.bf16.gmra.mrb[0].mxu0 %v1062
  %v1104 = vpop.f32.mrb[0].mxu0
  %v1105 = vadd.f32 0.0, %v1104
  %v1106 = vpop.f32.mrb[0].mxu0
  %v1107 = vpop.f32.mrb[0].mxu0
  %v1108 = vadd.f32 0.0, %v1107
  %v1109 = vpop.f32.mrb[0].mxu0
  %1110 = vmatprep.mubr.bf16.mxu0 0
  %1111 = vmatmul.mubr.bf16.gmra.mrb[0].mxu0 %v1065
  %v1112 = vpop.f32.mrb[0].mxu0
  %v1113 = vadd.f32 0.0, %v1112
  %v1114 = vpop.f32.mrb[0].mxu0
  %v1115 = vpop.f32.mrb[0].mxu0
  %v1116 = vpop.f32.mrb[0].mxu0
  %1117 = vdwg.mxu0
  %v1118 = vrcp.pop %v974
  %v1119 = vrcp.pop %v977
  %v1120 = vrcp.pop %v980
  %v1121 = vrcp.pop %v983
  %v1122 = vrcp.pop %v986
  %v1123 = vrcp.pop %v989
  %v1124 = vmul.f32 %v1043, %v1118
  %v1125 = vmul.f32 %v1046, %v1119
  %v1126 = vmul.f32 %v1051, %v1120
  %v1127 = vmul.f32 %v1105, %v1121
  %v1128 = vmul.f32 %v1108, %v1122
  %v1129 = vmul.f32 %v1113, %v1123
  %v1130 = vpack.c.bf16 %v1125, %v1124
  %v1131 = vpack.c.bf16 %v1126, %v1126
  %v1132 = vpack.c.bf16 %v1128, %v1127
  %v1133 = vpack.c.bf16 %v1129, %v1129
  %v1138 = vunpack.c.l.b16 %v1130
  %v1139 = vunpack.c.h.b16 %v1130
  %v1140 = vunpack.c.l.b16 %v1131
  %v1141 = vunpack.c.l.b16 %v1132
  %v1142 = vunpack.c.h.b16 %v1132
  %v1143 = vunpack.c.l.b16 %v1133
  %v1144 = vpack.c.b16 %v1138, %v1138
  %v1145 = vpack.c.b16 %v1139, %v1139
  %v1146 = vpack.c.b16 %v1140, %v1140
  %v1147 = vpack.c.b16 %v1141, %v1141
  %v1148 = vpack.c.b16 %v1142, %v1142
  %v1149 = vpack.c.b16 %v1143, %v1143
  %1150 = vrot.lane.b32.xlu0 %v1144, 16
  %v1151 = vpop.permute.xlu0 %1150
  %1152 = vrot.lane.b32.xlu0 %v1145, 16
  %v1153 = vpop.permute.xlu0 %1152
  %1154 = vrot.lane.b32.xlu0 %v1146, 16
  %v1155 = vpop.permute.xlu0 %1154
  %1156 = vrot.lane.b32.xlu0 %v1147, 16
  %v1157 = vpop.permute.xlu0 %1156
  %1158 = vrot.lane.b32.xlu0 %v1148, 16
  %v1159 = vpop.permute.xlu0 %1158
  %1160 = vrot.lane.b32.xlu0 %v1149, 16
  %v1161 = vpop.permute.xlu0 %1160
  %vm1168 = vcmask 191616
  %1169 = vst.msk [vmem:[%s1] sm:$0xf] %vm1168, %v1151
  %1170 = vst.msk [vmem:[%s1 + $0x4] sm:$0xf] %vm1168, %v1153
  %vm1171 = vcmask 188544
  %vm1172 = vmand %vm1171, %vm405
  %v1173 = vld [vmem:[%s1 + $0x8] sm:$0x1]
  %v1174 = vsel %vm1172, %v1155, %v1173
  %1175 = vst [vmem:[%s1 + $0x8] sm:$0x1] %v1174
  %1176 = vst.msk [vmem:[%s1 + $0xc] sm:$0xf] %vm1168, %v1157
  %1177 = vst.msk [vmem:[%s1 + $0x10] sm:$0xf] %vm1168, %v1159
  %v1178 = vld [vmem:[%s1 + $0x14] sm:$0x1]
  %v1179 = vsel %vm1172, %v1161, %v1178
  %1180 = vst [vmem:[%s1 + $0x14] sm:$0x1] %v1179
  %1181 = vrot.lane.b32.xlu0 %v27, 104
  %v1182 = vpop.permute.xlu0 %1181
  %1183 = vrot.lane.b32.xlu0 %v28, 104
  %v1184 = vpop.permute.xlu0 %1183
  %1185 = vrot.lane.b32.xlu0 %v37, 72
  %v1186 = vpop.permute.xlu0 %1185
  %1187 = vrot.lane.b32.xlu0 %v38, 72
  %v1188 = vpop.permute.xlu0 %1187
  %v1190 = vsel %vm43, %v1182, 0
  %v1193 = vsel %vm43, %v1184, 0
  %v1196 = vsel %vm43, %v1186, 0
  %v1199 = vsel %vm43, %v1188, 0
  %1201 = vmatprep.subr.bf16.mxu0 0
  %1202 = vmatpush1.bf16.xpose.msra.mxu0 %v1196
  %1203 = vmatprep.subr.bf16.mxu0 0
  %1204 = vmatpush1.bf16.xpose.msra.mxu0 %v1199
  %1205 = vmatprep.subr.bf16.mxu0 0
  %1206 = vmatpush1.bf16.xpose.msra.mxu0 0
  %1207 = vmatprep.subr.bf16.mxu0 0
  %1208 = vmatpush1.bf16.xpose.msra.mxu0 0
  %1209 = vmatprep.subr.bf16.mxu0 0
  %1210 = vmatpush1.bf16.xpose.msra.mxu0 0
  %1211 = vmatprep.subr.bf16.mxu0 0
  %1212 = vmatpush1.bf16.xpose.msra.mxu0 0
  %1213 = vmatprep.subr.bf16.mxu0 0
  %1214 = vmatpush1.bf16.xpose.msra.mxu0 0
  %1215 = vmatprep.subr.bf16.mxu0 0
  %1216 = vmatpush1.bf16.xpose.msra.mxu0 0
  %1217 = vmatprep.subr.bf16.mxu0 0
  %1218 = vmatpush1.bf16.xpose.msra.mxu0 0
  %1219 = vmatprep.subr.bf16.mxu0 0
  %1220 = vmatpush1.bf16.xpose.msra.mxu0 0
  %1221 = vmatprep.subr.bf16.mxu0 0
  %1222 = vmatpush1.bf16.xpose.msra.mxu0 0
  %1223 = vmatprep.subr.bf16.mxu0 0
  %1224 = vmatpush1.bf16.xpose.msra.mxu0 0
  %1225 = vmatprep.subr.bf16.mxu0 0
  %1226 = vmatpush1.bf16.xpose.msra.mxu0 0
  %1227 = vmatprep.subr.bf16.mxu0 0
  %1228 = vmatpush1.bf16.xpose.msra.mxu0 0
  %1229 = vmatprep.subr.bf16.mxu0 0
  %1230 = vmatpush1.bf16.xpose.msra.mxu0 0
  %1231 = vmatprep.subr.bf16.mxu0 0
  %1232 = vmatpush1.bf16.xpose.msra.mxu0 0
  %1233 = vmatprep.mubr.bf16.mxu0 0
  %1234 = vmatmul.mubr.bf16.gmra.mrb[0].mxu0 %v1190
  %v1235 = vpop.f32.mrb[0].mxu0
  %v1236 = vadd.f32 0.0, %v1235
  %v1237 = vpop.f32.mrb[0].mxu0
  %v1238 = vpop.f32.mrb[0].mxu0
  %v1239 = vadd.f32 0.0, %v1238
  %v1240 = vpop.f32.mrb[0].mxu0
  %1241 = vmatprep.mubr.bf16.mxu0 0
  %1242 = vmatmul.mubr.bf16.gmra.mrb[0].mxu0 %v1193
  %v1243 = vpop.f32.mrb[0].mxu0
  %v1244 = vadd.f32 0.0, %v1243
  %v1245 = vpop.f32.mrb[0].mxu0
  %v1246 = vpop.f32.mrb[0].mxu0
  %v1247 = vpop.f32.mrb[0].mxu0
  %1248 = vdwg.mxu0
  %1249 = vrot.lane.b32.xlu0 %v29, 104
  %v1250 = vpop.permute.xlu0 %1249
  %1251 = vrot.lane.b32.xlu0 %v30, 104
  %v1252 = vpop.permute.xlu0 %1251
  %1253 = vrot.lane.b32.xlu0 %v110, 72
  %v1254 = vpop.permute.xlu0 %1253
  %1255 = vrot.lane.b32.xlu0 %v111, 72
  %v1256 = vpop.permute.xlu0 %1255
  %v1258 = vsel %vm43, %v1250, 0
  %v1261 = vsel %vm43, %v1252, 0
  %v1264 = vsel %vm43, %v1254, 0
  %v1267 = vsel %vm43, %v1256, 0
  %1269 = vmatprep.subr.bf16.mxu0 0
  %1270 = vmatpush1.bf16.xpose.msra.mxu0 %v1264
  %1271 = vmatprep.subr.bf16.mxu0 0
  %1272 = vmatpush1.bf16.xpose.msra.mxu0 %v1267
  %1273 = vmatprep.subr.bf16.mxu0 0
  %1274 = vmatpush1.bf16.xpose.msra.mxu0 0
  %1275 = vmatprep.subr.bf16.mxu0 0
  %1276 = vmatpush1.bf16.xpose.msra.mxu0 0
  %1277 = vmatprep.subr.bf16.mxu0 0
  %1278 = vmatpush1.bf16.xpose.msra.mxu0 0
  %1279 = vmatprep.subr.bf16.mxu0 0
  %1280 = vmatpush1.bf16.xpose.msra.mxu0 0
  %1281 = vmatprep.subr.bf16.mxu0 0
  %1282 = vmatpush1.bf16.xpose.msra.mxu0 0
  %1283 = vmatprep.subr.bf16.mxu0 0
  %1284 = vmatpush1.bf16.xpose.msra.mxu0 0
  %1285 = vmatprep.subr.bf16.mxu0 0
  %1286 = vmatpush1.bf16.xpose.msra.mxu0 0
  %1287 = vmatprep.subr.bf16.mxu0 0
  %1288 = vmatpush1.bf16.xpose.msra.mxu0 0
  %1289 = vmatprep.subr.bf16.mxu0 0
  %1290 = vmatpush1.bf16.xpose.msra.mxu0 0
  %1291 = vmatprep.subr.bf16.mxu0 0
  %1292 = vmatpush1.bf16.xpose.msra.mxu0 0
  %1293 = vmatprep.subr.bf16.mxu0 0
  %1294 = vmatpush1.bf16.xpose.msra.mxu0 0
  %1295 = vmatprep.subr.bf16.mxu0 0
  %1296 = vmatpush1.bf16.xpose.msra.mxu0 0
  %1297 = vmatprep.subr.bf16.mxu0 0
  %1298 = vmatpush1.bf16.xpose.msra.mxu0 0
  %1299 = vmatprep.subr.bf16.mxu0 0
  %1300 = vmatpush1.bf16.xpose.msra.mxu0 0
  %1301 = vmatprep.mubr.bf16.mxu0 0
  %1302 = vmatmul.mubr.bf16.gmra.mrb[0].mxu0 %v1258
  %v1303 = vpop.f32.mrb[0].mxu0
  %v1304 = vadd.f32 0.0, %v1303
  %v1305 = vpop.f32.mrb[0].mxu0
  %v1306 = vpop.f32.mrb[0].mxu0
  %v1307 = vadd.f32 0.0, %v1306
  %v1308 = vpop.f32.mrb[0].mxu0
  %1309 = vmatprep.mubr.bf16.mxu0 0
  %1310 = vmatmul.mubr.bf16.gmra.mrb[0].mxu0 %v1261
  %v1311 = vpop.f32.mrb[0].mxu0
  %v1312 = vadd.f32 0.0, %v1311
  %v1313 = vpop.f32.mrb[0].mxu0
  %v1314 = vpop.f32.mrb[0].mxu0
  %v1315 = vpop.f32.mrb[0].mxu0
  %1316 = vdwg.mxu0
  %v1317 = vsel %vm176, %v1236, -inf
  %1318 = vmax.xlane.f32.xlu0 %v1317
  %v1319 = vpop.xlane.xlu0 %1318
  %v1320 = vsel %vm176, %v1239, -inf
  %1321 = vmax.xlane.f32.xlu0 %v1320
  %v1322 = vpop.xlane.xlu0 %1321
  %v1323 = vsel %vm183, %v1244, -inf
  %1324 = vmax.xlane.f32.xlu0 %v1323
  %v1325 = vpop.xlane.xlu0 %1324
  %v1326 = vsel %vm176, %v1304, -inf
  %1327 = vmax.xlane.f32.xlu0 %v1326
  %v1328 = vpop.xlane.xlu0 %1327
  %v1329 = vsel %vm176, %v1307, -inf
  %1330 = vmax.xlane.f32.xlu0 %v1329
  %v1331 = vpop.xlane.xlu0 %1330
  %v1332 = vsel %vm183, %v1312, -inf
  %1333 = vmax.xlane.f32.xlu0 %v1332
  %v1334 = vpop.xlane.xlu0 %1333
  %v1335 = vsub.f32 %v1236, %v1319
  %v1336 = vsub.f32 %v1239, %v1322
  %v1337 = vsub.f32 %v1244, %v1325
  %v1338 = vsub.f32 %v1304, %v1328
  %v1339 = vsub.f32 %v1307, %v1331
  %v1340 = vsub.f32 %v1312, %v1334
  %v1341 = vmul.f32 %v1335, 1.442695
  %v1342 = vpow.pop %v1341
  %v1343 = vmul.f32 %v1336, 1.442695
  %v1344 = vpow.pop %v1343
  %v1345 = vmul.f32 %v1337, 1.442695
  %v1346 = vpow.pop %v1345
  %v1347 = vmul.f32 %v1338, 1.442695
  %v1348 = vpow.pop %v1347
  %v1349 = vmul.f32 %v1339, 1.442695
  %v1350 = vpow.pop %v1349
  %v1351 = vmul.f32 %v1340, 1.442695
  %v1352 = vpow.pop %v1351
  %v1353 = vsel %vm176, %v1342, 0.0
  %1354 = vadd.xlane.f32.xlu0 %v1353
  %v1355 = vpop.xlane.xlu0 %1354
  %v1356 = vsel %vm176, %v1344, 0.0
  %1357 = vadd.xlane.f32.xlu0 %v1356
  %v1358 = vpop.xlane.xlu0 %1357
  %v1359 = vsel %vm183, %v1346, 0.0
  %1360 = vadd.xlane.f32.xlu0 %v1359
  %v1361 = vpop.xlane.xlu0 %1360
  %v1362 = vsel %vm176, %v1348, 0.0
  %1363 = vadd.xlane.f32.xlu0 %v1362
  %v1364 = vpop.xlane.xlu0 %1363
  %v1365 = vsel %vm176, %v1350, 0.0
  %1366 = vadd.xlane.f32.xlu0 %v1365
  %v1367 = vpop.xlane.xlu0 %1366
  %v1368 = vsel %vm183, %v1352, 0.0
  %1369 = vadd.xlane.f32.xlu0 %v1368
  %v1370 = vpop.xlane.xlu0 %1369
  %v1371 = vpack.c.bf16 %v1344, %v1342
  %v1372 = vpack.c.bf16 %v1346, %v1346
  %v1373 = vpack.c.bf16 %v1350, %v1348
  %v1374 = vpack.c.bf16 %v1352, %v1352
  %1375 = vrot.lane.b32.xlu0 %v37, 40
  %v1376 = vpop.permute.xlu0 %1375
  %1377 = vrot.lane.b32.xlu0 %v38, 40
  %v1378 = vpop.permute.xlu0 %1377
  %v1381 = vsel %vm176, %v1371, 0
  %v1384 = vsel %vm176, %v1372, 0
  %v1387 = vand.u32 %v1378, %v249
  %1389 = vmatprep.subr.bf16.mxu0 0
  %1390 = vmatpush1.bf16.msra.mxu0 %v1376
  %1391 = vmatprep.subr.bf16.mxu0 0
  %1392 = vmatpush1.bf16.msra.mxu0 %v1387
  %1393 = vmatprep.subr.bf16.mxu0 0
  %1394 = vmatpush1.bf16.msra.mxu0 0
  %1395 = vmatprep.subr.bf16.mxu0 0
  %1396 = vmatpush1.bf16.msra.mxu0 0
  %1397 = vmatprep.subr.bf16.mxu0 0
  %1398 = vmatpush1.bf16.msra.mxu0 0
  %1399 = vmatprep.subr.bf16.mxu0 0
  %1400 = vmatpush1.bf16.msra.mxu0 0
  %1401 = vmatprep.subr.bf16.mxu0 0
  %1402 = vmatpush1.bf16.msra.mxu0 0
  %1403 = vmatprep.subr.bf16.mxu0 0
  %1404 = vmatpush1.bf16.msra.mxu0 0
  %1405 = vmatprep.subr.bf16.mxu0 0
  %1406 = vmatpush1.bf16.msra.mxu0 0
  %1407 = vmatprep.subr.bf16.mxu0 0
  %1408 = vmatpush1.bf16.msra.mxu0 0
  %1409 = vmatprep.subr.bf16.mxu0 0
  %1410 = vmatpush1.bf16.msra.mxu0 0
  %1411 = vmatprep.subr.bf16.mxu0 0
  %1412 = vmatpush1.bf16.msra.mxu0 0
  %1413 = vmatprep.subr.bf16.mxu0 0
  %1414 = vmatpush1.bf16.msra.mxu0 0
  %1415 = vmatprep.subr.bf16.mxu0 0
  %1416 = vmatpush1.bf16.msra.mxu0 0
  %1417 = vmatprep.subr.bf16.mxu0 0
  %1418 = vmatpush1.bf16.msra.mxu0 0
  %1419 = vmatprep.subr.bf16.mxu0 0
  %1420 = vmatpush1.bf16.msra.mxu0 0
  %1421 = vmatprep.mubr.bf16.mxu0 0
  %1422 = vmatmul.mubr.bf16.gmra.mrb[0].mxu0 %v1381
  %v1423 = vpop.f32.mrb[0].mxu0
  %v1424 = vadd.f32 0.0, %v1423
  %v1425 = vpop.f32.mrb[0].mxu0
  %v1426 = vpop.f32.mrb[0].mxu0
  %v1427 = vadd.f32 0.0, %v1426
  %v1428 = vpop.f32.mrb[0].mxu0
  %1429 = vmatprep.mubr.bf16.mxu0 0
  %1430 = vmatmul.mubr.bf16.gmra.mrb[0].mxu0 %v1384
  %v1431 = vpop.f32.mrb[0].mxu0
  %v1432 = vadd.f32 0.0, %v1431
  %v1433 = vpop.f32.mrb[0].mxu0
  %v1434 = vpop.f32.mrb[0].mxu0
  %v1435 = vpop.f32.mrb[0].mxu0
  %1436 = vdwg.mxu0
  %1437 = vrot.lane.b32.xlu0 %v110, 40
  %v1438 = vpop.permute.xlu0 %1437
  %1439 = vrot.lane.b32.xlu0 %v111, 40
  %v1440 = vpop.permute.xlu0 %1439
  %v1443 = vsel %vm176, %v1373, 0
  %v1446 = vsel %vm176, %v1374, 0
  %v1449 = vand.u32 %v1440, %v249
  %1451 = vmatprep.subr.bf16.mxu0 0
  %1452 = vmatpush1.bf16.msra.mxu0 %v1438
  %1453 = vmatprep.subr.bf16.mxu0 0
  %1454 = vmatpush1.bf16.msra.mxu0 %v1449
  %1455 = vmatprep.subr.bf16.mxu0 0
  %1456 = vmatpush1.bf16.msra.mxu0 0
  %1457 = vmatprep.subr.bf16.mxu0 0
  %1458 = vmatpush1.bf16.msra.mxu0 0
  %1459 = vmatprep.subr.bf16.mxu0 0
  %1460 = vmatpush1.bf16.msra.mxu0 0
  %1461 = vmatprep.subr.bf16.mxu0 0
  %1462 = vmatpush1.bf16.msra.mxu0 0
  %1463 = vmatprep.subr.bf16.mxu0 0
  %1464 = vmatpush1.bf16.msra.mxu0 0
  %1465 = vmatprep.subr.bf16.mxu0 0
  %1466 = vmatpush1.bf16.msra.mxu0 0
  %1467 = vmatprep.subr.bf16.mxu0 0
  %1468 = vmatpush1.bf16.msra.mxu0 0
  %1469 = vmatprep.subr.bf16.mxu0 0
  %1470 = vmatpush1.bf16.msra.mxu0 0
  %1471 = vmatprep.subr.bf16.mxu0 0
  %1472 = vmatpush1.bf16.msra.mxu0 0
  %1473 = vmatprep.subr.bf16.mxu0 0
  %1474 = vmatpush1.bf16.msra.mxu0 0
  %1475 = vmatprep.subr.bf16.mxu0 0
  %1476 = vmatpush1.bf16.msra.mxu0 0
  %1477 = vmatprep.subr.bf16.mxu0 0
  %1478 = vmatpush1.bf16.msra.mxu0 0
  %1479 = vmatprep.subr.bf16.mxu0 0
  %1480 = vmatpush1.bf16.msra.mxu0 0
  %1481 = vmatprep.subr.bf16.mxu0 0
  %1482 = vmatpush1.bf16.msra.mxu0 0
  %1483 = vmatprep.mubr.bf16.mxu0 0
  %1484 = vmatmul.mubr.bf16.gmra.mrb[0].mxu0 %v1443
  %v1485 = vpop.f32.mrb[0].mxu0
  %v1486 = vadd.f32 0.0, %v1485
  %v1487 = vpop.f32.mrb[0].mxu0
  %v1488 = vpop.f32.mrb[0].mxu0
  %v1489 = vadd.f32 0.0, %v1488
  %v1490 = vpop.f32.mrb[0].mxu0
  %1491 = vmatprep.mubr.bf16.mxu0 0
  %1492 = vmatmul.mubr.bf16.gmra.mrb[0].mxu0 %v1446
  %v1493 = vpop.f32.mrb[0].mxu0
  %v1494 = vadd.f32 0.0, %v1493
  %v1495 = vpop.f32.mrb[0].mxu0
  %v1496 = vpop.f32.mrb[0].mxu0
  %v1497 = vpop.f32.mrb[0].mxu0
  %1498 = vdwg.mxu0
  %v1499 = vrcp.pop %v1355
  %v1500 = vrcp.pop %v1358
  %v1501 = vrcp.pop %v1361
  %v1502 = vrcp.pop %v1364
  %v1503 = vrcp.pop %v1367
  %v1504 = vrcp.pop %v1370
  %v1505 = vmul.f32 %v1424, %v1499
  %v1506 = vmul.f32 %v1427, %v1500
  %v1507 = vmul.f32 %v1432, %v1501
  %v1508 = vmul.f32 %v1486, %v1502
  %v1509 = vmul.f32 %v1489, %v1503
  %v1510 = vmul.f32 %v1494, %v1504
  %v1511 = vpack.c.bf16 %v1506, %v1505
  %v1512 = vpack.c.bf16 %v1507, %v1507
  %v1513 = vpack.c.bf16 %v1509, %v1508
  %v1514 = vpack.c.bf16 %v1510, %v1510
  %v1519 = vunpack.c.l.b16 %v1511
  %v1520 = vunpack.c.h.b16 %v1511
  %v1521 = vunpack.c.l.b16 %v1512
  %v1522 = vunpack.c.l.b16 %v1513
  %v1523 = vunpack.c.h.b16 %v1513
  %v1524 = vunpack.c.l.b16 %v1514
  %v1525 = vpack.c.b16 %v1519, %v1519
  %v1526 = vpack.c.b16 %v1520, %v1520
  %v1527 = vpack.c.b16 %v1521, %v1521
  %v1528 = vpack.c.b16 %v1522, %v1522
  %v1529 = vpack.c.b16 %v1523, %v1523
  %v1530 = vpack.c.b16 %v1524, %v1524
  %1531 = vrot.lane.b32.xlu0 %v1525, 24
  %v1532 = vpop.permute.xlu0 %1531
  %1533 = vrot.lane.b32.xlu0 %v1526, 24
  %v1534 = vpop.permute.xlu0 %1533
  %1535 = vrot.lane.b32.xlu0 %v1527, 24
  %v1536 = vpop.permute.xlu0 %1535
  %1537 = vrot.lane.b32.xlu0 %v1528, 24
  %v1538 = vpop.permute.xlu0 %1537
  %1539 = vrot.lane.b32.xlu0 %v1529, 24
  %v1540 = vpop.permute.xlu0 %1539
  %1541 = vrot.lane.b32.xlu0 %v1530, 24
  %v1542 = vpop.permute.xlu0 %1541
  %vm1549 = vcmask 257216
  %1550 = vst.msk [vmem:[%s1] sm:$0xf] %vm1549, %v1532
  %1551 = vst.msk [vmem:[%s1 + $0x4] sm:$0xf] %vm1549, %v1534
  %vm1552 = vcmask 254144
  %vm1553 = vmand %vm1552, %vm405
  %v1554 = vld [vmem:[%s1 + $0x8] sm:$0x1]
  %v1555 = vsel %vm1553, %v1536, %v1554
  %1556 = vst [vmem:[%s1 + $0x8] sm:$0x1] %v1555
  %1557 = vst.msk [vmem:[%s1 + $0xc] sm:$0xf] %vm1549, %v1538
  %1558 = vst.msk [vmem:[%s1 + $0x10] sm:$0xf] %vm1549, %v1540
  %v1559 = vld [vmem:[%s1 + $0x14] sm:$0x1]
  %v1560 = vsel %vm1553, %v1542, %v1559
  %1561 = vst [vmem:[%s1 + $0x14] sm:$0x1] %v1560
  // Predicated region
  $region6: #{vitc_forward.14} parent=0 // pred_check
    _
  $region7: #{vitc_forward.14} parent=0 // pred_check_branch
    %1563 = sbr.rel (0) target = $region9
  $region8: #{vitc_forward.14} parent=0 // pred_region
    _
  $region9: #{vitc_forward.14} parent=0 // pred_fallthru
    _
  // Predicated region
  $region10: #{vitc_forward.14} parent=0 // pred_check
    _
  $region11: #{vitc_forward.14} parent=0 // pred_check_branch
    %1565 = sbr.rel (0) target = $region13
  $region12: #{vitc_forward.14} parent=0 // pred_region
    _
  $region13: #{vitc_forward.14} parent=0 // pred_fallthru
    _

// kernel: vitc_forward.17
$region0: #{vitc_forward.17}
  #allocation0 [shape = 'u32[]', space=smem, size = 0x4, offset = 0x4, fixed_abs, tag = 'smem constant byte address 0x4 - core index']
  #allocation1 [shape = 'u32[144,128]{1,0:T(1,128)}', space=vmem, size = 0x12000, scoped, tag = 'internal scratch']
  %s0 = inlined_call_operand.vmem [shape: bf16[34,128], index: 0, kind: input, shape index: {}]
  %s1 = inlined_call_operand.vmem [shape: bf16[128,32], index: 1, kind: input, shape index: {}]
  %s2 = inlined_call_operand.vmem [shape: f32[1,32], index: 2, kind: input, shape index: {}]
  %s3 = inlined_call_operand.vmem [shape: f32[34,32], index: 3, kind: input, shape index: {}]
  %s4 = inlined_call_operand.vmem [shape: f32[34,32], index: 4, kind: output, shape index: {}]
  %s5 = sld [smem:[#allocation0]]
  $region26: #{vitc_forward.17} parent=0
    _
  %s7 = ssub.s32 1, %s5
  %s8 = scalar_select 0, %s7, %s5
  // Predicated region
  $region2: #{vitc_forward.17} parent=0 // pred_check
    _
  $region3: #{vitc_forward.17} parent=0 // pred_check_branch
    %10 = sbr.rel (0) target = $region5
  $region4: #{vitc_forward.17} parent=0 // pred_region
    _
  $region5: #{vitc_forward.17} parent=0 // pred_fallthru
    _
  // Predicated region
  $region6: #{vitc_forward.17} parent=0 // pred_check
    _
  $region7: #{vitc_forward.17} parent=0 // pred_check_branch
    %12 = sbr.rel (0) target = $region9
  $region8: #{vitc_forward.17} parent=0 // pred_region
    _
  $region9: #{vitc_forward.17} parent=0 // pred_fallthru
    _
  // Predicated region
  $region10: #{vitc_forward.17} parent=0 // pred_check
    _
  $region11: #{vitc_forward.17} parent=0 // pred_check_branch
    %14 = sbr.rel (0) target = $region13
  $region12: #{vitc_forward.17} parent=0 // pred_region
    _
  $region13: #{vitc_forward.17} parent=0 // pred_fallthru
    _
  // Predicated region
  $region14: #{vitc_forward.17} parent=0 // pred_check
    _
  $region15: #{vitc_forward.17} parent=0 // pred_check_branch
    %16 = sbr.rel (0) target = $region17
  $region16: #{vitc_forward.17} parent=0 // pred_region
    _
  $region17: #{vitc_forward.17} parent=0 // pred_fallthru
    _
  %v18 = vld [vmem:[%s0] sm:$0xf]
  %v19 = vld [vmem:[%s0 + $0x4] sm:$0xf]
  %v20 = vld [vmem:[%s0 + $0x8] sm:$0xf]
  %v21 = vld [vmem:[%s0 + $0xc] sm:$0xf]
  %v22 = vld [vmem:[%s0 + $0x10] sm:$0x1]
  %v23 = vld [vmem:[%s1] sm:$0xf]
  %v24 = vld [vmem:[%s1 + $0x4] sm:$0xf]
  %v25 = vld [vmem:[%s1 + $0x8] sm:$0xf]
  %v26 = vld [vmem:[%s1 + $0xc] sm:$0xf]
  %v27 = vld [vmem:[%s1 + $0x10] sm:$0xf]
  %v28 = vld [vmem:[%s1 + $0x14] sm:$0xf]
  %v29 = vld [vmem:[%s1 + $0x18] sm:$0xf]
  %v30 = vld [vmem:[%s1 + $0x1c] sm:$0xf]
  %v31 = vld [vmem:[%s1 + $0x20] sm:$0xf]
  %v32 = vld [vmem:[%s1 + $0x24] sm:$0xf]
  %v33 = vld [vmem:[%s1 + $0x28] sm:$0xf]
  %v34 = vld [vmem:[%s1 + $0x2c] sm:$0xf]
  %v35 = vld [vmem:[%s1 + $0x30] sm:$0xf]
  %v36 = vld [vmem:[%s1 + $0x34] sm:$0xf]
  %v37 = vld [vmem:[%s1 + $0x38] sm:$0xf]
  %v38 = vld [vmem:[%s1 + $0x3c] sm:$0xf]
  %v39 = vld [vmem:[%s2] sm:$0x1]
  %v41 = vlaneseq
  %v42 = vshrl.u32 %v41, 7
  %v43 = vsub.s32 0, %v42
  %v44 = vrot.slane %v39, %v43
  %v51 = vunpack.c.l.b16 %v18
  %v52 = vunpack.c.l.b16 %v19
  %v53 = vunpack.c.l.b16 %v20
  %v54 = vunpack.c.l.b16 %v21
  %v55 = vunpack.c.l.b16 %v22
  %v56 = vpack.c.b16 %v52, %v51
  %v57 = vpack.c.b16 %v54, %v53
  %v58 = vpack.c.b16 %v55, %v55
  %v78 = vunpack.c.l.b16 %v23
  %v79 = vunpack.c.l.b16 %v24
  %v80 = vunpack.c.l.b16 %v25
  %v81 = vunpack.c.l.b16 %v26
  %v82 = vunpack.c.l.b16 %v27
  %v83 = vunpack.c.l.b16 %v28
  %v84 = vunpack.c.l.b16 %v29
  %v85 = vunpack.c.l.b16 %v30
  %v86 = vunpack.c.l.b16 %v31
  %v87 = vunpack.c.l.b16 %v32
  %v88 = vunpack.c.l.b16 %v33
  %v89 = vunpack.c.l.b16 %v34
  %v90 = vunpack.c.l.b16 %v35
  %v91 = vunpack.c.l.b16 %v36
  %v92 = vunpack.c.l.b16 %v37
  %v93 = vunpack.c.l.b16 %v38
  %v94 = vpack.c.b16 %v79, %v78
  %v95 = vpack.c.b16 %v81, %v80
  %v96 = vpack.c.b16 %v83, %v82
  %v97 = vpack.c.b16 %v85, %v84
  %v98 = vpack.c.b16 %v87, %v86
  %v99 = vpack.c.b16 %v89, %v88
  %v100 = vpack.c.b16 %v91, %v90
  %v101 = vpack.c.b16 %v93, %v92
  %110 = vmatprep.subr.bf16.mxu0 0
  %111 = vmatpush1.bf16.msra.mxu0 %v94
  %112 = vmatprep.subr.bf16.mxu0 0
  %113 = vmatpush1.bf16.msra.mxu0 %v95
  %114 = vmatprep.subr.bf16.mxu0 0
  %115 = vmatpush1.bf16.msra.mxu0 %v96
  %116 = vmatprep.subr.bf16.mxu0 0
  %117 = vmatpush1.bf16.msra.mxu0 %v97
  %118 = vmatprep.subr.bf16.mxu0 0
  %119 = vmatpush1.bf16.msra.mxu0 %v98
  %120 = vmatprep.subr.bf16.mxu0 0
  %121 = vmatpush1.bf16.msra.mxu0 %v99
  %122 = vmatprep.subr.bf16.mxu0 0
  %123 = vmatpush1.bf16.msra.mxu0 %v100
  %124 = vmatprep.subr.bf16.mxu0 0
  %125 = vmatpush1.bf16.msra.mxu0 %v101
  %126 = vmatprep.subr.bf16.mxu0 0
  %127 = vmatpush1.bf16.msra.mxu0 0
  %128 = vmatprep.subr.bf16.mxu0 0
  %129 = vmatpush1.bf16.msra.mxu0 0
  %130 = vmatprep.subr.bf16.mxu0 0
  %131 = vmatpush1.bf16.msra.mxu0 0
  %132 = vmatprep.subr.bf16.mxu0 0
  %133 = vmatpush1.bf16.msra.mxu0 0
  %134 = vmatprep.subr.bf16.mxu0 0
  %135 = vmatpush1.bf16.msra.mxu0 0
  %136 = vmatprep.subr.bf16.mxu0 0
  %137 = vmatpush1.bf16.msra.mxu0 0
  %138 = vmatprep.subr.bf16.mxu0 0
  %139 = vmatpush1.bf16.msra.mxu0 0
  %140 = vmatprep.subr.bf16.mxu0 0
  %141 = vmatpush1.bf16.msra.mxu0 0
  %142 = vmatprep.mubr.bf16.mxu0 0
  %143 = vmatmul.mubr.bf16.gmra.mrb[0].mxu0 %v56
  %v144 = vpop.f32.mrb[0].mxu0
  %v145 = vadd.f32 %v44, %v144
  %v146 = vpop.f32.mrb[0].mxu0
  %v147 = vpop.f32.mrb[0].mxu0
  %v148 = vadd.f32 %v44, %v147
  %v149 = vpop.f32.mrb[0].mxu0
  %150 = vmatprep.mubr.bf16.mxu0 0
  %151 = vmatmul.mubr.bf16.gmra.mrb[0].mxu0 %v57
  %v152 = vpop.f32.mrb[0].mxu0
  %v153 = vadd.f32 %v44, %v152
  %v154 = vpop.f32.mrb[0].mxu0
  %v155 = vpop.f32.mrb[0].mxu0
  %v156 = vadd.f32 %v44, %v155
  %v157 = vpop.f32.mrb[0].mxu0
  %158 = vmatprep.mubr.bf16.mxu0 0
  %159 = vmatmul.mubr.bf16.gmra.mrb[0].mxu0 %v58
  %v160 = vpop.f32.mrb[0].mxu0
  %v161 = vadd.f32 %v44, %v160
  %v162 = vpop.f32.mrb[0].mxu0
  %v163 = vpop.f32.mrb[0].mxu0
  %v164 = vpop.f32.mrb[0].mxu0
  %165 = vdwg.mxu0
  %v166 = vld [vmem:[%s3] sm:$0xff]
  %v167 = vld [vmem:[%s3 + $0x8] sm:$0xff]
  %v168 = vld [vmem:[%s3 + $0x10] sm:$0xff]
  %v169 = vld [vmem:[%s3 + $0x18] sm:$0xff]
  %v170 = vld [vmem:[%s3 + $0x20] sm:$0x3]
  %v171 = vadd.f32 %v145, %v166
  %v172 = vadd.f32 %v148, %v167
  %v173 = vadd.f32 %v153, %v168
  %v174 = vadd.f32 %v156, %v169
  %v175 = vadd.f32 %v161, %v170
  %vm176 = vcmask 261120
  %177 = vst.msk [vmem:[%s4] sm:$0xff] %vm176, %v171
  %178 = vst.msk [vmem:[%s4 + $0x8] sm:$0xff] %vm176, %v172
  %179 = vst.msk [vmem:[%s4 + $0x10] sm:$0xff] %vm176, %v173
  %180 = vst.msk [vmem:[%s4 + $0x18] sm:$0xff] %vm176, %v174
  %vm181 = vcmask 254976
  %182 = vst.msk [vmem:[%s4 + $0x20] sm:$0x3] %vm181, %v175
  // Predicated region
  $region18: #{vitc_forward.17} parent=0 // pred_check
    _
  $region19: #{vitc_forward.17} parent=0 // pred_check_branch
    %184 = sbr.rel (0) target = $region21
  $region20: #{vitc_forward.17} parent=0 // pred_region
    _
  $region21: #{vitc_forward.17} parent=0 // pred_fallthru
    _
  // Predicated region
  $region22: #{vitc_forward.17} parent=0 // pred_check
    _
  $region23: #{vitc_forward.17} parent=0 // pred_check_branch
    %186 = sbr.rel (0) target = $region25
  $region24: #{vitc_forward.17} parent=0 // pred_region
    _
  $region25: #{vitc_forward.17} parent=0 // pred_fallthru
    _

// kernel: vitc_forward.16
$region0: #{vitc_forward.16}
  #allocation0 [shape = 'u32[]', space=smem, size = 0x4, offset = 0x4, fixed_abs, tag = 'smem constant byte address 0x4 - core index']
  #allocation1 [shape = 'u32[144,128]{1,0:T(1,128)}', space=vmem, size = 0x12000, scoped, tag = 'internal scratch']
  %s0 = inlined_call_operand.vmem [shape: f32[34,32], index: 0, kind: input, shape index: {}]
  %s1 = inlined_call_operand.vmem [shape: f32[1,32], index: 1, kind: input, shape index: {}]
  %s2 = inlined_call_operand.vmem [shape: f32[1,32], index: 2, kind: input, shape index: {}]
  %s3 = inlined_call_operand.vmem [shape: bf16[32,128], index: 3, kind: input, shape index: {}]
  %s4 = inlined_call_operand.vmem [shape: f32[1,128], index: 4, kind: input, shape index: {}]
  %s5 = inlined_call_operand.vmem [shape: bf16[34,128], index: 5, kind: output, shape index: {}]
  %s6 = sld [smem:[#allocation0]]
  $region30: #{vitc_forward.16} parent=0
    _
  %s8 = ssub.s32 1, %s6
  %s9 = scalar_select 0, %s8, %s6
  // Predicated region
  $region2: #{vitc_forward.16} parent=0 // pred_check
    _
  $region3: #{vitc_forward.16} parent=0 // pred_check_branch
    %11 = sbr.rel (0) target = $region5
  $region4: #{vitc_forward.16} parent=0 // pred_region
    _
  $region5: #{vitc_forward.16} parent=0 // pred_fallthru
    _
  // Predicated region
  $region6: #{vitc_forward.16} parent=0 // pred_check
    _
  $region7: #{vitc_forward.16} parent=0 // pred_check_branch
    %13 = sbr.rel (0) target = $region9
  $region8: #{vitc_forward.16} parent=0 // pred_region
    _
  $region9: #{vitc_forward.16} parent=0 // pred_fallthru
    _
  // Predicated region
  $region10: #{vitc_forward.16} parent=0 // pred_check
    _
  $region11: #{vitc_forward.16} parent=0 // pred_check_branch
    %15 = sbr.rel (0) target = $region13
  $region12: #{vitc_forward.16} parent=0 // pred_region
    _
  $region13: #{vitc_forward.16} parent=0 // pred_fallthru
    _
  // Predicated region
  $region14: #{vitc_forward.16} parent=0 // pred_check
    _
  $region15: #{vitc_forward.16} parent=0 // pred_check_branch
    %17 = sbr.rel (0) target = $region17
  $region16: #{vitc_forward.16} parent=0 // pred_region
    _
  $region17: #{vitc_forward.16} parent=0 // pred_fallthru
    _
  // Predicated region
  $region18: #{vitc_forward.16} parent=0 // pred_check
    _
  $region19: #{vitc_forward.16} parent=0 // pred_check_branch
    %19 = sbr.rel (0) target = $region21
  $region20: #{vitc_forward.16} parent=0 // pred_region
    _
  $region21: #{vitc_forward.16} parent=0 // pred_fallthru
    _
  %v21 = vld [vmem:[%s0] sm:$0xff]
  %v22 = vld [vmem:[%s0 + $0x8] sm:$0xff]
  %v23 = vld [vmem:[%s0 + $0x10] sm:$0xff]
  %v24 = vld [vmem:[%s0 + $0x18] sm:$0xff]
  %v25 = vld [vmem:[%s0 + $0x20] sm:$0x3]
  %vm26 = vcmask 261120
  %v27 = vsel %vm26, %v21, 0.0
  %28 = vadd.xlane.f32.xlu0 %v27
  %v29 = vpop.xlane.xlu0 %28
  %v30 = vsel %vm26, %v22, 0.0
  %31 = vadd.xlane.f32.xlu0 %v30
  %v32 = vpop.xlane.xlu0 %31
  %v33 = vsel %vm26, %v23, 0.0
  %34 = vadd.xlane.f32.xlu0 %v33
  %v35 = vpop.xlane.xlu0 %34
  %v36 = vsel %vm26, %v24, 0.0
  %37 = vadd.xlane.f32.xlu0 %v36
  %v38 = vpop.xlane.xlu0 %37
  %vm39 = vcmask 254976
  %v40 = vsel %vm39, %v25, 0.0
  %41 = vadd.xlane.f32.xlu0 %v40
  %v42 = vpop.xlane.xlu0 %41
  %v43 = vrcp.pop 32.0
  %v44 = vmul.f32 %v29, %v43
  %v45 = vmul.f32 %v32, %v43
  %v46 = vmul.f32 %v35, %v43
  %v47 = vmul.f32 %v38, %v43
  %v48 = vmul.f32 %v42, %v43
  %v49 = vsub.f32 %v21, %v44
  %v50 = vsub.f32 %v22, %v45
  %v51 = vsub.f32 %v23, %v46
  %v52 = vsub.f32 %v24, %v47
  %v53 = vsub.f32 %v25, %v48
  %v54 = vmul.f32 %v49, %v49
  %v55 = vmul.f32 %v50, %v50
  %v56 = vmul.f32 %v51, %v51
  %v57 = vmul.f32 %v52, %v52
  %v58 = vmul.f32 %v53, %v53
  %v59 = vsel %vm26, %v54, 0.0
  %60 = vadd.xlane.f32.xlu0 %v59
  %v61 = vpop.xlane.xlu0 %60
  %v62 = vsel %vm26, %v55, 0.0
  %63 = vadd.xlane.f32.xlu0 %v62
  %v64 = vpop.xlane.xlu0 %63
  %v65 = vsel %vm26, %v56, 0.0
  %66 = vadd.xlane.f32.xlu0 %v65
  %v67 = vpop.xlane.xlu0 %66
  %v68 = vsel %vm26, %v57, 0.0
  %69 = vadd.xlane.f32.xlu0 %v68
  %v70 = vpop.xlane.xlu0 %69
  %v71 = vsel %vm39, %v58, 0.0
  %72 = vadd.xlane.f32.xlu0 %v71
  %v73 = vpop.xlane.xlu0 %72
  %v74 = vmul.f32 %v61, %v43
  %v75 = vmul.f32 %v64, %v43
  %v76 = vmul.f32 %v67, %v43
  %v77 = vmul.f32 %v70, %v43
  %v78 = vmul.f32 %v73, %v43
  %v79 = vadd.f32 %v74, 1e-06
  %v80 = vadd.f32 %v75, 1e-06
  %v81 = vadd.f32 %v76, 1e-06
  %v82 = vadd.f32 %v77, 1e-06
  %v83 = vadd.f32 %v78, 1e-06
  %v84 = vrsqrt.pop %v79
  %v85 = vrsqrt.pop %v80
  %v86 = vrsqrt.pop %v81
  %v87 = vrsqrt.pop %v82
  %v88 = vrsqrt.pop %v83
  %v89 = vmul.f32 %v49, %v84
  %v90 = vmul.f32 %v50, %v85
  %v91 = vmul.f32 %v51, %v86
  %v92 = vmul.f32 %v52, %v87
  %v93 = vmul.f32 %v53, %v88
  %v94 = vld [vmem:[%s1] sm:$0x1]
  %v96 = vlaneseq
  %v97 = vshrl.u32 %v96, 7
  %v98 = vsub.s32 0, %v97
  %v99 = vrot.slane %v94, %v98
  %v101 = vmul.f32 %v89, %v99
  %v102 = vmul.f32 %v90, %v99
  %v103 = vmul.f32 %v91, %v99
  %v104 = vmul.f32 %v92, %v99
  %v105 = vmul.f32 %v93, %v99
  %v106 = vld [vmem:[%s2] sm:$0x1]
  %v108 = vlaneseq
  %v109 = vshrl.u32 %v108, 7
  %v110 = vsub.s32 0, %v109
  %v111 = vrot.slane %v106, %v110
  %v113 = vadd.f32 %v101, %v111
  %v114 = vadd.f32 %v102, %v111
  %v115 = vadd.f32 %v103, %v111
  %v116 = vadd.f32 %v104, %v111
  %v117 = vadd.f32 %v105, %v111
  %v118 = vpack.c.bf16 %v114, %v113
  %v119 = vpack.c.bf16 %v116, %v115
  %v120 = vpack.c.bf16 %v117, %v117
  %v121 = vld [vmem:[%s3] sm:$0xf]
  %v122 = vld [vmem:[%s3 + $0x4] sm:$0xf]
  %v123 = vld [vmem:[%s3 + $0x8] sm:$0xf]
  %v124 = vld [vmem:[%s3 + $0xc] sm:$0xf]
  %v125 = vld [vmem:[%s4] sm:$0x1]
  %v127 = vlaneseq
  %v128 = vshrl.u32 %v127, 7
  %v129 = vsub.s32 0, %v128
  %v130 = vrot.slane %v125, %v129
  %v136 = vunpack.c.l.b16 %v121
  %v137 = vunpack.c.l.b16 %v122
  %v138 = vunpack.c.l.b16 %v123
  %v139 = vunpack.c.l.b16 %v124
  %v140 = vpack.c.b16 %v137, %v136
  %v141 = vpack.c.b16 %v139, %v138
  %v145 = vsel %vm26, %v118, 0
  %v148 = vsel %vm26, %v119, 0
  %v151 = vsel %vm26, %v120, 0
  %153 = vmatprep.subr.bf16.mxu0 0
  %154 = vmatpush1.bf16.msra.mxu0 %v140
  %155 = vmatprep.subr.bf16.mxu0 0
  %156 = vmatpush1.bf16.msra.mxu0 %v141
  %157 = vmatprep.subr.bf16.mxu0 0
  %158 = vmatpush1.bf16.msra.mxu0 0
  %159 = vmatprep.subr.bf16.mxu0 0
  %160 = vmatpush1.bf16.msra.mxu0 0
  %161 = vmatprep.subr.bf16.mxu0 0
  %162 = vmatpush1.bf16.msra.mxu0 0
  %163 = vmatprep.subr.bf16.mxu0 0
  %164 = vmatpush1.bf16.msra.mxu0 0
  %165 = vmatprep.subr.bf16.mxu0 0
  %166 = vmatpush1.bf16.msra.mxu0 0
  %167 = vmatprep.subr.bf16.mxu0 0
  %168 = vmatpush1.bf16.msra.mxu0 0
  %169 = vmatprep.subr.bf16.mxu0 0
  %170 = vmatpush1.bf16.msra.mxu0 0
  %171 = vmatprep.subr.bf16.mxu0 0
  %172 = vmatpush1.bf16.msra.mxu0 0
  %173 = vmatprep.subr.bf16.mxu0 0
  %174 = vmatpush1.bf16.msra.mxu0 0
  %175 = vmatprep.subr.bf16.mxu0 0
  %176 = vmatpush1.bf16.msra.mxu0 0
  %177 = vmatprep.subr.bf16.mxu0 0
  %178 = vmatpush1.bf16.msra.mxu0 0
  %179 = vmatprep.subr.bf16.mxu0 0
  %180 = vmatpush1.bf16.msra.mxu0 0
  %181 = vmatprep.subr.bf16.mxu0 0
  %182 = vmatpush1.bf16.msra.mxu0 0
  %183 = vmatprep.subr.bf16.mxu0 0
  %184 = vmatpush1.bf16.msra.mxu0 0
  %185 = vmatprep.mubr.bf16.mxu0 0
  %186 = vmatmul.mubr.bf16.gmra.mrb[0].mxu0 %v145
  %v187 = vpop.f32.mrb[0].mxu0
  %v188 = vadd.f32 %v130, %v187
  %v189 = vpop.f32.mrb[0].mxu0
  %v190 = vpop.f32.mrb[0].mxu0
  %v191 = vadd.f32 %v130, %v190
  %v192 = vpop.f32.mrb[0].mxu0
  %193 = vmatprep.mubr.bf16.mxu0 0
  %194 = vmatmul.mubr.bf16.gmra.mrb[0].mxu0 %v148
  %v195 = vpop.f32.mrb[0].mxu0
  %v196 = vadd.f32 %v130, %v195
  %v197 = vpop.f32.mrb[0].mxu0
  %v198 = vpop.f32.mrb[0].mxu0
  %v199 = vadd.f32 %v130, %v198
  %v200 = vpop.f32.mrb[0].mxu0
  %201 = vmatprep.mubr.bf16.mxu0 0
  %202 = vmatmul.mubr.bf16.gmra.mrb[0].mxu0 %v151
  %v203 = vpop.f32.mrb[0].mxu0
  %v204 = vadd.f32 %v130, %v203
  %v205 = vpop.f32.mrb[0].mxu0
  %v206 = vpop.f32.mrb[0].mxu0
  %v207 = vpop.f32.mrb[0].mxu0
  %208 = vdwg.mxu0
  %v209 = vmul.f32 %v188, 0.5
  %v210 = vmul.f32 %v191, 0.5
  %v211 = vmul.f32 %v196, 0.5
  %v212 = vmul.f32 %v199, 0.5
  %v213 = vmul.f32 %v204, 0.5
  %v214 = vmul.f32 %v188, 0.044715
  %v215 = vmul.f32 %v191, 0.044715
  %v216 = vmul.f32 %v196, 0.044715
  %v217 = vmul.f32 %v199, 0.044715
  %v218 = vmul.f32 %v204, 0.044715
  %v219 = vmul.f32 %v214, %v188
  %v220 = vmul.f32 %v215, %v191
  %v221 = vmul.f32 %v216, %v196
  %v222 = vmul.f32 %v217, %v199
  %v223 = vmul.f32 %v218, %v204
  %v224 = vmul.f32 %v219, %v188
  %v225 = vmul.f32 %v220, %v191
  %v226 = vmul.f32 %v221, %v196
  %v227 = vmul.f32 %v222, %v199
  %v228 = vmul.f32 %v223, %v204
  %v229 = vadd.f32 %v188, %v224
  %v230 = vadd.f32 %v191, %v225
  %v231 = vadd.f32 %v196, %v226
  %v232 = vadd.f32 %v199, %v227
  %v233 = vadd.f32 %v204, %v228
  %v234 = vmul.f32 %v229, 0.7978846
  %v235 = vmul.f32 %v230, 0.7978846
  %v236 = vmul.f32 %v231, 0.7978846
  %v237 = vmul.f32 %v232, 0.7978846
  %v238 = vmul.f32 %v233, 0.7978846
  %v239 = vtanh.pop %v234
  %v240 = vtanh.pop %v235
  %v241 = vtanh.pop %v236
  %v242 = vtanh.pop %v237
  %v243 = vtanh.pop %v238
  %v244 = vadd.f32 %v239, 1.0
  %v245 = vadd.f32 %v240, 1.0
  %v246 = vadd.f32 %v241, 1.0
  %v247 = vadd.f32 %v242, 1.0
  %v248 = vadd.f32 %v243, 1.0
  %v249 = vmul.f32 %v209, %v244
  %v250 = vmul.f32 %v210, %v245
  %v251 = vmul.f32 %v211, %v246
  %v252 = vmul.f32 %v212, %v247
  %v253 = vmul.f32 %v213, %v248
  %v254 = vpack.c.bf16 %v250, %v249
  %v255 = vpack.c.bf16 %v252, %v251
  %v256 = vpack.c.bf16 %v253, %v253
  %v260 = vunpack.c.l.b16 %v254
  %v261 = vunpack.c.h.b16 %v254
  %v262 = vunpack.c.l.b16 %v255
  %v263 = vunpack.c.h.b16 %v255
  %v264 = vunpack.c.l.b16 %v256
  %v265 = vpack.c.b16 %v260, %v260
  %v266 = vpack.c.b16 %v261, %v261
  %v267 = vpack.c.b16 %v262, %v262
  %v268 = vpack.c.b16 %v263, %v263
  %v269 = vpack.c.b16 %v264, %v264
  %275 = vst [vmem:[%s5] sm:$0xf] %v265
  %276 = vst [vmem:[%s5 + $0x4] sm:$0xf] %v266
  %277 = vst [vmem:[%s5 + $0x8] sm:$0xf] %v267
  %278 = vst [vmem:[%s5 + $0xc] sm:$0xf] %v268
  %279 = vst [vmem:[%s5 + $0x10] sm:$0x1] %v269
  // Predicated region
  $region22: #{vitc_forward.16} parent=0 // pred_check
    _
  $region23: #{vitc_forward.16} parent=0 // pred_check_branch
    %281 = sbr.rel (0) target = $region25
  $region24: #{vitc_forward.16} parent=0 // pred_region
    _
  $region25: #{vitc_forward.16} parent=0 // pred_fallthru
    _
  // Predicated region
  $region26: #{vitc_forward.16} parent=0 // pred_check
    _
  $region27: #{vitc_forward.16} parent=0 // pred_check_branch
    %283 = sbr.rel (0) target = $region29
  $region28: #{vitc_forward.16} parent=0 // pred_region
    _
  $region29: #{vitc_forward.16} parent=0 // pred_fallthru
    _

// kernel: vitc_forward.23
$region0: #{vitc_forward.23}
  #allocation0 [shape = 'u32[]', space=smem, size = 0x4, offset = 0x4, fixed_abs, tag = 'smem constant byte address 0x4 - core index']
  #allocation1 [shape = 'u32[144,128]{1,0:T(1,128)}', space=vmem, size = 0x12000, scoped, tag = 'internal scratch']
  %s0 = inlined_call_operand.vmem [shape: f32[2,32], index: 0, kind: input, shape index: {}]
  %s1 = inlined_call_operand.vmem [shape: f32[1,32], index: 1, kind: input, shape index: {}]
  %s2 = inlined_call_operand.vmem [shape: f32[1,32], index: 2, kind: input, shape index: {}]
  %s3 = inlined_call_operand.vmem [shape: bf16[32,128], index: 3, kind: input, shape index: {}]
  %s4 = inlined_call_operand.vmem [shape: f32[1,128], index: 4, kind: input, shape index: {}]
  %s5 = inlined_call_operand.hbm [shape: f32[2,128], index: 5, kind: output, shape index: {}]
  %s6 = sld [smem:[#allocation0]]
  $region30: #{vitc_forward.23} parent=0
    _
  %s8 = ssub.s32 1, %s6
  %s9 = scalar_select 0, %s8, %s6
  $region1: #{vitc_forward.23} parent=0
    #allocation2 [shape = 'u8[1024]{0}', space=vmem, size = 0x400, scoped, tag = 'output window, operand 0, single buffered']
    #allocation3 [shape = 's32[1]{0}', space=sflag, size = 0x4, scoped, tag = 'scoped memory for vitc_forward.23']
    %10 = vsyncpa [#allocation3], 0
    // Predicated region
    $region2: #{vitc_forward.23} parent=1 // pred_check
      _
    $region3: #{vitc_forward.23} parent=1 // pred_check_branch
      %12 = sbr.rel (0) target = $region5
    $region4: #{vitc_forward.23} parent=1 // pred_region
      _
    $region5: #{vitc_forward.23} parent=1 // pred_fallthru
      _
    // Predicated region
    $region6: #{vitc_forward.23} parent=1 // pred_check
      _
    $region7: #{vitc_forward.23} parent=1 // pred_check_branch
      %14 = sbr.rel (0) target = $region9
    $region8: #{vitc_forward.23} parent=1 // pred_region
      _
    $region9: #{vitc_forward.23} parent=1 // pred_fallthru
      _
    // Predicated region
    $region10: #{vitc_forward.23} parent=1 // pred_check
      _
    $region11: #{vitc_forward.23} parent=1 // pred_check_branch
      %16 = sbr.rel (0) target = $region13
    $region12: #{vitc_forward.23} parent=1 // pred_region
      _
    $region13: #{vitc_forward.23} parent=1 // pred_fallthru
      _
    // Predicated region
    $region14: #{vitc_forward.23} parent=1 // pred_check
      _
    $region15: #{vitc_forward.23} parent=1 // pred_check_branch
      %18 = sbr.rel (0) target = $region17
    $region16: #{vitc_forward.23} parent=1 // pred_region
      _
    $region17: #{vitc_forward.23} parent=1 // pred_fallthru
      _
    // Predicated region
    $region18: #{vitc_forward.23} parent=1 // pred_check
      _
    $region19: #{vitc_forward.23} parent=1 // pred_check_branch
      %20 = sbr.rel (0) target = $region21
    $region20: #{vitc_forward.23} parent=1 // pred_region
      _
    $region21: #{vitc_forward.23} parent=1 // pred_fallthru
      _
    %v22 = vld [vmem:[%s0] sm:$0x3]
    %vm23 = vcmask 254976
    %v24 = vsel %vm23, %v22, 0.0
    %25 = vadd.xlane.f32.xlu0 %v24
    %v26 = vpop.xlane.xlu0 %25
    %v27 = vrcp.pop 32.0
    %v28 = vmul.f32 %v26, %v27
    %v29 = vsub.f32 %v22, %v28
    %v30 = vmul.f32 %v29, %v29
    %v31 = vsel %vm23, %v30, 0.0
    %32 = vadd.xlane.f32.xlu0 %v31
    %v33 = vpop.xlane.xlu0 %32
    %v34 = vmul.f32 %v33, %v27
    %v35 = vadd.f32 %v34, 1e-06
    %v36 = vrsqrt.pop %v35
    %v37 = vmul.f32 %v29, %v36
    %v38 = vld [vmem:[%s1] sm:$0x1]
    %v40 = vlaneseq
    %v41 = vshrl.u32 %v40, 7
    %v42 = vsub.s32 0, %v41
    %v43 = vrot.slane %v38, %v42
    %v45 = vmul.f32 %v37, %v43
    %v46 = vld [vmem:[%s2] sm:$0x1]
    %v48 = vlaneseq
    %v49 = vshrl.u32 %v48, 7
    %v50 = vsub.s32 0, %v49
    %v51 = vrot.slane %v46, %v50
    %v53 = vadd.f32 %v45, %v51
    %v54 = vpack.c.bf16 %v53, %v53
    %v55 = vld [vmem:[%s3] sm:$0xf]
    %v56 = vld [vmem:[%s3 + $0x4] sm:$0xf]
    %v57 = vld [vmem:[%s3 + $0x8] sm:$0xf]
    %v58 = vld [vmem:[%s3 + $0xc] sm:$0xf]
    %v59 = vld [vmem:[%s4] sm:$0x1]
    %v61 = vlaneseq
    %v62 = vshrl.u32 %v61, 7
    %v63 = vsub.s32 0, %v62
    %v64 = vrot.slane %v59, %v63
    %v70 = vunpack.c.l.b16 %v55
    %v71 = vunpack.c.l.b16 %v56
    %v72 = vunpack.c.l.b16 %v57
    %v73 = vunpack.c.l.b16 %v58
    %v74 = vpack.c.b16 %v71, %v70
    %v75 = vpack.c.b16 %v73, %v72
    %vm78 = vcmask 261120
    %v80 = vsel %vm78, %v54, 0
    %82 = vmatprep.subr.bf16.mxu0 0
    %83 = vmatpush1.bf16.msra.mxu0 %v74
    %84 = vmatprep.subr.bf16.mxu0 0
    %85 = vmatpush1.bf16.msra.mxu0 %v75
    %86 = vmatprep.subr.bf16.mxu0 0
    %87 = vmatpush1.bf16.msra.mxu0 0
    %88 = vmatprep.subr.bf16.mxu0 0
    %89 = vmatpush1.bf16.msra.mxu0 0
    %90 = vmatprep.subr.bf16.mxu0 0
    %91 = vmatpush1.bf16.msra.mxu0 0
    %92 = vmatprep.subr.bf16.mxu0 0
    %93 = vmatpush1.bf16.msra.mxu0 0
    %94 = vmatprep.subr.bf16.mxu0 0
    %95 = vmatpush1.bf16.msra.mxu0 0
    %96 = vmatprep.subr.bf16.mxu0 0
    %97 = vmatpush1.bf16.msra.mxu0 0
    %98 = vmatprep.subr.bf16.mxu0 0
    %99 = vmatpush1.bf16.msra.mxu0 0
    %100 = vmatprep.subr.bf16.mxu0 0
    %101 = vmatpush1.bf16.msra.mxu0 0
    %102 = vmatprep.subr.bf16.mxu0 0
    %103 = vmatpush1.bf16.msra.mxu0 0
    %104 = vmatprep.subr.bf16.mxu0 0
    %105 = vmatpush1.bf16.msra.mxu0 0
    %106 = vmatprep.subr.bf16.mxu0 0
    %107 = vmatpush1.bf16.msra.mxu0 0
    %108 = vmatprep.subr.bf16.mxu0 0
    %109 = vmatpush1.bf16.msra.mxu0 0
    %110 = vmatprep.subr.bf16.mxu0 0
    %111 = vmatpush1.bf16.msra.mxu0 0
    %112 = vmatprep.subr.bf16.mxu0 0
    %113 = vmatpush1.bf16.msra.mxu0 0
    %114 = vmatprep.mubr.bf16.mxu0 0
    %115 = vmatmul.mubr.bf16.gmra.mrb[0].mxu0 %v80
    %v116 = vpop.f32.mrb[0].mxu0
    %v117 = vadd.f32 %v64, %v116
    %v118 = vpop.f32.mrb[0].mxu0
    %v119 = vpop.f32.mrb[0].mxu0
    %v120 = vpop.f32.mrb[0].mxu0
    %121 = vdwg.mxu0
    %122 = vst [vmem:[#allocation2] sm:$0x3] %v117
    // Predicated region
    $region22: #{vitc_forward.23} parent=1 // pred_check
      _
    $region23: #{vitc_forward.23} parent=1 // pred_check_branch
      %124 = sbr.rel (0) target = $region25
    $region24: #{vitc_forward.23} parent=1 // pred_region
      %s126 = ssub.s32 32, 32
      %127 = vsyncadd [#allocation3], %s126
      %s129 = sshll.u32 [#allocation2], 4
      %s130 = int_to_ptr.vmem [resolvable:$true] %s129
      %132 = dma.vmem_to_hbm [thread:$0]  %s130, 32, %s5, [#allocation3]
    $region25: #{vitc_forward.23} parent=1 // pred_fallthru
      _
    // Predicated region
    $region26: #{vitc_forward.23} parent=1 // pred_check
      _
    $region27: #{vitc_forward.23} parent=1 // pred_check_branch
      %134 = sbr.rel (0) target = $region29
    $region28: #{vitc_forward.23} parent=1 // pred_region
      %135 = dma.done [#allocation3], 32
    $region29: #{vitc_forward.23} parent=1 // pred_fallthru
      _
    %136 = vsyncpa [#allocation3], 1

</llo_original>
